<compile_context>
chip_gen: v5e
topology: v5e:2x2
jax: 0.10.0
libtpu: 0.0.40
codegen_flags: <defaults>
</compile_context>

<pallas_src>
import jax
import jax.numpy as jnp
from jax.experimental import pallas as pl
from jax.experimental.pallas import tpu as pltpu

SENSOR_COUNT = 16
HIDDEN = 256
G3 = 3 * HIDDEN            # pruned gate width: [input, cell, output]

# packed small-vector layout (all segment starts 128-aligned)
_OFF_B1 = 0                # conv1 bias tiled x6   (192)
_OFF_B2 = 256              # conv2 bias tiled x4   (256)
_OFF_BSF = 512             # sensor_fc bias        (128)
_OFF_LNG = 640             # LayerNorm gamma       (128)
_OFF_LNB = 768             # LayerNorm beta        (128)
_OFF_BG = 896              # pruned LSTM gate bias (768)
_OFF_BH1 = 1664            # head1 bias [ba1|bc1]  (256)
_OFF_BH2 = 1920            # head2 bias padded     (128)
VEC_LEN = 2048


# ----------------------------------------------------------------------------
# Fused Pallas kernel (closure over the static batch-tile size BT)
# ----------------------------------------------------------------------------
def _make_kernel(BT):
    def kernel(p1_ref, sen_ref, w1_ref, w2_ref, wsf_ref, wg_ref,
               wh1_ref, wh2_ref, vec_ref, out_ref):
        f32, bf16 = jnp.float32, jnp.bfloat16

        b1t = vec_ref[:, _OFF_B1:_OFF_B1 + 192]       # conv1 bias (tiled x6)
        b2t = vec_ref[:, _OFF_B2:_OFF_B2 + 256]       # conv2 bias (tiled x4)
        bsf = vec_ref[:, _OFF_BSF:_OFF_BSF + 128]
        ln_g = vec_ref[:, _OFF_LNG:_OFF_LNG + 128]
        ln_b = vec_ref[:, _OFF_LNB:_OFF_LNB + 128]
        b_g = vec_ref[:, _OFF_BG:_OFF_BG + G3]
        b_h1 = vec_ref[:, _OFF_BH1:_OFF_BH1 + 256]
        b_h2 = vec_ref[:, _OFF_BH2:_OFF_BH2 + 128]

        def sigmoid(x):                                # exact, uses EUP tanh
            return 0.5 * (jnp.tanh(0.5 * x) + 1.0)

        # ---- conv1 (3->32, k=5, s=2): single block-diagonal dot -------------
        # rows = (oh, b), lanes = (ow, ci); K=450.
        h1 = jnp.dot(p1_ref[...], w1_ref[...],
                     preferred_element_type=f32) + b1t
        h1 = jnp.maximum(h1, 0.0)                      # (6*BT, 192) f32

        # ---- conv2 (32->64, k=3): 3 banded dots, one per kh (K=192) ---------
        # lhs blocks are 8-aligned sublane slices of h1; output rows=(oh2,b),
        # lanes=(ow2, co).
        c2 = jnp.dot(h1[0:4 * BT, :].astype(bf16), w2_ref[0:192, :],
                     preferred_element_type=f32)
        c2 = c2 + jnp.dot(h1[BT:5 * BT, :].astype(bf16), w2_ref[192:384, :],
                          preferred_element_type=f32)
        c2 = c2 + jnp.dot(h1[2 * BT:6 * BT, :].astype(bf16), w2_ref[384:576, :],
                          preferred_element_type=f32)
        c2 = jnp.maximum(c2 + b2t, 0.0)                # (4*BT, 256) f32

        # ---- sensor_fc: Linear(20->128) -> LayerNorm(128) -> ReLU (f32) -----
        s = jnp.dot(sen_ref[...].astype(bf16), wsf_ref[...],
                    preferred_element_type=f32) + bsf
        mu = jnp.mean(s, axis=-1, keepdims=True)
        var = jnp.mean((s - mu) ** 2, axis=-1, keepdims=True)
        s = (s - mu) * jax.lax.rsqrt(var + 1e-5) * ln_g + ln_b
        s = jnp.maximum(s, 0.0)                        # (BT, 128)

        # ---- combined LSTM input: lanes = [p*64+co (1024) | sensor (128)] ---
        # 128-aligned lane concat of 4 aligned slices of c2 plus s.
        x = jnp.concatenate(
            [c2[0:BT, :], c2[BT:2 * BT, :], c2[2 * BT:3 * BT, :],
             c2[3 * BT:4 * BT, :], s], axis=-1).astype(bf16)    # (BT, 1152)

        # ---- LSTM single step, zero initial state, forget gate pruned -------
        gates = jnp.dot(x, wg_ref[...], preferred_element_type=f32) + b_g
        i_g = sigmoid(gates[:, 0:HIDDEN])
        g_g = jnp.tanh(gates[:, HIDDEN:2 * HIDDEN])
        o_g = sigmoid(gates[:, 2 * HIDDEN:3 * HIDDEN])
        h = o_g * jnp.tanh(i_g * g_g)                  # f*c0 == 0; (BT, 256)

        # ---- actor + critic heads -> one lane-dense (BT, 128) slab ----------
        hh = jnp.maximum(jnp.dot(h.astype(bf16), wh1_ref[...],
                                 preferred_element_type=f32) + b_h1, 0.0)
        out_ref[...] = jnp.dot(hh.astype(bf16), wh2_ref[...],
                               preferred_element_type=f32) + b_h2

    return kernel


# ----------------------------------------------------------------------------
# Parameters (deterministic synthetic init, PyTorch nn.Module layout)
# ----------------------------------------------------------------------------
def init_params(key):
    ks = jax.random.split(key, 20)

    def rnd(k, shape, scale=0.05):
        return scale * jax.random.normal(k, shape, dtype=jnp.float32)

    return dict(
        # visual_encoder
        w1=rnd(ks[0], (32, 3, 5, 5)), b1=rnd(ks[1], (32,)),
        w2=rnd(ks[2], (64, 32, 3, 3)), b2=rnd(ks[3], (64,)),
        # sensor_fc
        wsf=rnd(ks[4], (128, SENSOR_COUNT + 4)), bsf=rnd(ks[5], (128,)),
        ln_g=jnp.ones((128,), jnp.float32), ln_b=jnp.zeros((128,), jnp.float32),
        # LSTM(128 + 1024 -> 256)
        w_ih=rnd(ks[6], (4 * HIDDEN, 1024 + 128)),
        w_hh=rnd(ks[7], (4 * HIDDEN, HIDDEN)),   # unused: zero initial h state
        b_ih=rnd(ks[8], (4 * HIDDEN,)), b_hh=rnd(ks[9], (4 * HIDDEN,)),
        # actor
        wa1=rnd(ks[10], (128, HIDDEN)), ba1=rnd(ks[11], (128,)),
        wa2=rnd(ks[12], (3, 128)), ba2=rnd(ks[13], (3,)),
        # critic
        wc1=rnd(ks[14], (128, HIDDEN)), bc1=rnd(ks[15], (128,)),
        wc2=rnd(ks[16], (1, 128)), bc2=rnd(ks[17], (1,)),
    )


# ----------------------------------------------------------------------------
# One-time weight prep: prune forget gate, fold all permutations into weight
# layouts (block-diag conv1, banded conv2, NCHW-flatten fold), bf16, pack bias
# ----------------------------------------------------------------------------
def prepare_params(params):
    bf16 = jnp.bfloat16
    H = HIDDEN
    w_ih = params["w_ih"]
    b_sum = params["b_ih"] + params["b_hh"]

    # keep only [input, cell, output] gate rows (forget gate hits c0 == 0)
    w_igo = jnp.concatenate([w_ih[0:H], w_ih[2 * H:3 * H], w_ih[3 * H:4 * H]], 0)
    b_igo = jnp.concatenate([b_sum[0:H], b_sum[2 * H:3 * H], b_sum[3 * H:4 * H]], 0)

    # visual gate weights: fold the NCHW flatten (f_pt = co*16 + p) into
    # row order p*64 + co; stack with the sensor part -> one (1152, 768).
    wv = w_igo[:, :1024].reshape(G3, 64, 16)                  # (gate, co, p)
    wih_v = wv.transpose(2, 1, 0).reshape(1024, G3)           # row = p*64+co
    wih_s = w_igo[:, 1024:].T                                 # (128, 768)
    w_gates = jnp.concatenate([wih_v, wih_s], 0).astype(bf16)  # (1152, 768)

    # conv1 as a block-diagonal matmul over ow: (450, 192), rows (ow,kh,kw,ci),
    # cols (ow, co) -> output lands directly in the (oh,b)x(ow,ci) layout.
    w1f = params["w1"].transpose(2, 3, 1, 0).reshape(75, 32)  # (kh,kw,ci)->co
    w1blk = jnp.zeros((450, 192), jnp.float32)
    for ow in range(6):
        w1blk = w1blk.at[ow * 75:(ow + 1) * 75, ow * 32:(ow + 1) * 32].set(w1f)
    w1blk = w1blk.astype(bf16)

    # conv2 as 3 banded matrices (one per kh): rows (ow, ci), cols (ow2, co).
    w2k = params["w2"].transpose(2, 3, 1, 0)                  # (kh, kw, ci, co)
    band = jnp.zeros((3, 6, 32, 4, 64), jnp.float32)          # (kh, ow, ci, ow2, co)
    for kh in range(3):
        for kw in range(3):
            for ow2 in range(4):
                band = band.at[kh, ow2 + kw, :, ow2, :].set(w2k[kh, kw])
    w2band = band.reshape(576, 256).astype(bf16)

    wsf_t = params["wsf"].T.astype(bf16)                      # (20, 128)

    # heads: first layers concatenated, second layer block-diag into a
    # lane-dense 128-wide output slab (actor -> cols 0:3, critic -> col 3).
    w_head1 = jnp.concatenate([params["wa1"].T, params["wc1"].T], 1).astype(bf16)
    w_head2 = jnp.zeros((256, 128), jnp.float32)
    w_head2 = w_head2.at[:128, 0:3].set(params["wa2"].T)
    w_head2 = w_head2.at[128:, 3:4].set(params["wc2"].T)
    w_head2 = w_head2.astype(bf16)

    # packed small vectors (f32, 128-aligned segment starts) -> single DMA
    vec = jnp.zeros((1, VEC_LEN), jnp.float32)
    vec = vec.at[0, _OFF_B1:_OFF_B1 + 192].set(jnp.tile(params["b1"], 6))
    vec = vec.at[0, _OFF_B2:_OFF_B2 + 256].set(jnp.tile(params["b2"], 4))
    vec = vec.at[0, _OFF_BSF:_OFF_BSF + 128].set(params["bsf"])
    vec = vec.at[0, _OFF_LNG:_OFF_LNG + 128].set(params["ln_g"])
    vec = vec.at[0, _OFF_LNB:_OFF_LNB + 128].set(params["ln_b"])
    vec = vec.at[0, _OFF_BG:_OFF_BG + G3].set(b_igo)
    vec = vec.at[0, _OFF_BH1:_OFF_BH1 + 128].set(params["ba1"])
    vec = vec.at[0, _OFF_BH1 + 128:_OFF_BH1 + 256].set(params["bc1"])
    vec = vec.at[0, _OFF_BH2:_OFF_BH2 + 3].set(params["ba2"])
    vec = vec.at[0, _OFF_BH2 + 3:_OFF_BH2 + 4].set(params["bc2"])

    return dict(w1blk=w1blk, w2band=w2band, wsf_t=wsf_t, w_gates=w_gates,
                w_head1=w_head1, w_head2=w_head2, vec=vec)


# ----------------------------------------------------------------------------
# Forward pass: thin im2col glue + batch-tiled fused pallas_call
# ----------------------------------------------------------------------------
def actor_critic_forward(prepped, visual, sensor, hidden, *, block_b=8):
    """block_b: batch rows per grid step (multiple of 8).  Raise to 64-128 for
    throughput on large batches; the grid axis is 'parallel' so v7x shards it
    across both TensorCores while the constant-index weights stay resident."""
    assert block_b % 8 == 0
    B = visual.shape[0]
    BT = block_b
    B_pad = ((B + BT - 1) // BT) * BT
    T = B_pad // BT
    pad = B_pad - B
    if pad:
        visual = jnp.pad(visual, ((0, pad), (0, 0), (0, 0), (0, 0)))
        sensor = jnp.pad(sensor, ((0, pad), (0, 0)))

    # conv1 im2col patches (tiny XLA glue): rows ordered (tile, oh, b_in),
    # cols ordered (ow, kh, kw, ci) to match the block-diagonal w1blk.
    # TODO(synk): strided patch extraction has no clean in-kernel equivalent;
    # it stays as host-side slicing feeding the fused kernel.
    v = jnp.transpose(visual, (0, 2, 3, 1))                    # (B_pad, 16, 16, 3)
    cols = [v[:, kh:kh + 11:2, kw:kw + 11:2, :]
            for kh in range(5) for kw in range(5)]             # 25 x (B_pad, 6, 6, 3)
    p = jnp.concatenate(cols, axis=-1)                         # (B_pad, 6, 6, 75)
    p = p.reshape(T, BT, 6, 6, 75).transpose(0, 2, 1, 3, 4)    # (T, oh, b, ow, 75)
    patches1 = p.reshape(T * 6 * BT, 6 * 75).astype(jnp.bfloat16)

    out_full = pl.pallas_call(
        _make_kernel(BT),
        out_shape=jax.ShapeDtypeStruct((B_pad, 128), jnp.float32),
        grid=(T,),
        in_specs=[
            # activations: pipelined per batch tile
            pl.BlockSpec((6 * BT, 450), lambda i: (i, 0)),
            pl.BlockSpec((BT, SENSOR_COUNT + 4), lambda i: (i, 0)),
            # weights: constant index_map -> fetched once, VMEM-resident
            pl.BlockSpec((450, 192), lambda i: (0, 0)),
            pl.BlockSpec((576, 256), lambda i: (0, 0)),
            pl.BlockSpec((SENSOR_COUNT + 4, 128), lambda i: (0, 0)),
            pl.BlockSpec((1152, G3), lambda i: (0, 0)),
            pl.BlockSpec((256, 256), lambda i: (0, 0)),
            pl.BlockSpec((256, 128), lambda i: (0, 0)),
            pl.BlockSpec((1, VEC_LEN), lambda i: (0, 0)),
        ],
        out_specs=pl.BlockSpec((BT, 128), lambda i: (i, 0)),
        compiler_params=pltpu.CompilerParams(
            dimension_semantics=("parallel",),
            vmem_limit_bytes=32 * 1024 * 1024),
    )(patches1, sensor,
      prepped["w1blk"], prepped["w2band"], prepped["wsf_t"],
      prepped["w_gates"], prepped["w_head1"], prepped["w_head2"],
      prepped["vec"])

    # lstm_out in the reference has shape (B, 1, 256); heads keep that layout.
    # `hidden` is returned unchanged, exactly like the reference forward.
    actor = out_full[:B, 0:3].reshape(B, 1, 3)
    critic = out_full[:B, 3:4].reshape(B, 1, 1)
    return actor, critic, hidden


# ----------------------------------------------------------------------------
# Pure-JAX f32 reference (PyTorch-layout params) for the numerical check
# ----------------------------------------------------------------------------
def reference_forward(params, visual, sensor, hidden):
    dn = ("NCHW", "OIHW", "NCHW")
    out = jax.lax.conv_general_dilated(visual, params["w1"], (2, 2), "VALID",
                                       dimension_numbers=dn)
    out = jnp.maximum(out + params["b1"][None, :, None, None], 0.0)
    out = jax.lax.conv_general_dilated(out, params["w2"], (1, 1), "VALID",
                                       dimension_numbers=dn)
    out = jnp.maximum(out + params["b2"][None, :, None, None], 0.0)
    vis = out.reshape(out.shape[0], -1)

    s = sensor @ params["wsf"].T + params["bsf"]
    mu = s.mean(-1, keepdims=True)
    var = ((s - mu) ** 2).mean(-1, keepdims=True)
    s = (s - mu) / jnp.sqrt(var + 1e-5) * params["ln_g"] + params["ln_b"]
    s = jnp.maximum(s, 0.0)

    x = jnp.concatenate([vis, s], -1)
    gates = x @ params["w_ih"].T + params["b_ih"] + params["b_hh"]
    gi, _, gg, go = jnp.split(gates, 4, axis=-1)
    sig = lambda z: 1.0 / (1.0 + jnp.exp(-z))
    c = sig(gi) * jnp.tanh(gg)
    h = sig(go) * jnp.tanh(c)

    a = jnp.maximum(h @ params["wa1"].T + params["ba1"], 0.0)
    a = a @ params["wa2"].T + params["ba2"]
    v = jnp.maximum(h @ params["wc1"].T + params["bc1"], 0.0)
    v = v @ params["wc2"].T + params["bc2"]
    B = visual.shape[0]
    return a.reshape(B, 1, 3), v.reshape(B, 1, 1), hidden


if __name__ == "__main__":
    key = jax.random.PRNGKey(0)
    kp, kv, ks = jax.random.split(key, 3)
    params = init_params(kp)
    prepped = prepare_params(params)          # one-time weight prep

    B = 2
    visual = jax.random.normal(kv, (B, 3, 16, 16), dtype=jnp.float32)
    sensor = jax.random.normal(ks, (B, SENSOR_COUNT + 4), dtype=jnp.float32)
    hidden = (jnp.zeros((1, B, HIDDEN), jnp.float32),
              jnp.zeros((1, B, HIDDEN), jnp.float32))

    fwd = jax.jit(actor_critic_forward)
    actor_out, critic_out, hidden_out = fwd(prepped, visual, sensor, hidden)
    jax.block_until_ready((actor_out, critic_out, hidden_out))

    assert actor_out.shape == (B, 1, 3)
    assert critic_out.shape == (B, 1, 1)

    a_ref, c_ref, _ = reference_forward(params, visual, sensor, hidden)
    assert jnp.allclose(actor_out, a_ref, atol=2e-2, rtol=2e-2)
    assert jnp.allclose(critic_out, c_ref, atol=2e-2, rtol=2e-2)

    print("KERNEL_OK")
</pallas_src>

<mosaic_0001>
module attributes {stable_mosaic.version = 11 : i64} {
  func.func @kernel(%arg0: i32, %arg1: memref<48x450xbf16, #tpu.memory_space<vmem>>, %arg2: memref<8x20xf32, #tpu.memory_space<vmem>>, %arg3: memref<450x192xbf16, #tpu.memory_space<vmem>>, %arg4: memref<576x256xbf16, #tpu.memory_space<vmem>>, %arg5: memref<20x128xbf16, #tpu.memory_space<vmem>>, %arg6: memref<1152x768xbf16, #tpu.memory_space<vmem>>, %arg7: memref<256x256xbf16, #tpu.memory_space<vmem>>, %arg8: memref<256x128xbf16, #tpu.memory_space<vmem>>, %arg9: memref<1x2048xf32, #tpu.memory_space<vmem>>, %arg10: memref<8x128xf32, #tpu.memory_space<vmem>>) attributes {dimension_semantics = [#tpu.dimension_semantics<parallel>], iteration_bounds = array<i64: 1>, scalar_prefetch = 0 : i64, scratch_operands = 0 : i64, tpu.core_type = #tpu.core_type<tc>, window_params = [{transform_indices = @transform_0, window_bounds = array<i64: 48, 450>}, {transform_indices = @transform_1, window_bounds = array<i64: 8, 20>}, {pipeline_mode = #tpu.pipeline_mode<synchronous>, transform_indices = @transform_2, window_bounds = array<i64: 450, 192>}, {pipeline_mode = #tpu.pipeline_mode<synchronous>, transform_indices = @transform_3, window_bounds = array<i64: 576, 256>}, {pipeline_mode = #tpu.pipeline_mode<synchronous>, transform_indices = @transform_4, window_bounds = array<i64: 20, 128>}, {pipeline_mode = #tpu.pipeline_mode<synchronous>, transform_indices = @transform_5, window_bounds = array<i64: 1152, 768>}, {pipeline_mode = #tpu.pipeline_mode<synchronous>, transform_indices = @transform_6, window_bounds = array<i64: 256, 256>}, {pipeline_mode = #tpu.pipeline_mode<synchronous>, transform_indices = @transform_7, window_bounds = array<i64: 256, 128>}, {pipeline_mode = #tpu.pipeline_mode<synchronous>, transform_indices = @transform_8, window_bounds = array<i64: 1, 2048>}, {transform_indices = @transform_9, window_bounds = array<i64: 8, 128>}]} {
    %c0 = arith.constant 0 : index
    %c0_0 = arith.constant 0 : index
    %0 = vector.load %arg9[%c0, %c0_0] : memref<1x2048xf32, #tpu.memory_space<vmem>>, vector<1x192xf32>
    %c0_1 = arith.constant 0 : index
    %c256 = arith.constant 256 : index
    %1 = vector.load %arg9[%c0_1, %c256] : memref<1x2048xf32, #tpu.memory_space<vmem>>, vector<1x256xf32>
    %c0_2 = arith.constant 0 : index
    %c512 = arith.constant 512 : index
    %2 = vector.load %arg9[%c0_2, %c512] : memref<1x2048xf32, #tpu.memory_space<vmem>>, vector<1x128xf32>
    %c0_3 = arith.constant 0 : index
    %c640 = arith.constant 640 : index
    %3 = vector.load %arg9[%c0_3, %c640] : memref<1x2048xf32, #tpu.memory_space<vmem>>, vector<1x128xf32>
    %c0_4 = arith.constant 0 : index
    %c768 = arith.constant 768 : index
    %4 = vector.load %arg9[%c0_4, %c768] : memref<1x2048xf32, #tpu.memory_space<vmem>>, vector<1x128xf32>
    %c0_5 = arith.constant 0 : index
    %c896 = arith.constant 896 : index
    %5 = vector.load %arg9[%c0_5, %c896] : memref<1x2048xf32, #tpu.memory_space<vmem>>, vector<1x768xf32>
    %c0_6 = arith.constant 0 : index
    %c1664 = arith.constant 1664 : index
    %6 = vector.load %arg9[%c0_6, %c1664] : memref<1x2048xf32, #tpu.memory_space<vmem>>, vector<1x256xf32>
    %c0_7 = arith.constant 0 : index
    %c1920 = arith.constant 1920 : index
    %7 = vector.load %arg9[%c0_7, %c1920] : memref<1x2048xf32, #tpu.memory_space<vmem>>, vector<1x128xf32>
    %c0_8 = arith.constant 0 : index
    %c0_9 = arith.constant 0 : index
    %8 = vector.load %arg1[%c0_8, %c0_9] : memref<48x450xbf16, #tpu.memory_space<vmem>>, vector<48x450xbf16>
    %c0_10 = arith.constant 0 : index
    %c0_11 = arith.constant 0 : index
    %9 = vector.load %arg3[%c0_10, %c0_11] : memref<450x192xbf16, #tpu.memory_space<vmem>>, vector<450x192xbf16>
    %cst = arith.constant dense<0.000000e+00> : vector<48x192xf32>
    %10 = tpu.matmul %8, %9, %cst {dimension_numbers = #tpu.dot_dimension_numbers<[1], [0], [0], [1], [0, 0, 1, 1], [], []>} : vector<48x450xbf16>, vector<450x192xbf16>, vector<48x192xf32> -> vector<48x192xf32>
    %11 = vector.broadcast %0 : vector<1x192xf32> to vector<48x192xf32>
    %12 = arith.addf %10, %11 : vector<48x192xf32>
    %cst_12 = arith.constant 0.000000e+00 : f32
    %13 = vector.broadcast %cst_12 : f32 to vector<48x192xf32>
    %14 = arith.maximumf %12, %13 : vector<48x192xf32>
    %15 = vector.extract_strided_slice %14 {offsets = [0, 0], sizes = [32, 192], strides = [1, 1]} : vector<48x192xf32> to vector<32x192xf32>
    %16 = arith.truncf %15 : vector<32x192xf32> to vector<32x192xbf16>
    %c0_13 = arith.constant 0 : index
    %c0_14 = arith.constant 0 : index
    %17 = vector.load %arg4[%c0_13, %c0_14] : memref<576x256xbf16, #tpu.memory_space<vmem>>, vector<192x256xbf16>
    %cst_15 = arith.constant dense<0.000000e+00> : vector<32x256xf32>
    %18 = tpu.matmul %16, %17, %cst_15 {dimension_numbers = #tpu.dot_dimension_numbers<[1], [0], [0], [1], [0, 0, 1, 1], [], []>} : vector<32x192xbf16>, vector<192x256xbf16>, vector<32x256xf32> -> vector<32x256xf32>
    %19 = vector.extract_strided_slice %14 {offsets = [8, 0], sizes = [32, 192], strides = [1, 1]} : vector<48x192xf32> to vector<32x192xf32>
    %20 = arith.truncf %19 : vector<32x192xf32> to vector<32x192xbf16>
    %c192 = arith.constant 192 : index
    %c0_16 = arith.constant 0 : index
    %21 = vector.load %arg4[%c192, %c0_16] : memref<576x256xbf16, #tpu.memory_space<vmem>>, vector<192x256xbf16>
    %cst_17 = arith.constant dense<0.000000e+00> : vector<32x256xf32>
    %22 = tpu.matmul %20, %21, %cst_17 {dimension_numbers = #tpu.dot_dimension_numbers<[1], [0], [0], [1], [0, 0, 1, 1], [], []>} : vector<32x192xbf16>, vector<192x256xbf16>, vector<32x256xf32> -> vector<32x256xf32>
    %23 = arith.addf %18, %22 : vector<32x256xf32>
    %24 = vector.extract_strided_slice %14 {offsets = [16, 0], sizes = [32, 192], strides = [1, 1]} : vector<48x192xf32> to vector<32x192xf32>
    %25 = arith.truncf %24 : vector<32x192xf32> to vector<32x192xbf16>
    %c384 = arith.constant 384 : index
    %c0_18 = arith.constant 0 : index
    %26 = vector.load %arg4[%c384, %c0_18] : memref<576x256xbf16, #tpu.memory_space<vmem>>, vector<192x256xbf16>
    %cst_19 = arith.constant dense<0.000000e+00> : vector<32x256xf32>
    %27 = tpu.matmul %25, %26, %cst_19 {dimension_numbers = #tpu.dot_dimension_numbers<[1], [0], [0], [1], [0, 0, 1, 1], [], []>} : vector<32x192xbf16>, vector<192x256xbf16>, vector<32x256xf32> -> vector<32x256xf32>
    %28 = arith.addf %23, %27 : vector<32x256xf32>
    %29 = vector.broadcast %1 : vector<1x256xf32> to vector<32x256xf32>
    %30 = arith.addf %28, %29 : vector<32x256xf32>
    %cst_20 = arith.constant 0.000000e+00 : f32
    %31 = vector.broadcast %cst_20 : f32 to vector<32x256xf32>
    %32 = arith.maximumf %30, %31 : vector<32x256xf32>
    %c0_21 = arith.constant 0 : index
    %c0_22 = arith.constant 0 : index
    %33 = vector.load %arg2[%c0_21, %c0_22] : memref<8x20xf32, #tpu.memory_space<vmem>>, vector<8x20xf32>
    %34 = arith.truncf %33 : vector<8x20xf32> to vector<8x20xbf16>
    %c0_23 = arith.constant 0 : index
    %c0_24 = arith.constant 0 : index
    %35 = vector.load %arg5[%c0_23, %c0_24] : memref<20x128xbf16, #tpu.memory_space<vmem>>, vector<20x128xbf16>
    %cst_25 = arith.constant dense<0.000000e+00> : vector<8x128xf32>
    %36 = tpu.matmul %34, %35, %cst_25 {dimension_numbers = #tpu.dot_dimension_numbers<[1], [0], [0], [1], [0, 0, 1, 1], [], []>} : vector<8x20xbf16>, vector<20x128xbf16>, vector<8x128xf32> -> vector<8x128xf32>
    %37 = vector.broadcast %2 : vector<1x128xf32> to vector<8x128xf32>
    %38 = arith.addf %36, %37 : vector<8x128xf32>
    %cst_26 = arith.constant dense<0.000000e+00> : vector<8xf32>
    %39 = vector.multi_reduction <add>, %38, %cst_26 [1] : vector<8x128xf32> to vector<8xf32>
    %40 = vector.shape_cast %39 : vector<8xf32> to vector<8x1xf32>
    %cst_27 = arith.constant 1.280000e+02 : f32
    %41 = vector.broadcast %cst_27 : f32 to vector<8x1xf32>
    %42 = arith.divf %40, %41 : vector<8x1xf32>
    %43 = vector.broadcast %42 : vector<8x1xf32> to vector<8x128xf32>
    %44 = arith.subf %38, %43 : vector<8x128xf32>
    %45 = arith.mulf %44, %44 : vector<8x128xf32>
    %cst_28 = arith.constant dense<0.000000e+00> : vector<8xf32>
    %46 = vector.multi_reduction <add>, %45, %cst_28 [1] : vector<8x128xf32> to vector<8xf32>
    %47 = vector.shape_cast %46 : vector<8xf32> to vector<8x1xf32>
    %cst_29 = arith.constant 1.280000e+02 : f32
    %48 = vector.broadcast %cst_29 : f32 to vector<8x1xf32>
    %49 = arith.divf %47, %48 : vector<8x1xf32>
    %50 = vector.broadcast %42 : vector<8x1xf32> to vector<8x128xf32>
    %51 = arith.subf %38, %50 : vector<8x128xf32>
    %cst_30 = arith.constant 9.99999974E-6 : f32
    %52 = vector.broadcast %cst_30 : f32 to vector<8x1xf32>
    %53 = arith.addf %49, %52 : vector<8x1xf32>
    %54 = math.rsqrt %53 : vector<8x1xf32>
    %55 = vector.broadcast %54 : vector<8x1xf32> to vector<8x128xf32>
    %56 = arith.mulf %51, %55 : vector<8x128xf32>
    %57 = vector.broadcast %3 : vector<1x128xf32> to vector<8x128xf32>
    %58 = arith.mulf %56, %57 : vector<8x128xf32>
    %59 = vector.broadcast %4 : vector<1x128xf32> to vector<8x128xf32>
    %60 = arith.addf %58, %59 : vector<8x128xf32>
    %cst_31 = arith.constant 0.000000e+00 : f32
    %61 = vector.broadcast %cst_31 : f32 to vector<8x128xf32>
    %62 = arith.maximumf %60, %61 : vector<8x128xf32>
    %63 = vector.extract_strided_slice %32 {offsets = [0, 0], sizes = [8, 256], strides = [1, 1]} : vector<32x256xf32> to vector<8x256xf32>
    %64 = vector.extract_strided_slice %32 {offsets = [8, 0], sizes = [8, 256], strides = [1, 1]} : vector<32x256xf32> to vector<8x256xf32>
    %65 = vector.extract_strided_slice %32 {offsets = [16, 0], sizes = [8, 256], strides = [1, 1]} : vector<32x256xf32> to vector<8x256xf32>
    %66 = vector.extract_strided_slice %32 {offsets = [24, 0], sizes = [8, 256], strides = [1, 1]} : vector<32x256xf32> to vector<8x256xf32>
    %67 = tpu.concatenate %63, %64, %65, %66, %62 in 1 : vector<8x256xf32>, vector<8x256xf32>, vector<8x256xf32>, vector<8x256xf32>, vector<8x128xf32> -> vector<8x1152xf32>
    %68 = arith.truncf %67 : vector<8x1152xf32> to vector<8x1152xbf16>
    %c0_32 = arith.constant 0 : index
    %c0_33 = arith.constant 0 : index
    %69 = vector.load %arg6[%c0_32, %c0_33] : memref<1152x768xbf16, #tpu.memory_space<vmem>>, vector<1152x768xbf16>
    %cst_34 = arith.constant dense<0.000000e+00> : vector<8x768xf32>
    %70 = tpu.matmul %68, %69, %cst_34 {dimension_numbers = #tpu.dot_dimension_numbers<[1], [0], [0], [1], [0, 0, 1, 1], [], []>} : vector<8x1152xbf16>, vector<1152x768xbf16>, vector<8x768xf32> -> vector<8x768xf32>
    %71 = vector.broadcast %5 : vector<1x768xf32> to vector<8x768xf32>
    %72 = arith.addf %70, %71 : vector<8x768xf32>
    %73 = vector.extract_strided_slice %72 {offsets = [0, 0], sizes = [8, 256], strides = [1, 1]} : vector<8x768xf32> to vector<8x256xf32>
    %cst_35 = arith.constant 5.000000e-01 : f32
    %74 = vector.broadcast %cst_35 : f32 to vector<8x256xf32>
    %75 = arith.mulf %74, %73 : vector<8x256xf32>
    %76 = math.tanh %75 : vector<8x256xf32>
    %cst_36 = arith.constant 1.000000e+00 : f32
    %77 = vector.broadcast %cst_36 : f32 to vector<8x256xf32>
    %78 = arith.addf %76, %77 : vector<8x256xf32>
    %cst_37 = arith.constant 5.000000e-01 : f32
    %79 = vector.broadcast %cst_37 : f32 to vector<8x256xf32>
    %80 = arith.mulf %79, %78 : vector<8x256xf32>
    %81 = vector.extract_strided_slice %72 {offsets = [0, 256], sizes = [8, 256], strides = [1, 1]} : vector<8x768xf32> to vector<8x256xf32>
    %82 = math.tanh %81 : vector<8x256xf32>
    %83 = vector.extract_strided_slice %72 {offsets = [0, 512], sizes = [8, 256], strides = [1, 1]} : vector<8x768xf32> to vector<8x256xf32>
    %cst_38 = arith.constant 5.000000e-01 : f32
    %84 = vector.broadcast %cst_38 : f32 to vector<8x256xf32>
    %85 = arith.mulf %84, %83 : vector<8x256xf32>
    %86 = math.tanh %85 : vector<8x256xf32>
    %cst_39 = arith.constant 1.000000e+00 : f32
    %87 = vector.broadcast %cst_39 : f32 to vector<8x256xf32>
    %88 = arith.addf %86, %87 : vector<8x256xf32>
    %cst_40 = arith.constant 5.000000e-01 : f32
    %89 = vector.broadcast %cst_40 : f32 to vector<8x256xf32>
    %90 = arith.mulf %89, %88 : vector<8x256xf32>
    %91 = arith.mulf %80, %82 : vector<8x256xf32>
    %92 = math.tanh %91 : vector<8x256xf32>
    %93 = arith.mulf %90, %92 : vector<8x256xf32>
    %94 = arith.truncf %93 : vector<8x256xf32> to vector<8x256xbf16>
    %c0_41 = arith.constant 0 : index
    %c0_42 = arith.constant 0 : index
    %95 = vector.load %arg7[%c0_41, %c0_42] : memref<256x256xbf16, #tpu.memory_space<vmem>>, vector<256x256xbf16>
    %cst_43 = arith.constant dense<0.000000e+00> : vector<8x256xf32>
    %96 = tpu.matmul %94, %95, %cst_43 {dimension_numbers = #tpu.dot_dimension_numbers<[1], [0], [0], [1], [0, 0, 1, 1], [], []>} : vector<8x256xbf16>, vector<256x256xbf16>, vector<8x256xf32> -> vector<8x256xf32>
    %97 = vector.broadcast %6 : vector<1x256xf32> to vector<8x256xf32>
    %98 = arith.addf %96, %97 : vector<8x256xf32>
    %cst_44 = arith.constant 0.000000e+00 : f32
    %99 = vector.broadcast %cst_44 : f32 to vector<8x256xf32>
    %100 = arith.maximumf %98, %99 : vector<8x256xf32>
    %101 = arith.truncf %100 : vector<8x256xf32> to vector<8x256xbf16>
    %c0_45 = arith.constant 0 : index
    %c0_46 = arith.constant 0 : index
    %102 = vector.load %arg8[%c0_45, %c0_46] : memref<256x128xbf16, #tpu.memory_space<vmem>>, vector<256x128xbf16>
    %cst_47 = arith.constant dense<0.000000e+00> : vector<8x128xf32>
    %103 = tpu.matmul %101, %102, %cst_47 {dimension_numbers = #tpu.dot_dimension_numbers<[1], [0], [0], [1], [0, 0, 1, 1], [], []>} : vector<8x256xbf16>, vector<256x128xbf16>, vector<8x128xf32> -> vector<8x128xf32>
    %104 = vector.broadcast %7 : vector<1x128xf32> to vector<8x128xf32>
    %105 = arith.addf %103, %104 : vector<8x128xf32>
    %c0_48 = arith.constant 0 : index
    %c0_49 = arith.constant 0 : index
    %106 = vector.load %arg10[%c0_48, %c0_49] : memref<8x128xf32, #tpu.memory_space<vmem>>, vector<8x128xf32>
    tpu.vector_store %arg10[%c0_48, %c0_49], %105 {strides = array<i32>} : memref<8x128xf32, #tpu.memory_space<vmem>>, vector<8x128xf32>,
    return
  }
  func.func @transform_0(%arg0: i32) -> (i32, i32) {
    %c0_i32 = arith.constant 0 : i32
    %c0_i32_0 = arith.constant 0 : i32
    return %arg0, %c0_i32 : i32, i32
  }
  func.func @transform_1(%arg0: i32) -> (i32, i32) {
    %c0_i32 = arith.constant 0 : i32
    %c0_i32_0 = arith.constant 0 : i32
    return %arg0, %c0_i32 : i32, i32
  }
  func.func @transform_2(%arg0: i32) -> (i32, i32) {
    %c0_i32 = arith.constant 0 : i32
    %c0_i32_0 = arith.constant 0 : i32
    %c0_i32_1 = arith.constant 0 : i32
    return %c0_i32, %c0_i32_0 : i32, i32
  }
  func.func @transform_3(%arg0: i32) -> (i32, i32) {
    %c0_i32 = arith.constant 0 : i32
    %c0_i32_0 = arith.constant 0 : i32
    %c0_i32_1 = arith.constant 0 : i32
    return %c0_i32, %c0_i32_0 : i32, i32
  }
  func.func @transform_4(%arg0: i32) -> (i32, i32) {
    %c0_i32 = arith.constant 0 : i32
    %c0_i32_0 = arith.constant 0 : i32
    %c0_i32_1 = arith.constant 0 : i32
    return %c0_i32, %c0_i32_0 : i32, i32
  }
  func.func @transform_5(%arg0: i32) -> (i32, i32) {
    %c0_i32 = arith.constant 0 : i32
    %c0_i32_0 = arith.constant 0 : i32
    %c0_i32_1 = arith.constant 0 : i32
    return %c0_i32, %c0_i32_0 : i32, i32
  }
  func.func @transform_6(%arg0: i32) -> (i32, i32) {
    %c0_i32 = arith.constant 0 : i32
    %c0_i32_0 = arith.constant 0 : i32
    %c0_i32_1 = arith.constant 0 : i32
    return %c0_i32, %c0_i32_0 : i32, i32
  }
  func.func @transform_7(%arg0: i32) -> (i32, i32) {
    %c0_i32 = arith.constant 0 : i32
    %c0_i32_0 = arith.constant 0 : i32
    %c0_i32_1 = arith.constant 0 : i32
    return %c0_i32, %c0_i32_0 : i32, i32
  }
  func.func @transform_8(%arg0: i32) -> (i32, i32) {
    %c0_i32 = arith.constant 0 : i32
    %c0_i32_0 = arith.constant 0 : i32
    %c0_i32_1 = arith.constant 0 : i32
    return %c0_i32, %c0_i32_0 : i32, i32
  }
  func.func @transform_9(%arg0: i32) -> (i32, i32) {
    %c0_i32 = arith.constant 0 : i32
    %c0_i32_0 = arith.constant 0 : i32
    return %arg0, %c0_i32 : i32, i32
  }
}

</mosaic_0001>

<llo_original>
// kernel: actor_critic_forward.1
$region0: #{actor_critic_forward.1}
  #allocation0 [shape = 'u32[]', space=smem, size = 0x4, offset = 0x4, fixed_abs, tag = 'smem constant byte address 0x4 - core index']
  #allocation1 [shape = 'u32[72,128]{1,0:T(1,128)}', space=vmem, size = 0x9000, scoped, tag = 'internal scratch']
  %s0 = inlined_call_operand.vmem [shape: bf16[48,450], index: 0, kind: input, shape index: {}]
  %s1 = inlined_call_operand.vmem [shape: f32[8,20], index: 1, kind: input, shape index: {}]
  %s2 = inlined_call_operand.vmem [shape: bf16[450,192], index: 2, kind: input, shape index: {}]
  %s3 = inlined_call_operand.vmem [shape: bf16[576,256], index: 3, kind: input, shape index: {}]
  %s4 = inlined_call_operand.vmem [shape: bf16[20,128], index: 4, kind: input, shape index: {}]
  %s5 = inlined_call_operand.vmem [shape: bf16[1152,768], index: 5, kind: input, shape index: {}]
  %s6 = inlined_call_operand.vmem [shape: bf16[256,256], index: 6, kind: input, shape index: {}]
  %s7 = inlined_call_operand.vmem [shape: bf16[256,128], index: 7, kind: input, shape index: {}]
  %s8 = inlined_call_operand.vmem [shape: f32[1,2048], index: 8, kind: input, shape index: {}]
  %s9 = inlined_call_operand.vmem [shape: f32[8,128], index: 9, kind: output, shape index: {}]
  %s10 = sld [smem:[#allocation0]]
  $region46: #{actor_critic_forward.1} parent=0
    _
  %s12 = ssub.s32 1, %s10
  %s13 = scalar_select 0, %s12, %s10
  // Predicated region
  $region2: #{actor_critic_forward.1} parent=0 // pred_check
    _
  $region3: #{actor_critic_forward.1} parent=0 // pred_check_branch
    %15 = sbr.rel (0) target = $region5
  $region4: #{actor_critic_forward.1} parent=0 // pred_region
    _
  $region5: #{actor_critic_forward.1} parent=0 // pred_fallthru
    _
  // Predicated region
  $region6: #{actor_critic_forward.1} parent=0 // pred_check
    _
  $region7: #{actor_critic_forward.1} parent=0 // pred_check_branch
    %17 = sbr.rel (0) target = $region9
  $region8: #{actor_critic_forward.1} parent=0 // pred_region
    _
  $region9: #{actor_critic_forward.1} parent=0 // pred_fallthru
    _
  // Predicated region
  $region10: #{actor_critic_forward.1} parent=0 // pred_check
    _
  $region11: #{actor_critic_forward.1} parent=0 // pred_check_branch
    %19 = sbr.rel (0) target = $region13
  $region12: #{actor_critic_forward.1} parent=0 // pred_region
    _
  $region13: #{actor_critic_forward.1} parent=0 // pred_fallthru
    _
  // Predicated region
  $region14: #{actor_critic_forward.1} parent=0 // pred_check
    _
  $region15: #{actor_critic_forward.1} parent=0 // pred_check_branch
    %21 = sbr.rel (0) target = $region17
  $region16: #{actor_critic_forward.1} parent=0 // pred_region
    _
  $region17: #{actor_critic_forward.1} parent=0 // pred_fallthru
    _
  // Predicated region
  $region18: #{actor_critic_forward.1} parent=0 // pred_check
    _
  $region19: #{actor_critic_forward.1} parent=0 // pred_check_branch
    %23 = sbr.rel (0) target = $region21
  $region20: #{actor_critic_forward.1} parent=0 // pred_region
    _
  $region21: #{actor_critic_forward.1} parent=0 // pred_fallthru
    _
  // Predicated region
  $region22: #{actor_critic_forward.1} parent=0 // pred_check
    _
  $region23: #{actor_critic_forward.1} parent=0 // pred_check_branch
    %25 = sbr.rel (0) target = $region25
  $region24: #{actor_critic_forward.1} parent=0 // pred_region
    _
  $region25: #{actor_critic_forward.1} parent=0 // pred_fallthru
    _
  // Predicated region
  $region26: #{actor_critic_forward.1} parent=0 // pred_check
    _
  $region27: #{actor_critic_forward.1} parent=0 // pred_check_branch
    %27 = sbr.rel (0) target = $region29
  $region28: #{actor_critic_forward.1} parent=0 // pred_region
    _
  $region29: #{actor_critic_forward.1} parent=0 // pred_fallthru
    _
  // Predicated region
  $region30: #{actor_critic_forward.1} parent=0 // pred_check
    _
  $region31: #{actor_critic_forward.1} parent=0 // pred_check_branch
    %29 = sbr.rel (0) target = $region33
  $region32: #{actor_critic_forward.1} parent=0 // pred_region
    _
  $region33: #{actor_critic_forward.1} parent=0 // pred_fallthru
    _
  // Predicated region
  $region34: #{actor_critic_forward.1} parent=0 // pred_check
    _
  $region35: #{actor_critic_forward.1} parent=0 // pred_check_branch
    %31 = sbr.rel (0) target = $region37
  $region36: #{actor_critic_forward.1} parent=0 // pred_region
    _
  $region37: #{actor_critic_forward.1} parent=0 // pred_fallthru
    _
  %v33 = vld [vmem:[%s8] sm:$0x3]
  %v34 = vld [vmem:[%s8 + $0x2] sm:$0x3]
  %v35 = vld [vmem:[%s8 + $0x4] sm:$0x1]
  %v36 = vld [vmem:[%s8 + $0x5] sm:$0x1]
  %v37 = vld [vmem:[%s8 + $0x6] sm:$0x1]
  %v38 = vld [vmem:[%s8 + $0x7] sm:$0x3f]
  %v39 = vld [vmem:[%s8 + $0xd] sm:$0x3]
  %v40 = vld [vmem:[%s8 + $0xf] sm:$0x1]
  %v41 = vld [vmem:[%s0] sm:$0xff]
  %v42 = vld [vmem:[%s0 + $0x8] sm:$0xff]
  %v43 = vld [vmem:[%s0 + $0x10] sm:$0xff]
  %v44 = vld [vmem:[%s0 + $0x18] sm:$0xff]
  %v45 = vld [vmem:[%s0 + $0x20] sm:$0xff]
  %v46 = vld [vmem:[%s0 + $0x28] sm:$0xff]
  %v47 = vld [vmem:[%s0 + $0x30] sm:$0xff]
  %v48 = vld [vmem:[%s0 + $0x38] sm:$0xff]
  %v49 = vld [vmem:[%s0 + $0x40] sm:$0xff]
  %v50 = vld [vmem:[%s0 + $0x48] sm:$0xff]
  %v51 = vld [vmem:[%s0 + $0x50] sm:$0xff]
  %v52 = vld [vmem:[%s0 + $0x58] sm:$0xff]
  %v53 = vld [vmem:[%s2] sm:$0xff]
  %v54 = vld [vmem:[%s2 + $0x8] sm:$0xff]
  %v55 = vld [vmem:[%s2 + $0x10] sm:$0xff]
  %v56 = vld [vmem:[%s2 + $0x18] sm:$0xff]
  %v57 = vld [vmem:[%s2 + $0x20] sm:$0xff]
  %v58 = vld [vmem:[%s2 + $0x28] sm:$0xff]
  %v59 = vld [vmem:[%s2 + $0x30] sm:$0xff]
  %v60 = vld [vmem:[%s2 + $0x38] sm:$0xff]
  %v61 = vld [vmem:[%s2 + $0x40] sm:$0xff]
  %v62 = vld [vmem:[%s2 + $0x48] sm:$0xff]
  %v63 = vld [vmem:[%s2 + $0x50] sm:$0xff]
  %v64 = vld [vmem:[%s2 + $0x58] sm:$0xff]
  %v65 = vld [vmem:[%s2 + $0x60] sm:$0xff]
  %v66 = vld [vmem:[%s2 + $0x68] sm:$0xff]
  %v67 = vld [vmem:[%s2 + $0x70] sm:$0xff]
  %v68 = vld [vmem:[%s2 + $0x78] sm:$0xff]
  %v69 = vld [vmem:[%s2 + $0x80] sm:$0xff]
  %v70 = vld [vmem:[%s2 + $0x88] sm:$0xff]
  %v71 = vld [vmem:[%s2 + $0x90] sm:$0xff]
  %v72 = vld [vmem:[%s2 + $0x98] sm:$0xff]
  %v73 = vld [vmem:[%s2 + $0xa0] sm:$0xff]
  %v74 = vld [vmem:[%s2 + $0xa8] sm:$0xff]
  %v75 = vld [vmem:[%s2 + $0xb0] sm:$0xff]
  %v76 = vld [vmem:[%s2 + $0xb8] sm:$0xff]
  %v77 = vld [vmem:[%s2 + $0xc0] sm:$0xff]
  %v78 = vld [vmem:[%s2 + $0xc8] sm:$0xff]
  %v79 = vld [vmem:[%s2 + $0xd0] sm:$0xff]
  %v80 = vld [vmem:[%s2 + $0xd8] sm:$0xff]
  %v81 = vld [vmem:[%s2 + $0xe0] sm:$0xff]
  %v82 = vld [vmem:[%s2 + $0xe8] sm:$0xff]
  %v83 = vld [vmem:[%s2 + $0xf0] sm:$0xff]
  %v84 = vld [vmem:[%s2 + $0xf8] sm:$0xff]
  %v85 = vld [vmem:[%s2 + $0x100] sm:$0xff]
  %v86 = vld [vmem:[%s2 + $0x108] sm:$0xff]
  %v87 = vld [vmem:[%s2 + $0x110] sm:$0xff]
  %v88 = vld [vmem:[%s2 + $0x118] sm:$0xff]
  %v89 = vld [vmem:[%s2 + $0x120] sm:$0xff]
  %v90 = vld [vmem:[%s2 + $0x128] sm:$0xff]
  %v91 = vld [vmem:[%s2 + $0x130] sm:$0xff]
  %v92 = vld [vmem:[%s2 + $0x138] sm:$0xff]
  %v93 = vld [vmem:[%s2 + $0x140] sm:$0xff]
  %v94 = vld [vmem:[%s2 + $0x148] sm:$0xff]
  %v95 = vld [vmem:[%s2 + $0x150] sm:$0xff]
  %v96 = vld [vmem:[%s2 + $0x158] sm:$0xff]
  %v97 = vld [vmem:[%s2 + $0x160] sm:$0xff]
  %v98 = vld [vmem:[%s2 + $0x168] sm:$0xff]
  %v99 = vld [vmem:[%s2 + $0x170] sm:$0xff]
  %v100 = vld [vmem:[%s2 + $0x178] sm:$0xff]
  %v101 = vld [vmem:[%s2 + $0x180] sm:$0xff]
  %v102 = vld [vmem:[%s2 + $0x188] sm:$0xff]
  %v103 = vld [vmem:[%s2 + $0x190] sm:$0xff]
  %v104 = vld [vmem:[%s2 + $0x198] sm:$0xff]
  %v105 = vld [vmem:[%s2 + $0x1a0] sm:$0xff]
  %v106 = vld [vmem:[%s2 + $0x1a8] sm:$0xff]
  %v107 = vld [vmem:[%s2 + $0x1b0] sm:$0xff]
  %v108 = vld [vmem:[%s2 + $0x1b8] sm:$0xff]
  %v109 = vld [vmem:[%s2 + $0x1c0] sm:$0x11]
  %v111 = vperm.slane %v33, 0
  %v112 = vperm.slane %v33, 1
  %v127 = vunpack.c.l.b16 %v41
  %v128 = vunpack.c.h.b16 %v41
  %v129 = vunpack.c.l.b16 %v42
  %v130 = vunpack.c.h.b16 %v42
  %v131 = vunpack.c.l.b16 %v43
  %v132 = vunpack.c.h.b16 %v43
  %v133 = vunpack.c.l.b16 %v44
  %v134 = vunpack.c.h.b16 %v44
  %v135 = vunpack.c.l.b16 %v45
  %v136 = vunpack.c.h.b16 %v45
  %v137 = vunpack.c.l.b16 %v46
  %v138 = vunpack.c.h.b16 %v46
  %v139 = vunpack.c.l.b16 %v47
  %v140 = vunpack.c.h.b16 %v47
  %v141 = vunpack.c.l.b16 %v48
  %v142 = vunpack.c.h.b16 %v48
  %v143 = vunpack.c.l.b16 %v49
  %v144 = vunpack.c.h.b16 %v49
  %v145 = vunpack.c.l.b16 %v50
  %v146 = vunpack.c.h.b16 %v50
  %v147 = vunpack.c.l.b16 %v51
  %v148 = vunpack.c.h.b16 %v51
  %v149 = vunpack.c.l.b16 %v52
  %v150 = vunpack.c.h.b16 %v52
  %v151 = vpack.c.b16 %v131, %v127
  %v152 = vpack.c.b16 %v132, %v128
  %v153 = vpack.c.b16 %v133, %v129
  %v154 = vpack.c.b16 %v134, %v130
  %v155 = vpack.c.b16 %v139, %v135
  %v156 = vpack.c.b16 %v140, %v136
  %v157 = vpack.c.b16 %v141, %v137
  %v158 = vpack.c.b16 %v142, %v138
  %v159 = vpack.c.b16 %v147, %v143
  %v160 = vpack.c.b16 %v148, %v144
  %v161 = vpack.c.b16 %v149, %v145
  %v162 = vpack.c.b16 %v150, %v146
  %v229 = vunpack.c.l.b16 %v53
  %v230 = vunpack.c.h.b16 %v53
  %v231 = vunpack.c.l.b16 %v54
  %v232 = vunpack.c.h.b16 %v54
  %v233 = vunpack.c.l.b16 %v55
  %v234 = vunpack.c.h.b16 %v55
  %v235 = vunpack.c.l.b16 %v56
  %v236 = vunpack.c.h.b16 %v56
  %v237 = vunpack.c.l.b16 %v57
  %v238 = vunpack.c.h.b16 %v57
  %v239 = vunpack.c.l.b16 %v58
  %v240 = vunpack.c.h.b16 %v58
  %v241 = vunpack.c.l.b16 %v59
  %v242 = vunpack.c.h.b16 %v59
  %v243 = vunpack.c.l.b16 %v60
  %v244 = vunpack.c.h.b16 %v60
  %v245 = vunpack.c.l.b16 %v61
  %v246 = vunpack.c.h.b16 %v61
  %v247 = vunpack.c.l.b16 %v62
  %v248 = vunpack.c.h.b16 %v62
  %v249 = vunpack.c.l.b16 %v63
  %v250 = vunpack.c.h.b16 %v63
  %v251 = vunpack.c.l.b16 %v64
  %v252 = vunpack.c.h.b16 %v64
  %v253 = vunpack.c.l.b16 %v65
  %v254 = vunpack.c.h.b16 %v65
  %v255 = vunpack.c.l.b16 %v66
  %v256 = vunpack.c.h.b16 %v66
  %v257 = vunpack.c.l.b16 %v67
  %v258 = vunpack.c.h.b16 %v67
  %v259 = vunpack.c.l.b16 %v68
  %v260 = vunpack.c.h.b16 %v68
  %v261 = vunpack.c.l.b16 %v69
  %v262 = vunpack.c.h.b16 %v69
  %v263 = vunpack.c.l.b16 %v70
  %v264 = vunpack.c.h.b16 %v70
  %v265 = vunpack.c.l.b16 %v71
  %v266 = vunpack.c.h.b16 %v71
  %v267 = vunpack.c.l.b16 %v72
  %v268 = vunpack.c.h.b16 %v72
  %v269 = vunpack.c.l.b16 %v73
  %v270 = vunpack.c.h.b16 %v73
  %v271 = vunpack.c.l.b16 %v74
  %v272 = vunpack.c.h.b16 %v74
  %v273 = vunpack.c.l.b16 %v75
  %v274 = vunpack.c.h.b16 %v75
  %v275 = vunpack.c.l.b16 %v76
  %v276 = vunpack.c.h.b16 %v76
  %v277 = vunpack.c.l.b16 %v77
  %v278 = vunpack.c.h.b16 %v77
  %v279 = vunpack.c.l.b16 %v78
  %v280 = vunpack.c.h.b16 %v78
  %v281 = vunpack.c.l.b16 %v79
  %v282 = vunpack.c.h.b16 %v79
  %v283 = vunpack.c.l.b16 %v80
  %v284 = vunpack.c.h.b16 %v80
  %v285 = vunpack.c.l.b16 %v81
  %v286 = vunpack.c.h.b16 %v81
  %v287 = vunpack.c.l.b16 %v82
  %v288 = vunpack.c.h.b16 %v82
  %v289 = vunpack.c.l.b16 %v83
  %v290 = vunpack.c.h.b16 %v83
  %v291 = vunpack.c.l.b16 %v84
  %v292 = vunpack.c.h.b16 %v84
  %v293 = vunpack.c.l.b16 %v85
  %v294 = vunpack.c.h.b16 %v85
  %v295 = vunpack.c.l.b16 %v86
  %v296 = vunpack.c.h.b16 %v86
  %v297 = vunpack.c.l.b16 %v87
  %v298 = vunpack.c.h.b16 %v87
  %v299 = vunpack.c.l.b16 %v88
  %v300 = vunpack.c.h.b16 %v88
  %v301 = vunpack.c.l.b16 %v89
  %v302 = vunpack.c.h.b16 %v89
  %v303 = vunpack.c.l.b16 %v90
  %v304 = vunpack.c.h.b16 %v90
  %v305 = vunpack.c.l.b16 %v91
  %v306 = vunpack.c.h.b16 %v91
  %v307 = vunpack.c.l.b16 %v92
  %v308 = vunpack.c.h.b16 %v92
  %v309 = vunpack.c.l.b16 %v93
  %v310 = vunpack.c.h.b16 %v93
  %v311 = vunpack.c.l.b16 %v94
  %v312 = vunpack.c.h.b16 %v94
  %v313 = vunpack.c.l.b16 %v95
  %v314 = vunpack.c.h.b16 %v95
  %v315 = vunpack.c.l.b16 %v96
  %v316 = vunpack.c.h.b16 %v96
  %v317 = vunpack.c.l.b16 %v97
  %v318 = vunpack.c.h.b16 %v97
  %v319 = vunpack.c.l.b16 %v98
  %v320 = vunpack.c.h.b16 %v98
  %v321 = vunpack.c.l.b16 %v99
  %v322 = vunpack.c.h.b16 %v99
  %v323 = vunpack.c.l.b16 %v100
  %v324 = vunpack.c.h.b16 %v100
  %v325 = vunpack.c.l.b16 %v101
  %v326 = vunpack.c.h.b16 %v101
  %v327 = vunpack.c.l.b16 %v102
  %v328 = vunpack.c.h.b16 %v102
  %v329 = vunpack.c.l.b16 %v103
  %v330 = vunpack.c.h.b16 %v103
  %v331 = vunpack.c.l.b16 %v104
  %v332 = vunpack.c.h.b16 %v104
  %v333 = vunpack.c.l.b16 %v105
  %v334 = vunpack.c.h.b16 %v105
  %v335 = vunpack.c.l.b16 %v106
  %v336 = vunpack.c.h.b16 %v106
  %v337 = vunpack.c.l.b16 %v107
  %v338 = vunpack.c.h.b16 %v107
  %v339 = vunpack.c.l.b16 %v108
  %v340 = vunpack.c.h.b16 %v108
  %v341 = vunpack.c.l.b16 %v109
  %v342 = vunpack.c.h.b16 %v109
  %v343 = vpack.c.b16 %v231, %v229
  %v344 = vpack.c.b16 %v232, %v230
  %v345 = vpack.c.b16 %v235, %v233
  %v346 = vpack.c.b16 %v236, %v234
  %v347 = vpack.c.b16 %v239, %v237
  %v348 = vpack.c.b16 %v240, %v238
  %v349 = vpack.c.b16 %v243, %v241
  %v350 = vpack.c.b16 %v244, %v242
  %v351 = vpack.c.b16 %v247, %v245
  %v352 = vpack.c.b16 %v248, %v246
  %v353 = vpack.c.b16 %v251, %v249
  %v354 = vpack.c.b16 %v252, %v250
  %v355 = vpack.c.b16 %v255, %v253
  %v356 = vpack.c.b16 %v256, %v254
  %v357 = vpack.c.b16 %v259, %v257
  %v358 = vpack.c.b16 %v260, %v258
  %v359 = vpack.c.b16 %v263, %v261
  %v360 = vpack.c.b16 %v264, %v262
  %v361 = vpack.c.b16 %v267, %v265
  %v362 = vpack.c.b16 %v268, %v266
  %v363 = vpack.c.b16 %v271, %v269
  %v364 = vpack.c.b16 %v272, %v270
  %v365 = vpack.c.b16 %v275, %v273
  %v366 = vpack.c.b16 %v276, %v274
  %v367 = vpack.c.b16 %v279, %v277
  %v368 = vpack.c.b16 %v280, %v278
  %v369 = vpack.c.b16 %v283, %v281
  %v370 = vpack.c.b16 %v284, %v282
  %v371 = vpack.c.b16 %v287, %v285
  %v372 = vpack.c.b16 %v288, %v286
  %v373 = vpack.c.b16 %v291, %v289
  %v374 = vpack.c.b16 %v292, %v290
  %v375 = vpack.c.b16 %v295, %v293
  %v376 = vpack.c.b16 %v296, %v294
  %v377 = vpack.c.b16 %v299, %v297
  %v378 = vpack.c.b16 %v300, %v298
  %v379 = vpack.c.b16 %v303, %v301
  %v380 = vpack.c.b16 %v304, %v302
  %v381 = vpack.c.b16 %v307, %v305
  %v382 = vpack.c.b16 %v308, %v306
  %v383 = vpack.c.b16 %v311, %v309
  %v384 = vpack.c.b16 %v312, %v310
  %v385 = vpack.c.b16 %v315, %v313
  %v386 = vpack.c.b16 %v316, %v314
  %v387 = vpack.c.b16 %v319, %v317
  %v388 = vpack.c.b16 %v320, %v318
  %v389 = vpack.c.b16 %v323, %v321
  %v390 = vpack.c.b16 %v324, %v322
  %v391 = vpack.c.b16 %v327, %v325
  %v392 = vpack.c.b16 %v328, %v326
  %v393 = vpack.c.b16 %v331, %v329
  %v394 = vpack.c.b16 %v332, %v330
  %v395 = vpack.c.b16 %v335, %v333
  %v396 = vpack.c.b16 %v336, %v334
  %v397 = vpack.c.b16 %v339, %v337
  %v398 = vpack.c.b16 %v340, %v338
  %v399 = vpack.c.b16 %v341, %v341
  %v400 = vpack.c.b16 %v342, %v342
  %vm457 = vcmask 539648
  %v459 = vsel %vm457, %v154, 0
  %v462 = vsel %vm457, %v158, 0
  %v465 = vsel %vm457, %v162, 0
  %vm467 = vcmask 1040384
  %v469 = vsel %vm467, %v399, 0
  %v472 = vsel %vm467, %v400, 0
  %474 = vmatpush.bf16.msra.mxu0 %v357
  %475 = vmatpush.bf16.msra.mxu0 %v355
  %476 = vmatpush.bf16.msra.mxu0 %v353
  %477 = vmatpush.bf16.msra.mxu0 %v351
  %478 = vmatpush.bf16.msra.mxu0 %v349
  %479 = vmatpush.bf16.msra.mxu0 %v347
  %480 = vmatpush.bf16.msra.mxu0 %v345
  %481 = vmatpush.bf16.msra.mxu0 %v343
  %482 = vmatmul.bf16.gmra.mxu0 %v151
  %v483 = vpop.f32.mrf.mxu0
  %v484 = vadd.f32 %v111, %v483
  %v485 = vpop.f32.mrf.mxu0
  %v486 = vadd.f32 %v111, %v485
  %487 = vmatmul.bf16.gmra.mxu0 %v155
  %v488 = vpop.f32.mrf.mxu0
  %v489 = vadd.f32 %v111, %v488
  %v490 = vpop.f32.mrf.mxu0
  %v491 = vadd.f32 %v111, %v490
  %492 = vmatmul.bf16.gmra.mxu0 %v159
  %v493 = vpop.f32.mrf.mxu0
  %v494 = vadd.f32 %v111, %v493
  %v495 = vpop.f32.mrf.mxu0
  %v496 = vadd.f32 %v111, %v495
  %497 = vdwg.mxu0
  %498 = vmatpush.bf16.msra.mxu0 %v373
  %499 = vmatpush.bf16.msra.mxu0 %v371
  %500 = vmatpush.bf16.msra.mxu0 %v369
  %501 = vmatpush.bf16.msra.mxu0 %v367
  %502 = vmatpush.bf16.msra.mxu0 %v365
  %503 = vmatpush.bf16.msra.mxu0 %v363
  %504 = vmatpush.bf16.msra.mxu0 %v361
  %505 = vmatpush.bf16.msra.mxu0 %v359
  %506 = vmatmul.bf16.gmra.mxu0 %v152
  %v507 = vpop.f32.mrf.mxu0
  %v508 = vadd.f32 %v484, %v507
  %v509 = vpop.f32.mrf.mxu0
  %v510 = vadd.f32 %v486, %v509
  %511 = vmatmul.bf16.gmra.mxu0 %v156
  %v512 = vpop.f32.mrf.mxu0
  %v513 = vadd.f32 %v489, %v512
  %v514 = vpop.f32.mrf.mxu0
  %v515 = vadd.f32 %v491, %v514
  %516 = vmatmul.bf16.gmra.mxu0 %v160
  %v517 = vpop.f32.mrf.mxu0
  %v518 = vadd.f32 %v494, %v517
  %v519 = vpop.f32.mrf.mxu0
  %v520 = vadd.f32 %v496, %v519
  %521 = vdwg.mxu0
  %522 = vmatpush.bf16.msra.mxu0 %v389
  %523 = vmatpush.bf16.msra.mxu0 %v387
  %524 = vmatpush.bf16.msra.mxu0 %v385
  %525 = vmatpush.bf16.msra.mxu0 %v383
  %526 = vmatpush.bf16.msra.mxu0 %v381
  %527 = vmatpush.bf16.msra.mxu0 %v379
  %528 = vmatpush.bf16.msra.mxu0 %v377
  %529 = vmatpush.bf16.msra.mxu0 %v375
  %530 = vmatmul.bf16.gmra.mxu0 %v153
  %v531 = vpop.f32.mrf.mxu0
  %v532 = vadd.f32 %v508, %v531
  %v533 = vpop.f32.mrf.mxu0
  %v534 = vadd.f32 %v510, %v533
  %535 = vmatmul.bf16.gmra.mxu0 %v157
  %v536 = vpop.f32.mrf.mxu0
  %v537 = vadd.f32 %v513, %v536
  %v538 = vpop.f32.mrf.mxu0
  %v539 = vadd.f32 %v515, %v538
  %540 = vmatmul.bf16.gmra.mxu0 %v161
  %v541 = vpop.f32.mrf.mxu0
  %v542 = vadd.f32 %v518, %v541
  %v543 = vpop.f32.mrf.mxu0
  %v544 = vadd.f32 %v520, %v543
  %545 = vdwg.mxu0
  %546 = vmatpush.bf16.msra.mxu0 0
  %547 = vmatpush.bf16.msra.mxu0 0
  %548 = vmatpush.bf16.msra.mxu0 0
  %549 = vmatpush.bf16.msra.mxu0 %v469
  %550 = vmatpush.bf16.msra.mxu0 %v397
  %551 = vmatpush.bf16.msra.mxu0 %v395
  %552 = vmatpush.bf16.msra.mxu0 %v393
  %553 = vmatpush.bf16.msra.mxu0 %v391
  %554 = vmatmul.bf16.gmra.mxu0 %v459
  %v555 = vpop.f32.mrf.mxu0
  %v556 = vadd.f32 %v532, %v555
  %v557 = vpop.f32.mrf.mxu0
  %v558 = vadd.f32 %v534, %v557
  %559 = vmatmul.bf16.gmra.mxu0 %v462
  %v560 = vpop.f32.mrf.mxu0
  %v561 = vadd.f32 %v537, %v560
  %v562 = vpop.f32.mrf.mxu0
  %v563 = vadd.f32 %v539, %v562
  %564 = vmatmul.bf16.gmra.mxu0 %v465
  %v565 = vpop.f32.mrf.mxu0
  %v566 = vadd.f32 %v542, %v565
  %v567 = vpop.f32.mrf.mxu0
  %v568 = vadd.f32 %v544, %v567
  %569 = vdwg.mxu0
  %570 = vmatpush.bf16.msra.mxu0 %v358
  %571 = vmatpush.bf16.msra.mxu0 %v356
  %572 = vmatpush.bf16.msra.mxu0 %v354
  %573 = vmatpush.bf16.msra.mxu0 %v352
  %574 = vmatpush.bf16.msra.mxu0 %v350
  %575 = vmatpush.bf16.msra.mxu0 %v348
  %576 = vmatpush.bf16.msra.mxu0 %v346
  %577 = vmatpush.bf16.msra.mxu0 %v344
  %578 = vmatmul.bf16.gmra.mxu0 %v151
  %v579 = vpop.f32.mrf.mxu0
  %v580 = vadd.f32 %v112, %v579
  %v581 = vpop.f32.mrf.mxu0
  %v582 = vadd.f32 %v112, %v581
  %583 = vmatmul.bf16.gmra.mxu0 %v155
  %v584 = vpop.f32.mrf.mxu0
  %v585 = vadd.f32 %v112, %v584
  %v586 = vpop.f32.mrf.mxu0
  %v587 = vadd.f32 %v112, %v586
  %588 = vmatmul.bf16.gmra.mxu0 %v159
  %v589 = vpop.f32.mrf.mxu0
  %v590 = vadd.f32 %v112, %v589
  %v591 = vpop.f32.mrf.mxu0
  %v592 = vadd.f32 %v112, %v591
  %593 = vdwg.mxu0
  %594 = vmatpush.bf16.msra.mxu0 %v374
  %595 = vmatpush.bf16.msra.mxu0 %v372
  %596 = vmatpush.bf16.msra.mxu0 %v370
  %597 = vmatpush.bf16.msra.mxu0 %v368
  %598 = vmatpush.bf16.msra.mxu0 %v366
  %599 = vmatpush.bf16.msra.mxu0 %v364
  %600 = vmatpush.bf16.msra.mxu0 %v362
  %601 = vmatpush.bf16.msra.mxu0 %v360
  %602 = vmatmul.bf16.gmra.mxu0 %v152
  %v603 = vpop.f32.mrf.mxu0
  %v604 = vadd.f32 %v580, %v603
  %v605 = vpop.f32.mrf.mxu0
  %v606 = vadd.f32 %v582, %v605
  %607 = vmatmul.bf16.gmra.mxu0 %v156
  %v608 = vpop.f32.mrf.mxu0
  %v609 = vadd.f32 %v585, %v608
  %v610 = vpop.f32.mrf.mxu0
  %v611 = vadd.f32 %v587, %v610
  %612 = vmatmul.bf16.gmra.mxu0 %v160
  %v613 = vpop.f32.mrf.mxu0
  %v614 = vadd.f32 %v590, %v613
  %v615 = vpop.f32.mrf.mxu0
  %v616 = vadd.f32 %v592, %v615
  %617 = vdwg.mxu0
  %618 = vmatpush.bf16.msra.mxu0 %v390
  %619 = vmatpush.bf16.msra.mxu0 %v388
  %620 = vmatpush.bf16.msra.mxu0 %v386
  %621 = vmatpush.bf16.msra.mxu0 %v384
  %622 = vmatpush.bf16.msra.mxu0 %v382
  %623 = vmatpush.bf16.msra.mxu0 %v380
  %624 = vmatpush.bf16.msra.mxu0 %v378
  %625 = vmatpush.bf16.msra.mxu0 %v376
  %626 = vmatmul.bf16.gmra.mxu0 %v153
  %v627 = vpop.f32.mrf.mxu0
  %v628 = vadd.f32 %v604, %v627
  %v629 = vpop.f32.mrf.mxu0
  %v630 = vadd.f32 %v606, %v629
  %631 = vmatmul.bf16.gmra.mxu0 %v157
  %v632 = vpop.f32.mrf.mxu0
  %v633 = vadd.f32 %v609, %v632
  %v634 = vpop.f32.mrf.mxu0
  %v635 = vadd.f32 %v611, %v634
  %636 = vmatmul.bf16.gmra.mxu0 %v161
  %v637 = vpop.f32.mrf.mxu0
  %v638 = vadd.f32 %v614, %v637
  %v639 = vpop.f32.mrf.mxu0
  %v640 = vadd.f32 %v616, %v639
  %641 = vdwg.mxu0
  %642 = vmatpush.bf16.msra.mxu0 0
  %643 = vmatpush.bf16.msra.mxu0 0
  %644 = vmatpush.bf16.msra.mxu0 0
  %645 = vmatpush.bf16.msra.mxu0 %v472
  %646 = vmatpush.bf16.msra.mxu0 %v398
  %647 = vmatpush.bf16.msra.mxu0 %v396
  %648 = vmatpush.bf16.msra.mxu0 %v394
  %649 = vmatpush.bf16.msra.mxu0 %v392
  %650 = vmatmul.bf16.gmra.mxu0 %v459
  %v651 = vpop.f32.mrf.mxu0
  %v652 = vadd.f32 %v628, %v651
  %v653 = vpop.f32.mrf.mxu0
  %v654 = vadd.f32 %v630, %v653
  %655 = vmatmul.bf16.gmra.mxu0 %v462
  %v656 = vpop.f32.mrf.mxu0
  %v657 = vadd.f32 %v633, %v656
  %v658 = vpop.f32.mrf.mxu0
  %v659 = vadd.f32 %v635, %v658
  %660 = vmatmul.bf16.gmra.mxu0 %v465
  %v661 = vpop.f32.mrf.mxu0
  %v662 = vadd.f32 %v638, %v661
  %v663 = vpop.f32.mrf.mxu0
  %v664 = vadd.f32 %v640, %v663
  %665 = vdwg.mxu0
  %v666 = vmax.f32 %v556, 0.0
  %v667 = vmax.f32 %v652, 0.0
  %v668 = vmax.f32 %v558, 0.0
  %v669 = vmax.f32 %v654, 0.0
  %v670 = vmax.f32 %v561, 0.0
  %v671 = vmax.f32 %v657, 0.0
  %v672 = vmax.f32 %v563, 0.0
  %v673 = vmax.f32 %v659, 0.0
  %v674 = vmax.f32 %v566, 0.0
  %v675 = vmax.f32 %v662, 0.0
  %v676 = vmax.f32 %v568, 0.0
  %v677 = vmax.f32 %v664, 0.0
  %v678 = vpack.c.bf16 %v668, %v666
  %v679 = vpack.c.bf16 %v669, %v667
  %v680 = vpack.c.bf16 %v672, %v670
  %v681 = vpack.c.bf16 %v673, %v671
  %v682 = vld [vmem:[%s3] sm:$0xff]
  %v683 = vld [vmem:[%s3 + $0x8] sm:$0xff]
  %v684 = vld [vmem:[%s3 + $0x10] sm:$0xff]
  %v685 = vld [vmem:[%s3 + $0x18] sm:$0xff]
  %v686 = vld [vmem:[%s3 + $0x20] sm:$0xff]
  %v687 = vld [vmem:[%s3 + $0x28] sm:$0xff]
  %v688 = vld [vmem:[%s3 + $0x30] sm:$0xff]
  %v689 = vld [vmem:[%s3 + $0x38] sm:$0xff]
  %v690 = vld [vmem:[%s3 + $0x40] sm:$0xff]
  %v691 = vld [vmem:[%s3 + $0x48] sm:$0xff]
  %v692 = vld [vmem:[%s3 + $0x50] sm:$0xff]
  %v693 = vld [vmem:[%s3 + $0x58] sm:$0xff]
  %v694 = vld [vmem:[%s3 + $0x60] sm:$0xff]
  %v695 = vld [vmem:[%s3 + $0x68] sm:$0xff]
  %v696 = vld [vmem:[%s3 + $0x70] sm:$0xff]
  %v697 = vld [vmem:[%s3 + $0x78] sm:$0xff]
  %v698 = vld [vmem:[%s3 + $0x80] sm:$0xff]
  %v699 = vld [vmem:[%s3 + $0x88] sm:$0xff]
  %v700 = vld [vmem:[%s3 + $0x90] sm:$0xff]
  %v701 = vld [vmem:[%s3 + $0x98] sm:$0xff]
  %v702 = vld [vmem:[%s3 + $0xa0] sm:$0xff]
  %v703 = vld [vmem:[%s3 + $0xa8] sm:$0xff]
  %v704 = vld [vmem:[%s3 + $0xb0] sm:$0xff]
  %v705 = vld [vmem:[%s3 + $0xb8] sm:$0xff]
  %v706 = vpack.c.bf16 %v670, %v668
  %v707 = vpack.c.bf16 %v671, %v669
  %v708 = vpack.c.bf16 %v674, %v672
  %v709 = vpack.c.bf16 %v675, %v673
  %v710 = vld [vmem:[%s3 + $0xc0] sm:$0xff]
  %v711 = vld [vmem:[%s3 + $0xc8] sm:$0xff]
  %v712 = vld [vmem:[%s3 + $0xd0] sm:$0xff]
  %v713 = vld [vmem:[%s3 + $0xd8] sm:$0xff]
  %v714 = vld [vmem:[%s3 + $0xe0] sm:$0xff]
  %v715 = vld [vmem:[%s3 + $0xe8] sm:$0xff]
  %v716 = vld [vmem:[%s3 + $0xf0] sm:$0xff]
  %v717 = vld [vmem:[%s3 + $0xf8] sm:$0xff]
  %v718 = vld [vmem:[%s3 + $0x100] sm:$0xff]
  %v719 = vld [vmem:[%s3 + $0x108] sm:$0xff]
  %v720 = vld [vmem:[%s3 + $0x110] sm:$0xff]
  %v721 = vld [vmem:[%s3 + $0x118] sm:$0xff]
  %v722 = vld [vmem:[%s3 + $0x120] sm:$0xff]
  %v723 = vld [vmem:[%s3 + $0x128] sm:$0xff]
  %v724 = vld [vmem:[%s3 + $0x130] sm:$0xff]
  %v725 = vld [vmem:[%s3 + $0x138] sm:$0xff]
  %v726 = vld [vmem:[%s3 + $0x140] sm:$0xff]
  %v727 = vld [vmem:[%s3 + $0x148] sm:$0xff]
  %v728 = vld [vmem:[%s3 + $0x150] sm:$0xff]
  %v729 = vld [vmem:[%s3 + $0x158] sm:$0xff]
  %v730 = vld [vmem:[%s3 + $0x160] sm:$0xff]
  %v731 = vld [vmem:[%s3 + $0x168] sm:$0xff]
  %v732 = vld [vmem:[%s3 + $0x170] sm:$0xff]
  %v733 = vld [vmem:[%s3 + $0x178] sm:$0xff]
  %v758 = vunpack.c.l.b16 %v710
  %v759 = vunpack.c.h.b16 %v710
  %v760 = vunpack.c.l.b16 %v711
  %v761 = vunpack.c.h.b16 %v711
  %v762 = vunpack.c.l.b16 %v712
  %v763 = vunpack.c.h.b16 %v712
  %v764 = vunpack.c.l.b16 %v713
  %v765 = vunpack.c.h.b16 %v713
  %v766 = vunpack.c.l.b16 %v714
  %v767 = vunpack.c.h.b16 %v714
  %v768 = vunpack.c.l.b16 %v715
  %v769 = vunpack.c.h.b16 %v715
  %v770 = vunpack.c.l.b16 %v716
  %v771 = vunpack.c.h.b16 %v716
  %v772 = vunpack.c.l.b16 %v717
  %v773 = vunpack.c.h.b16 %v717
  %v774 = vunpack.c.l.b16 %v718
  %v775 = vunpack.c.h.b16 %v718
  %v776 = vunpack.c.l.b16 %v719
  %v777 = vunpack.c.h.b16 %v719
  %v778 = vunpack.c.l.b16 %v720
  %v779 = vunpack.c.h.b16 %v720
  %v780 = vunpack.c.l.b16 %v721
  %v781 = vunpack.c.h.b16 %v721
  %v782 = vunpack.c.l.b16 %v722
  %v783 = vunpack.c.h.b16 %v722
  %v784 = vunpack.c.l.b16 %v723
  %v785 = vunpack.c.h.b16 %v723
  %v786 = vunpack.c.l.b16 %v724
  %v787 = vunpack.c.h.b16 %v724
  %v788 = vunpack.c.l.b16 %v725
  %v789 = vunpack.c.h.b16 %v725
  %v790 = vunpack.c.l.b16 %v726
  %v791 = vunpack.c.h.b16 %v726
  %v792 = vunpack.c.l.b16 %v727
  %v793 = vunpack.c.h.b16 %v727
  %v794 = vunpack.c.l.b16 %v728
  %v795 = vunpack.c.h.b16 %v728
  %v796 = vunpack.c.l.b16 %v729
  %v797 = vunpack.c.h.b16 %v729
  %v798 = vunpack.c.l.b16 %v730
  %v799 = vunpack.c.h.b16 %v730
  %v800 = vunpack.c.l.b16 %v731
  %v801 = vunpack.c.h.b16 %v731
  %v802 = vunpack.c.l.b16 %v732
  %v803 = vunpack.c.h.b16 %v732
  %v804 = vunpack.c.l.b16 %v733
  %v805 = vunpack.c.h.b16 %v733
  %v806 = vpack.c.b16 %v760, %v758
  %v807 = vpack.c.b16 %v761, %v759
  %v808 = vpack.c.b16 %v764, %v762
  %v809 = vpack.c.b16 %v765, %v763
  %v810 = vpack.c.b16 %v768, %v766
  %v811 = vpack.c.b16 %v769, %v767
  %v812 = vpack.c.b16 %v772, %v770
  %v813 = vpack.c.b16 %v773, %v771
  %v814 = vpack.c.b16 %v776, %v774
  %v815 = vpack.c.b16 %v777, %v775
  %v816 = vpack.c.b16 %v780, %v778
  %v817 = vpack.c.b16 %v781, %v779
  %v818 = vpack.c.b16 %v784, %v782
  %v819 = vpack.c.b16 %v785, %v783
  %v820 = vpack.c.b16 %v788, %v786
  %v821 = vpack.c.b16 %v789, %v787
  %v822 = vpack.c.b16 %v792, %v790
  %v823 = vpack.c.b16 %v793, %v791
  %v824 = vpack.c.b16 %v796, %v794
  %v825 = vpack.c.b16 %v797, %v795
  %v826 = vpack.c.b16 %v800, %v798
  %v827 = vpack.c.b16 %v801, %v799
  %v828 = vpack.c.b16 %v804, %v802
  %v829 = vpack.c.b16 %v805, %v803
  %vm854 = vcmask 523264
  %v856 = vsel %vm854, %v707, 0
  %v859 = vsel %vm854, %v709, 0
  %861 = vmatpush.bf16.msra.mxu0 %v820
  %862 = vmatpush.bf16.msra.mxu0 %v818
  %863 = vmatpush.bf16.msra.mxu0 %v816
  %864 = vmatpush.bf16.msra.mxu0 %v814
  %865 = vmatpush.bf16.msra.mxu0 %v812
  %866 = vmatpush.bf16.msra.mxu0 %v810
  %867 = vmatpush.bf16.msra.mxu0 %v808
  %868 = vmatpush.bf16.msra.mxu0 %v806
  %869 = vmatmul.bf16.gmra.mxu0 %v706
  %v870 = vpop.f32.mrf.mxu0
  %v871 = vadd.f32 0.0, %v870
  %v872 = vpop.f32.mrf.mxu0
  %v873 = vadd.f32 0.0, %v872
  %874 = vmatmul.bf16.gmra.mxu0 %v708
  %v875 = vpop.f32.mrf.mxu0
  %v876 = vadd.f32 0.0, %v875
  %v877 = vpop.f32.mrf.mxu0
  %v878 = vadd.f32 0.0, %v877
  %879 = vdwg.mxu0
  %880 = vmatpush.bf16.msra.mxu0 0
  %881 = vmatpush.bf16.msra.mxu0 0
  %882 = vmatpush.bf16.msra.mxu0 0
  %883 = vmatpush.bf16.msra.mxu0 0
  %884 = vmatpush.bf16.msra.mxu0 %v828
  %885 = vmatpush.bf16.msra.mxu0 %v826
  %886 = vmatpush.bf16.msra.mxu0 %v824
  %887 = vmatpush.bf16.msra.mxu0 %v822
  %888 = vmatmul.bf16.gmra.mxu0 %v856
  %v889 = vpop.f32.mrf.mxu0
  %v890 = vadd.f32 %v871, %v889
  %v891 = vpop.f32.mrf.mxu0
  %v892 = vadd.f32 %v873, %v891
  %893 = vmatmul.bf16.gmra.mxu0 %v859
  %v894 = vpop.f32.mrf.mxu0
  %v895 = vadd.f32 %v876, %v894
  %v896 = vpop.f32.mrf.mxu0
  %v897 = vadd.f32 %v878, %v896
  %898 = vdwg.mxu0
  %899 = vmatpush.bf16.msra.mxu0 %v821
  %900 = vmatpush.bf16.msra.mxu0 %v819
  %901 = vmatpush.bf16.msra.mxu0 %v817
  %902 = vmatpush.bf16.msra.mxu0 %v815
  %903 = vmatpush.bf16.msra.mxu0 %v813
  %904 = vmatpush.bf16.msra.mxu0 %v811
  %905 = vmatpush.bf16.msra.mxu0 %v809
  %906 = vmatpush.bf16.msra.mxu0 %v807
  %907 = vmatmul.bf16.gmra.mxu0 %v706
  %v908 = vpop.f32.mrf.mxu0
  %v909 = vadd.f32 0.0, %v908
  %v910 = vpop.f32.mrf.mxu0
  %v911 = vadd.f32 0.0, %v910
  %912 = vmatmul.bf16.gmra.mxu0 %v708
  %v913 = vpop.f32.mrf.mxu0
  %v914 = vadd.f32 0.0, %v913
  %v915 = vpop.f32.mrf.mxu0
  %v916 = vadd.f32 0.0, %v915
  %917 = vdwg.mxu0
  %918 = vmatpush.bf16.msra.mxu0 0
  %919 = vmatpush.bf16.msra.mxu0 0
  %920 = vmatpush.bf16.msra.mxu0 0
  %921 = vmatpush.bf16.msra.mxu0 0
  %922 = vmatpush.bf16.msra.mxu0 %v829
  %923 = vmatpush.bf16.msra.mxu0 %v827
  %924 = vmatpush.bf16.msra.mxu0 %v825
  %925 = vmatpush.bf16.msra.mxu0 %v823
  %926 = vmatmul.bf16.gmra.mxu0 %v856
  %v927 = vpop.f32.mrf.mxu0
  %v928 = vadd.f32 %v909, %v927
  %v929 = vpop.f32.mrf.mxu0
  %v930 = vadd.f32 %v911, %v929
  %931 = vmatmul.bf16.gmra.mxu0 %v859
  %v932 = vpop.f32.mrf.mxu0
  %v933 = vadd.f32 %v914, %v932
  %v934 = vpop.f32.mrf.mxu0
  %v935 = vadd.f32 %v916, %v934
  %936 = vdwg.mxu0
  %v961 = vunpack.c.l.b16 %v682
  %v962 = vunpack.c.h.b16 %v682
  %v963 = vunpack.c.l.b16 %v683
  %v964 = vunpack.c.h.b16 %v683
  %v965 = vunpack.c.l.b16 %v684
  %v966 = vunpack.c.h.b16 %v684
  %v967 = vunpack.c.l.b16 %v685
  %v968 = vunpack.c.h.b16 %v685
  %v969 = vunpack.c.l.b16 %v686
  %v970 = vunpack.c.h.b16 %v686
  %v971 = vunpack.c.l.b16 %v687
  %v972 = vunpack.c.h.b16 %v687
  %v973 = vunpack.c.l.b16 %v688
  %v974 = vunpack.c.h.b16 %v688
  %v975 = vunpack.c.l.b16 %v689
  %v976 = vunpack.c.h.b16 %v689
  %v977 = vunpack.c.l.b16 %v690
  %v978 = vunpack.c.h.b16 %v690
  %v979 = vunpack.c.l.b16 %v691
  %v980 = vunpack.c.h.b16 %v691
  %v981 = vunpack.c.l.b16 %v692
  %v982 = vunpack.c.h.b16 %v692
  %v983 = vunpack.c.l.b16 %v693
  %v984 = vunpack.c.h.b16 %v693
  %v985 = vunpack.c.l.b16 %v694
  %v986 = vunpack.c.h.b16 %v694
  %v987 = vunpack.c.l.b16 %v695
  %v988 = vunpack.c.h.b16 %v695
  %v989 = vunpack.c.l.b16 %v696
  %v990 = vunpack.c.h.b16 %v696
  %v991 = vunpack.c.l.b16 %v697
  %v992 = vunpack.c.h.b16 %v697
  %v993 = vunpack.c.l.b16 %v698
  %v994 = vunpack.c.h.b16 %v698
  %v995 = vunpack.c.l.b16 %v699
  %v996 = vunpack.c.h.b16 %v699
  %v997 = vunpack.c.l.b16 %v700
  %v998 = vunpack.c.h.b16 %v700
  %v999 = vunpack.c.l.b16 %v701
  %v1000 = vunpack.c.h.b16 %v701
  %v1001 = vunpack.c.l.b16 %v702
  %v1002 = vunpack.c.h.b16 %v702
  %v1003 = vunpack.c.l.b16 %v703
  %v1004 = vunpack.c.h.b16 %v703
  %v1005 = vunpack.c.l.b16 %v704
  %v1006 = vunpack.c.h.b16 %v704
  %v1007 = vunpack.c.l.b16 %v705
  %v1008 = vunpack.c.h.b16 %v705
  %v1009 = vpack.c.b16 %v963, %v961
  %v1010 = vpack.c.b16 %v964, %v962
  %v1011 = vpack.c.b16 %v967, %v965
  %v1012 = vpack.c.b16 %v968, %v966
  %v1013 = vpack.c.b16 %v971, %v969
  %v1014 = vpack.c.b16 %v972, %v970
  %v1015 = vpack.c.b16 %v975, %v973
  %v1016 = vpack.c.b16 %v976, %v974
  %v1017 = vpack.c.b16 %v979, %v977
  %v1018 = vpack.c.b16 %v980, %v978
  %v1019 = vpack.c.b16 %v983, %v981
  %v1020 = vpack.c.b16 %v984, %v982
  %v1021 = vpack.c.b16 %v987, %v985
  %v1022 = vpack.c.b16 %v988, %v986
  %v1023 = vpack.c.b16 %v991, %v989
  %v1024 = vpack.c.b16 %v992, %v990
  %v1025 = vpack.c.b16 %v995, %v993
  %v1026 = vpack.c.b16 %v996, %v994
  %v1027 = vpack.c.b16 %v999, %v997
  %v1028 = vpack.c.b16 %v1000, %v998
  %v1029 = vpack.c.b16 %v1003, %v1001
  %v1030 = vpack.c.b16 %v1004, %v1002
  %v1031 = vpack.c.b16 %v1007, %v1005
  %v1032 = vpack.c.b16 %v1008, %v1006
  %v1058 = vsel %vm854, %v679, 0
  %v1061 = vsel %vm854, %v681, 0
  %1063 = vmatpush.bf16.msra.mxu0 %v1023
  %1064 = vmatpush.bf16.msra.mxu0 %v1021
  %1065 = vmatpush.bf16.msra.mxu0 %v1019
  %1066 = vmatpush.bf16.msra.mxu0 %v1017
  %1067 = vmatpush.bf16.msra.mxu0 %v1015
  %1068 = vmatpush.bf16.msra.mxu0 %v1013
  %1069 = vmatpush.bf16.msra.mxu0 %v1011
  %1070 = vmatpush.bf16.msra.mxu0 %v1009
  %1071 = vmatmul.bf16.gmra.mxu0 %v678
  %v1072 = vpop.f32.mrf.mxu0
  %v1073 = vadd.f32 %v890, %v1072
  %v1074 = vpop.f32.mrf.mxu0
  %v1075 = vadd.f32 %v892, %v1074
  %1076 = vmatmul.bf16.gmra.mxu0 %v680
  %v1077 = vpop.f32.mrf.mxu0
  %v1078 = vadd.f32 %v895, %v1077
  %v1079 = vpop.f32.mrf.mxu0
  %v1080 = vadd.f32 %v897, %v1079
  %1081 = vdwg.mxu0
  %1082 = vmatpush.bf16.msra.mxu0 0
  %1083 = vmatpush.bf16.msra.mxu0 0
  %1084 = vmatpush.bf16.msra.mxu0 0
  %1085 = vmatpush.bf16.msra.mxu0 0
  %1086 = vmatpush.bf16.msra.mxu0 %v1031
  %1087 = vmatpush.bf16.msra.mxu0 %v1029
  %1088 = vmatpush.bf16.msra.mxu0 %v1027
  %1089 = vmatpush.bf16.msra.mxu0 %v1025
  %1090 = vmatmul.bf16.gmra.mxu0 %v1058
  %v1091 = vpop.f32.mrf.mxu0
  %v1092 = vadd.f32 %v1073, %v1091
  %v1093 = vpop.f32.mrf.mxu0
  %v1094 = vadd.f32 %v1075, %v1093
  %1095 = vmatmul.bf16.gmra.mxu0 %v1061
  %v1096 = vpop.f32.mrf.mxu0
  %v1097 = vadd.f32 %v1078, %v1096
  %v1098 = vpop.f32.mrf.mxu0
  %v1099 = vadd.f32 %v1080, %v1098
  %1100 = vdwg.mxu0
  %1101 = vmatpush.bf16.msra.mxu0 %v1024
  %1102 = vmatpush.bf16.msra.mxu0 %v1022
  %1103 = vmatpush.bf16.msra.mxu0 %v1020
  %1104 = vmatpush.bf16.msra.mxu0 %v1018
  %1105 = vmatpush.bf16.msra.mxu0 %v1016
  %1106 = vmatpush.bf16.msra.mxu0 %v1014
  %1107 = vmatpush.bf16.msra.mxu0 %v1012
  %1108 = vmatpush.bf16.msra.mxu0 %v1010
  %1109 = vmatmul.bf16.gmra.mxu0 %v678
  %v1110 = vpop.f32.mrf.mxu0
  %v1111 = vadd.f32 %v928, %v1110
  %v1112 = vpop.f32.mrf.mxu0
  %v1113 = vadd.f32 %v930, %v1112
  %1114 = vmatmul.bf16.gmra.mxu0 %v680
  %v1115 = vpop.f32.mrf.mxu0
  %v1116 = vadd.f32 %v933, %v1115
  %v1117 = vpop.f32.mrf.mxu0
  %v1118 = vadd.f32 %v935, %v1117
  %1119 = vdwg.mxu0
  %1120 = vmatpush.bf16.msra.mxu0 0
  %1121 = vmatpush.bf16.msra.mxu0 0
  %1122 = vmatpush.bf16.msra.mxu0 0
  %1123 = vmatpush.bf16.msra.mxu0 0
  %1124 = vmatpush.bf16.msra.mxu0 %v1032
  %1125 = vmatpush.bf16.msra.mxu0 %v1030
  %1126 = vmatpush.bf16.msra.mxu0 %v1028
  %1127 = vmatpush.bf16.msra.mxu0 %v1026
  %1128 = vmatmul.bf16.gmra.mxu0 %v1058
  %v1129 = vpop.f32.mrf.mxu0
  %v1130 = vadd.f32 %v1111, %v1129
  %v1131 = vpop.f32.mrf.mxu0
  %v1132 = vadd.f32 %v1113, %v1131
  %1133 = vmatmul.bf16.gmra.mxu0 %v1061
  %v1134 = vpop.f32.mrf.mxu0
  %v1135 = vadd.f32 %v1116, %v1134
  %v1136 = vpop.f32.mrf.mxu0
  %v1137 = vadd.f32 %v1118, %v1136
  %1138 = vdwg.mxu0
  %v1139 = vpack.c.bf16 %v676, %v674
  %v1140 = vpack.c.bf16 %v677, %v675
  %v1141 = vld [vmem:[%s3 + $0x180] sm:$0xff]
  %v1142 = vld [vmem:[%s3 + $0x188] sm:$0xff]
  %v1143 = vld [vmem:[%s3 + $0x190] sm:$0xff]
  %v1144 = vld [vmem:[%s3 + $0x198] sm:$0xff]
  %v1145 = vld [vmem:[%s3 + $0x1a0] sm:$0xff]
  %v1146 = vld [vmem:[%s3 + $0x1a8] sm:$0xff]
  %v1147 = vld [vmem:[%s3 + $0x1b0] sm:$0xff]
  %v1148 = vld [vmem:[%s3 + $0x1b8] sm:$0xff]
  %v1149 = vld [vmem:[%s3 + $0x1c0] sm:$0xff]
  %v1150 = vld [vmem:[%s3 + $0x1c8] sm:$0xff]
  %v1151 = vld [vmem:[%s3 + $0x1d0] sm:$0xff]
  %v1152 = vld [vmem:[%s3 + $0x1d8] sm:$0xff]
  %v1153 = vld [vmem:[%s3 + $0x1e0] sm:$0xff]
  %v1154 = vld [vmem:[%s3 + $0x1e8] sm:$0xff]
  %v1155 = vld [vmem:[%s3 + $0x1f0] sm:$0xff]
  %v1156 = vld [vmem:[%s3 + $0x1f8] sm:$0xff]
  %v1157 = vld [vmem:[%s3 + $0x200] sm:$0xff]
  %v1158 = vld [vmem:[%s3 + $0x208] sm:$0xff]
  %v1159 = vld [vmem:[%s3 + $0x210] sm:$0xff]
  %v1160 = vld [vmem:[%s3 + $0x218] sm:$0xff]
  %v1161 = vld [vmem:[%s3 + $0x220] sm:$0xff]
  %v1162 = vld [vmem:[%s3 + $0x228] sm:$0xff]
  %v1163 = vld [vmem:[%s3 + $0x230] sm:$0xff]
  %v1164 = vld [vmem:[%s3 + $0x238] sm:$0xff]
  %v1189 = vunpack.c.l.b16 %v1141
  %v1190 = vunpack.c.h.b16 %v1141
  %v1191 = vunpack.c.l.b16 %v1142
  %v1192 = vunpack.c.h.b16 %v1142
  %v1193 = vunpack.c.l.b16 %v1143
  %v1194 = vunpack.c.h.b16 %v1143
  %v1195 = vunpack.c.l.b16 %v1144
  %v1196 = vunpack.c.h.b16 %v1144
  %v1197 = vunpack.c.l.b16 %v1145
  %v1198 = vunpack.c.h.b16 %v1145
  %v1199 = vunpack.c.l.b16 %v1146
  %v1200 = vunpack.c.h.b16 %v1146
  %v1201 = vunpack.c.l.b16 %v1147
  %v1202 = vunpack.c.h.b16 %v1147
  %v1203 = vunpack.c.l.b16 %v1148
  %v1204 = vunpack.c.h.b16 %v1148
  %v1205 = vunpack.c.l.b16 %v1149
  %v1206 = vunpack.c.h.b16 %v1149
  %v1207 = vunpack.c.l.b16 %v1150
  %v1208 = vunpack.c.h.b16 %v1150
  %v1209 = vunpack.c.l.b16 %v1151
  %v1210 = vunpack.c.h.b16 %v1151
  %v1211 = vunpack.c.l.b16 %v1152
  %v1212 = vunpack.c.h.b16 %v1152
  %v1213 = vunpack.c.l.b16 %v1153
  %v1214 = vunpack.c.h.b16 %v1153
  %v1215 = vunpack.c.l.b16 %v1154
  %v1216 = vunpack.c.h.b16 %v1154
  %v1217 = vunpack.c.l.b16 %v1155
  %v1218 = vunpack.c.h.b16 %v1155
  %v1219 = vunpack.c.l.b16 %v1156
  %v1220 = vunpack.c.h.b16 %v1156
  %v1221 = vunpack.c.l.b16 %v1157
  %v1222 = vunpack.c.h.b16 %v1157
  %v1223 = vunpack.c.l.b16 %v1158
  %v1224 = vunpack.c.h.b16 %v1158
  %v1225 = vunpack.c.l.b16 %v1159
  %v1226 = vunpack.c.h.b16 %v1159
  %v1227 = vunpack.c.l.b16 %v1160
  %v1228 = vunpack.c.h.b16 %v1160
  %v1229 = vunpack.c.l.b16 %v1161
  %v1230 = vunpack.c.h.b16 %v1161
  %v1231 = vunpack.c.l.b16 %v1162
  %v1232 = vunpack.c.h.b16 %v1162
  %v1233 = vunpack.c.l.b16 %v1163
  %v1234 = vunpack.c.h.b16 %v1163
  %v1235 = vunpack.c.l.b16 %v1164
  %v1236 = vunpack.c.h.b16 %v1164
  %v1237 = vpack.c.b16 %v1191, %v1189
  %v1238 = vpack.c.b16 %v1192, %v1190
  %v1239 = vpack.c.b16 %v1195, %v1193
  %v1240 = vpack.c.b16 %v1196, %v1194
  %v1241 = vpack.c.b16 %v1199, %v1197
  %v1242 = vpack.c.b16 %v1200, %v1198
  %v1243 = vpack.c.b16 %v1203, %v1201
  %v1244 = vpack.c.b16 %v1204, %v1202
  %v1245 = vpack.c.b16 %v1207, %v1205
  %v1246 = vpack.c.b16 %v1208, %v1206
  %v1247 = vpack.c.b16 %v1211, %v1209
  %v1248 = vpack.c.b16 %v1212, %v1210
  %v1249 = vpack.c.b16 %v1215, %v1213
  %v1250 = vpack.c.b16 %v1216, %v1214
  %v1251 = vpack.c.b16 %v1219, %v1217
  %v1252 = vpack.c.b16 %v1220, %v1218
  %v1253 = vpack.c.b16 %v1223, %v1221
  %v1254 = vpack.c.b16 %v1224, %v1222
  %v1255 = vpack.c.b16 %v1227, %v1225
  %v1256 = vpack.c.b16 %v1228, %v1226
  %v1257 = vpack.c.b16 %v1231, %v1229
  %v1258 = vpack.c.b16 %v1232, %v1230
  %v1259 = vpack.c.b16 %v1235, %v1233
  %v1260 = vpack.c.b16 %v1236, %v1234
  %v1286 = vsel %vm854, %v1140, 0
  %1288 = vmatpush.bf16.msra.mxu0 %v1251
  %1289 = vmatpush.bf16.msra.mxu0 %v1249
  %1290 = vmatpush.bf16.msra.mxu0 %v1247
  %1291 = vmatpush.bf16.msra.mxu0 %v1245
  %1292 = vmatpush.bf16.msra.mxu0 %v1243
  %1293 = vmatpush.bf16.msra.mxu0 %v1241
  %1294 = vmatpush.bf16.msra.mxu0 %v1239
  %1295 = vmatpush.bf16.msra.mxu0 %v1237
  %1296 = vmatmul.bf16.gmra.mxu0 %v680
  %v1297 = vpop.f32.mrf.mxu0
  %v1298 = vadd.f32 0.0, %v1297
  %v1299 = vpop.f32.mrf.mxu0
  %v1300 = vadd.f32 0.0, %v1299
  %1301 = vmatmul.bf16.gmra.mxu0 %v1139
  %v1302 = vpop.f32.mrf.mxu0
  %v1303 = vadd.f32 0.0, %v1302
  %v1304 = vpop.f32.mrf.mxu0
  %v1305 = vadd.f32 0.0, %v1304
  %1306 = vdwg.mxu0
  %1307 = vmatpush.bf16.msra.mxu0 0
  %1308 = vmatpush.bf16.msra.mxu0 0
  %1309 = vmatpush.bf16.msra.mxu0 0
  %1310 = vmatpush.bf16.msra.mxu0 0
  %1311 = vmatpush.bf16.msra.mxu0 %v1259
  %1312 = vmatpush.bf16.msra.mxu0 %v1257
  %1313 = vmatpush.bf16.msra.mxu0 %v1255
  %1314 = vmatpush.bf16.msra.mxu0 %v1253
  %1315 = vmatmul.bf16.gmra.mxu0 %v1061
  %v1316 = vpop.f32.mrf.mxu0
  %v1317 = vadd.f32 %v1298, %v1316
  %v1318 = vpop.f32.mrf.mxu0
  %v1319 = vadd.f32 %v1300, %v1318
  %1320 = vmatmul.bf16.gmra.mxu0 %v1286
  %v1321 = vpop.f32.mrf.mxu0
  %v1322 = vadd.f32 %v1303, %v1321
  %v1323 = vpop.f32.mrf.mxu0
  %v1324 = vadd.f32 %v1305, %v1323
  %1325 = vdwg.mxu0
  %1326 = vmatpush.bf16.msra.mxu0 %v1252
  %1327 = vmatpush.bf16.msra.mxu0 %v1250
  %1328 = vmatpush.bf16.msra.mxu0 %v1248
  %1329 = vmatpush.bf16.msra.mxu0 %v1246
  %1330 = vmatpush.bf16.msra.mxu0 %v1244
  %1331 = vmatpush.bf16.msra.mxu0 %v1242
  %1332 = vmatpush.bf16.msra.mxu0 %v1240
  %1333 = vmatpush.bf16.msra.mxu0 %v1238
  %1334 = vmatmul.bf16.gmra.mxu0 %v680
  %v1335 = vpop.f32.mrf.mxu0
  %v1336 = vadd.f32 0.0, %v1335
  %v1337 = vpop.f32.mrf.mxu0
  %v1338 = vadd.f32 0.0, %v1337
  %1339 = vmatmul.bf16.gmra.mxu0 %v1139
  %v1340 = vpop.f32.mrf.mxu0
  %v1341 = vadd.f32 0.0, %v1340
  %v1342 = vpop.f32.mrf.mxu0
  %v1343 = vadd.f32 0.0, %v1342
  %1344 = vdwg.mxu0
  %1345 = vmatpush.bf16.msra.mxu0 0
  %1346 = vmatpush.bf16.msra.mxu0 0
  %1347 = vmatpush.bf16.msra.mxu0 0
  %1348 = vmatpush.bf16.msra.mxu0 0
  %1349 = vmatpush.bf16.msra.mxu0 %v1260
  %1350 = vmatpush.bf16.msra.mxu0 %v1258
  %1351 = vmatpush.bf16.msra.mxu0 %v1256
  %1352 = vmatpush.bf16.msra.mxu0 %v1254
  %1353 = vmatmul.bf16.gmra.mxu0 %v1061
  %v1354 = vpop.f32.mrf.mxu0
  %v1355 = vadd.f32 %v1336, %v1354
  %v1356 = vpop.f32.mrf.mxu0
  %v1357 = vadd.f32 %v1338, %v1356
  %1358 = vmatmul.bf16.gmra.mxu0 %v1286
  %v1359 = vpop.f32.mrf.mxu0
  %v1360 = vadd.f32 %v1341, %v1359
  %v1361 = vpop.f32.mrf.mxu0
  %v1362 = vadd.f32 %v1343, %v1361
  %1363 = vdwg.mxu0
  %v1364 = vadd.f32 %v1092, %v1317
  %v1365 = vadd.f32 %v1130, %v1355
  %v1366 = vadd.f32 %v1094, %v1319
  %v1367 = vadd.f32 %v1132, %v1357
  %v1368 = vadd.f32 %v1097, %v1322
  %v1369 = vadd.f32 %v1135, %v1360
  %v1370 = vadd.f32 %v1099, %v1324
  %v1371 = vadd.f32 %v1137, %v1362
  %v1373 = vperm.slane %v34, 0
  %v1374 = vperm.slane %v34, 1
  %v1377 = vadd.f32 %v1364, %v1373
  %v1378 = vadd.f32 %v1365, %v1374
  %v1379 = vadd.f32 %v1366, %v1373
  %v1380 = vadd.f32 %v1367, %v1374
  %v1381 = vadd.f32 %v1368, %v1373
  %v1382 = vadd.f32 %v1369, %v1374
  %v1383 = vadd.f32 %v1370, %v1373
  %v1384 = vadd.f32 %v1371, %v1374
  %v1385 = vmax.f32 %v1377, 0.0
  %v1386 = vmax.f32 %v1378, 0.0
  %v1387 = vmax.f32 %v1379, 0.0
  %v1388 = vmax.f32 %v1380, 0.0
  %v1389 = vmax.f32 %v1381, 0.0
  %v1390 = vmax.f32 %v1382, 0.0
  %v1391 = vmax.f32 %v1383, 0.0
  %v1392 = vmax.f32 %v1384, 0.0
  %v1393 = vld [vmem:[%s1] sm:$0xff]
  %v1394 = vpack.c.bf16 %v1393, %v1393
  %v1395 = vld [vmem:[%s4] sm:$0xf]
  %v1396 = vld [vmem:[%s4 + $0x4] sm:$0xf]
  %v1397 = vld [vmem:[%s4 + $0x8] sm:$0x3]
  %v1399 = vperm.slane %v35, 0
  %v1404 = vunpack.c.l.b16 %v1395
  %v1405 = vunpack.c.l.b16 %v1396
  %v1406 = vunpack.c.l.b16 %v1397
  %v1407 = vpack.c.b16 %v1405, %v1404
  %v1408 = vpack.c.b16 %v1406, %v1406
  %vm1410 = vcmask 162816
  %v1412 = vsel %vm1410, %v1394, 0
  %vm1414 = vcmask 1041408
  %v1416 = vsel %vm1414, %v1408, 0
  %1418 = vmatpush.bf16.msra.mxu0 0
  %1419 = vmatpush.bf16.msra.mxu0 0
  %1420 = vmatpush.bf16.msra.mxu0 0
  %1421 = vmatpush.bf16.msra.mxu0 0
  %1422 = vmatpush.bf16.msra.mxu0 0
  %1423 = vmatpush.bf16.msra.mxu0 0
  %1424 = vmatpush.bf16.msra.mxu0 %v1416
  %1425 = vmatpush.bf16.msra.mxu0 %v1407
  %1426 = vmatmul.bf16.gmra.mxu0 %v1412
  %v1427 = vpop.f32.mrf.mxu0
  %v1428 = vadd.f32 %v1399, %v1427
  %v1429 = vpop.f32.mrf.mxu0
  %1430 = vdwg.mxu0
  %1431 = vadd.xlane.f32.xlu0 %v1428
  %v1432 = vpop.xlane.xlu0 %1431
  %v1433 = vrcp.pop 128.0
  %v1434 = vmul.f32 128.0, %v1433
  %v1435 = vsub.f32 1.0, %v1434
  %v1436 = vmul.f32 %v1433, %v1435
  %v1437 = vadd.f32 %v1433, %v1436
  %vm1438 = vweird.f32 %v1433
  %v1439 = vsel %vm1438, %v1433, %v1437
  %v1440 = vmul.f32 %v1432, %v1439
  %v1441 = vsub.f32 %v1428, %v1440
  %v1442 = vmul.f32 %v1441, %v1441
  %1443 = vadd.xlane.f32.xlu0 %v1442
  %v1444 = vpop.xlane.xlu0 %1443
  %v1445 = vmul.f32 %v1444, %v1439
  %v1446 = vadd.f32 %v1445, 1e-05
  %v1447 = vrsqrt.pop %v1446
  %v1448 = vmul.f32 %v1447, %v1446
  %v1449 = vmul.f32 %v1448, %v1447
  %v1450 = vmul.f32 0.5, %v1449
  %v1451 = vsub.f32 1.5, %v1450
  %v1452 = vmul.f32 %v1447, %v1451
  %vm1453 = vweird.f32 %v1446
  %vm1454 = vweird.f32 %v1447
  %vm1455 = vmor %vm1453, %vm1454
  %v1456 = vsel %vm1455, %v1447, %v1452
  %v1457 = vmul.f32 %v1441, %v1456
  %v1459 = vperm.slane %v36, 0
  %v1461 = vmul.f32 %v1457, %v1459
  %v1463 = vperm.slane %v37, 0
  %v1465 = vadd.f32 %v1461, %v1463
  %v1466 = vmax.f32 %v1465, 0.0
  %v1467 = vpack.c.bf16 %v1385, %v1385
  %v1468 = vpack.c.bf16 %v1386, %v1386
  %v1469 = vpack.c.bf16 %v1387, %v1387
  %v1470 = vpack.c.bf16 %v1388, %v1388
  %v1471 = vpack.c.bf16 %v1389, %v1389
  %v1472 = vpack.c.bf16 %v1390, %v1390
  %v1473 = vpack.c.bf16 %v1391, %v1391
  %v1474 = vpack.c.bf16 %v1392, %v1392
  %v1475 = vpack.c.bf16 %v1466, %v1466
  %v1476 = vld [vmem:[%s5] sm:$0xff]
  %v1477 = vld [vmem:[%s5 + $0x8] sm:$0xff]
  %v1478 = vld [vmem:[%s5 + $0x10] sm:$0xff]
  %v1479 = vld [vmem:[%s5 + $0x18] sm:$0xff]
  %v1480 = vld [vmem:[%s5 + $0x20] sm:$0xff]
  %v1481 = vld [vmem:[%s5 + $0x28] sm:$0xff]
  %v1482 = vld [vmem:[%s5 + $0x30] sm:$0xff]
  %v1483 = vld [vmem:[%s5 + $0x38] sm:$0xff]
  %v1484 = vld [vmem:[%s5 + $0x40] sm:$0xff]
  %v1485 = vld [vmem:[%s5 + $0x48] sm:$0xff]
  %v1486 = vld [vmem:[%s5 + $0x50] sm:$0xff]
  %v1487 = vld [vmem:[%s5 + $0x58] sm:$0xff]
  %v1488 = vld [vmem:[%s5 + $0x60] sm:$0xff]
  %v1489 = vld [vmem:[%s5 + $0x68] sm:$0xff]
  %v1490 = vld [vmem:[%s5 + $0x70] sm:$0xff]
  %v1491 = vld [vmem:[%s5 + $0x78] sm:$0xff]
  %v1492 = vld [vmem:[%s5 + $0x80] sm:$0xff]
  %v1493 = vld [vmem:[%s5 + $0x88] sm:$0xff]
  %v1494 = vld [vmem:[%s5 + $0x90] sm:$0xff]
  %v1495 = vld [vmem:[%s5 + $0x98] sm:$0xff]
  %v1496 = vld [vmem:[%s5 + $0xa0] sm:$0xff]
  %v1497 = vld [vmem:[%s5 + $0xa8] sm:$0xff]
  %v1498 = vld [vmem:[%s5 + $0xb0] sm:$0xff]
  %v1499 = vld [vmem:[%s5 + $0xb8] sm:$0xff]
  %v1500 = vld [vmem:[%s5 + $0xc0] sm:$0xff]
  %v1501 = vld [vmem:[%s5 + $0xc8] sm:$0xff]
  %v1502 = vld [vmem:[%s5 + $0xd0] sm:$0xff]
  %v1503 = vld [vmem:[%s5 + $0xd8] sm:$0xff]
  %v1504 = vld [vmem:[%s5 + $0xe0] sm:$0xff]
  %v1505 = vld [vmem:[%s5 + $0xe8] sm:$0xff]
  %v1506 = vld [vmem:[%s5 + $0xf0] sm:$0xff]
  %v1507 = vld [vmem:[%s5 + $0xf8] sm:$0xff]
  %v1508 = vld [vmem:[%s5 + $0x100] sm:$0xff]
  %v1509 = vld [vmem:[%s5 + $0x108] sm:$0xff]
  %v1510 = vld [vmem:[%s5 + $0x110] sm:$0xff]
  %v1511 = vld [vmem:[%s5 + $0x118] sm:$0xff]
  %v1512 = vld [vmem:[%s5 + $0x120] sm:$0xff]
  %v1513 = vld [vmem:[%s5 + $0x128] sm:$0xff]
  %v1514 = vld [vmem:[%s5 + $0x130] sm:$0xff]
  %v1515 = vld [vmem:[%s5 + $0x138] sm:$0xff]
  %v1516 = vld [vmem:[%s5 + $0x140] sm:$0xff]
  %v1517 = vld [vmem:[%s5 + $0x148] sm:$0xff]
  %v1518 = vld [vmem:[%s5 + $0x150] sm:$0xff]
  %v1519 = vld [vmem:[%s5 + $0x158] sm:$0xff]
  %v1520 = vld [vmem:[%s5 + $0x160] sm:$0xff]
  %v1521 = vld [vmem:[%s5 + $0x168] sm:$0xff]
  %v1522 = vld [vmem:[%s5 + $0x170] sm:$0xff]
  %v1523 = vld [vmem:[%s5 + $0x178] sm:$0xff]
  %v1524 = vld [vmem:[%s5 + $0x180] sm:$0xff]
  %v1525 = vld [vmem:[%s5 + $0x188] sm:$0xff]
  %v1526 = vld [vmem:[%s5 + $0x190] sm:$0xff]
  %v1527 = vld [vmem:[%s5 + $0x198] sm:$0xff]
  %v1528 = vld [vmem:[%s5 + $0x1a0] sm:$0xff]
  %v1529 = vld [vmem:[%s5 + $0x1a8] sm:$0xff]
  %v1530 = vld [vmem:[%s5 + $0x1b0] sm:$0xff]
  %v1531 = vld [vmem:[%s5 + $0x1b8] sm:$0xff]
  %v1532 = vld [vmem:[%s5 + $0x1c0] sm:$0xff]
  %v1533 = vld [vmem:[%s5 + $0x1c8] sm:$0xff]
  %v1534 = vld [vmem:[%s5 + $0x1d0] sm:$0xff]
  %v1535 = vld [vmem:[%s5 + $0x1d8] sm:$0xff]
  %v1536 = vld [vmem:[%s5 + $0x1e0] sm:$0xff]
  %v1537 = vld [vmem:[%s5 + $0x1e8] sm:$0xff]
  %v1538 = vld [vmem:[%s5 + $0x1f0] sm:$0xff]
  %v1539 = vld [vmem:[%s5 + $0x1f8] sm:$0xff]
  %v1540 = vld [vmem:[%s5 + $0x200] sm:$0xff]
  %v1541 = vld [vmem:[%s5 + $0x208] sm:$0xff]
  %v1542 = vld [vmem:[%s5 + $0x210] sm:$0xff]
  %v1543 = vld [vmem:[%s5 + $0x218] sm:$0xff]
  %v1544 = vld [vmem:[%s5 + $0x220] sm:$0xff]
  %v1545 = vld [vmem:[%s5 + $0x228] sm:$0xff]
  %v1546 = vld [vmem:[%s5 + $0x230] sm:$0xff]
  %v1547 = vld [vmem:[%s5 + $0x238] sm:$0xff]
  %v1548 = vld [vmem:[%s5 + $0x240] sm:$0xff]
  %v1549 = vld [vmem:[%s5 + $0x248] sm:$0xff]
  %v1550 = vld [vmem:[%s5 + $0x250] sm:$0xff]
  %v1551 = vld [vmem:[%s5 + $0x258] sm:$0xff]
  %v1552 = vld [vmem:[%s5 + $0x260] sm:$0xff]
  %v1553 = vld [vmem:[%s5 + $0x268] sm:$0xff]
  %v1554 = vld [vmem:[%s5 + $0x270] sm:$0xff]
  %v1555 = vld [vmem:[%s5 + $0x278] sm:$0xff]
  %v1556 = vld [vmem:[%s5 + $0x280] sm:$0xff]
  %v1557 = vld [vmem:[%s5 + $0x288] sm:$0xff]
  %v1558 = vld [vmem:[%s5 + $0x290] sm:$0xff]
  %v1559 = vld [vmem:[%s5 + $0x298] sm:$0xff]
  %v1560 = vld [vmem:[%s5 + $0x2a0] sm:$0xff]
  %v1561 = vld [vmem:[%s5 + $0x2a8] sm:$0xff]
  %v1562 = vld [vmem:[%s5 + $0x2b0] sm:$0xff]
  %v1563 = vld [vmem:[%s5 + $0x2b8] sm:$0xff]
  %v1564 = vld [vmem:[%s5 + $0x2c0] sm:$0xff]
  %v1565 = vld [vmem:[%s5 + $0x2c8] sm:$0xff]
  %v1566 = vld [vmem:[%s5 + $0x2d0] sm:$0xff]
  %v1567 = vld [vmem:[%s5 + $0x2d8] sm:$0xff]
  %v1568 = vld [vmem:[%s5 + $0x2e0] sm:$0xff]
  %v1569 = vld [vmem:[%s5 + $0x2e8] sm:$0xff]
  %v1570 = vld [vmem:[%s5 + $0x2f0] sm:$0xff]
  %v1571 = vld [vmem:[%s5 + $0x2f8] sm:$0xff]
  %v1572 = vld [vmem:[%s5 + $0x300] sm:$0xff]
  %v1573 = vld [vmem:[%s5 + $0x308] sm:$0xff]
  %v1574 = vld [vmem:[%s5 + $0x310] sm:$0xff]
  %v1575 = vld [vmem:[%s5 + $0x318] sm:$0xff]
  %v1576 = vld [vmem:[%s5 + $0x320] sm:$0xff]
  %v1577 = vld [vmem:[%s5 + $0x328] sm:$0xff]
  %v1578 = vld [vmem:[%s5 + $0x330] sm:$0xff]
  %v1579 = vld [vmem:[%s5 + $0x338] sm:$0xff]
  %v1580 = vld [vmem:[%s5 + $0x340] sm:$0xff]
  %v1581 = vld [vmem:[%s5 + $0x348] sm:$0xff]
  %v1582 = vld [vmem:[%s5 + $0x350] sm:$0xff]
  %v1583 = vld [vmem:[%s5 + $0x358] sm:$0xff]
  %v1584 = vld [vmem:[%s5 + $0x360] sm:$0xff]
  %v1585 = vld [vmem:[%s5 + $0x368] sm:$0xff]
  %v1586 = vld [vmem:[%s5 + $0x370] sm:$0xff]
  %v1587 = vld [vmem:[%s5 + $0x378] sm:$0xff]
  %v1588 = vld [vmem:[%s5 + $0x380] sm:$0xff]
  %v1589 = vld [vmem:[%s5 + $0x388] sm:$0xff]
  %v1590 = vld [vmem:[%s5 + $0x390] sm:$0xff]
  %v1591 = vld [vmem:[%s5 + $0x398] sm:$0xff]
  %v1592 = vld [vmem:[%s5 + $0x3a0] sm:$0xff]
  %v1593 = vld [vmem:[%s5 + $0x3a8] sm:$0xff]
  %v1594 = vld [vmem:[%s5 + $0x3b0] sm:$0xff]
  %v1595 = vld [vmem:[%s5 + $0x3b8] sm:$0xff]
  %v1596 = vld [vmem:[%s5 + $0x3c0] sm:$0xff]
  %v1597 = vld [vmem:[%s5 + $0x3c8] sm:$0xff]
  %v1598 = vld [vmem:[%s5 + $0x3d0] sm:$0xff]
  %v1599 = vld [vmem:[%s5 + $0x3d8] sm:$0xff]
  %v1600 = vld [vmem:[%s5 + $0x3e0] sm:$0xff]
  %v1601 = vld [vmem:[%s5 + $0x3e8] sm:$0xff]
  %v1602 = vld [vmem:[%s5 + $0x3f0] sm:$0xff]
  %v1603 = vld [vmem:[%s5 + $0x3f8] sm:$0xff]
  %v1604 = vld [vmem:[%s5 + $0x400] sm:$0xff]
  %v1605 = vld [vmem:[%s5 + $0x408] sm:$0xff]
  %v1606 = vld [vmem:[%s5 + $0x410] sm:$0xff]
  %v1607 = vld [vmem:[%s5 + $0x418] sm:$0xff]
  %v1608 = vld [vmem:[%s5 + $0x420] sm:$0xff]
  %v1609 = vld [vmem:[%s5 + $0x428] sm:$0xff]
  %v1610 = vld [vmem:[%s5 + $0x430] sm:$0xff]
  %v1611 = vld [vmem:[%s5 + $0x438] sm:$0xff]
  %v1612 = vld [vmem:[%s5 + $0x440] sm:$0xff]
  %v1613 = vld [vmem:[%s5 + $0x448] sm:$0xff]
  %v1614 = vld [vmem:[%s5 + $0x450] sm:$0xff]
  %v1615 = vld [vmem:[%s5 + $0x458] sm:$0xff]
  %v1616 = vld [vmem:[%s5 + $0x460] sm:$0xff]
  %v1617 = vld [vmem:[%s5 + $0x468] sm:$0xff]
  %v1618 = vld [vmem:[%s5 + $0x470] sm:$0xff]
  %v1619 = vld [vmem:[%s5 + $0x478] sm:$0xff]
  %v1620 = vld [vmem:[%s5 + $0x480] sm:$0xff]
  %v1621 = vld [vmem:[%s5 + $0x488] sm:$0xff]
  %v1622 = vld [vmem:[%s5 + $0x490] sm:$0xff]
  %v1623 = vld [vmem:[%s5 + $0x498] sm:$0xff]
  %v1624 = vld [vmem:[%s5 + $0x4a0] sm:$0xff]
  %v1625 = vld [vmem:[%s5 + $0x4a8] sm:$0xff]
  %v1626 = vld [vmem:[%s5 + $0x4b0] sm:$0xff]
  %v1627 = vld [vmem:[%s5 + $0x4b8] sm:$0xff]
  %v1628 = vld [vmem:[%s5 + $0x4c0] sm:$0xff]
  %v1629 = vld [vmem:[%s5 + $0x4c8] sm:$0xff]
  %v1630 = vld [vmem:[%s5 + $0x4d0] sm:$0xff]
  %v1631 = vld [vmem:[%s5 + $0x4d8] sm:$0xff]
  %v1632 = vld [vmem:[%s5 + $0x4e0] sm:$0xff]
  %v1633 = vld [vmem:[%s5 + $0x4e8] sm:$0xff]
  %v1634 = vld [vmem:[%s5 + $0x4f0] sm:$0xff]
  %v1635 = vld [vmem:[%s5 + $0x4f8] sm:$0xff]
  %v1636 = vld [vmem:[%s5 + $0x500] sm:$0xff]
  %v1637 = vld [vmem:[%s5 + $0x508] sm:$0xff]
  %v1638 = vld [vmem:[%s5 + $0x510] sm:$0xff]
  %v1639 = vld [vmem:[%s5 + $0x518] sm:$0xff]
  %v1640 = vld [vmem:[%s5 + $0x520] sm:$0xff]
  %v1641 = vld [vmem:[%s5 + $0x528] sm:$0xff]
  %v1642 = vld [vmem:[%s5 + $0x530] sm:$0xff]
  %v1643 = vld [vmem:[%s5 + $0x538] sm:$0xff]
  %v1644 = vld [vmem:[%s5 + $0x540] sm:$0xff]
  %v1645 = vld [vmem:[%s5 + $0x548] sm:$0xff]
  %v1646 = vld [vmem:[%s5 + $0x550] sm:$0xff]
  %v1647 = vld [vmem:[%s5 + $0x558] sm:$0xff]
  %v1648 = vld [vmem:[%s5 + $0x560] sm:$0xff]
  %v1649 = vld [vmem:[%s5 + $0x568] sm:$0xff]
  %v1650 = vld [vmem:[%s5 + $0x570] sm:$0xff]
  %v1651 = vld [vmem:[%s5 + $0x578] sm:$0xff]
  %v1652 = vld [vmem:[%s5 + $0x580] sm:$0xff]
  %v1653 = vld [vmem:[%s5 + $0x588] sm:$0xff]
  %v1654 = vld [vmem:[%s5 + $0x590] sm:$0xff]
  %v1655 = vld [vmem:[%s5 + $0x598] sm:$0xff]
  %v1656 = vld [vmem:[%s5 + $0x5a0] sm:$0xff]
  %v1657 = vld [vmem:[%s5 + $0x5a8] sm:$0xff]
  %v1658 = vld [vmem:[%s5 + $0x5b0] sm:$0xff]
  %v1659 = vld [vmem:[%s5 + $0x5b8] sm:$0xff]
  %v1660 = vld [vmem:[%s5 + $0x5c0] sm:$0xff]
  %v1661 = vld [vmem:[%s5 + $0x5c8] sm:$0xff]
  %v1662 = vld [vmem:[%s5 + $0x5d0] sm:$0xff]
  %v1663 = vld [vmem:[%s5 + $0x5d8] sm:$0xff]
  %v1664 = vld [vmem:[%s5 + $0x5e0] sm:$0xff]
  %v1665 = vld [vmem:[%s5 + $0x5e8] sm:$0xff]
  %v1666 = vld [vmem:[%s5 + $0x5f0] sm:$0xff]
  %v1667 = vld [vmem:[%s5 + $0x5f8] sm:$0xff]
  %v1668 = vld [vmem:[%s5 + $0x600] sm:$0xff]
  %v1669 = vld [vmem:[%s5 + $0x608] sm:$0xff]
  %v1670 = vld [vmem:[%s5 + $0x610] sm:$0xff]
  %v1671 = vld [vmem:[%s5 + $0x618] sm:$0xff]
  %v1672 = vld [vmem:[%s5 + $0x620] sm:$0xff]
  %v1673 = vld [vmem:[%s5 + $0x628] sm:$0xff]
  %v1674 = vld [vmem:[%s5 + $0x630] sm:$0xff]
  %v1675 = vld [vmem:[%s5 + $0x638] sm:$0xff]
  %v1676 = vld [vmem:[%s5 + $0x640] sm:$0xff]
  %v1677 = vld [vmem:[%s5 + $0x648] sm:$0xff]
  %v1678 = vld [vmem:[%s5 + $0x650] sm:$0xff]
  %v1679 = vld [vmem:[%s5 + $0x658] sm:$0xff]
  %v1680 = vld [vmem:[%s5 + $0x660] sm:$0xff]
  %v1681 = vld [vmem:[%s5 + $0x668] sm:$0xff]
  %v1682 = vld [vmem:[%s5 + $0x670] sm:$0xff]
  %v1683 = vld [vmem:[%s5 + $0x678] sm:$0xff]
  %v1684 = vld [vmem:[%s5 + $0x680] sm:$0xff]
  %v1685 = vld [vmem:[%s5 + $0x688] sm:$0xff]
  %v1686 = vld [vmem:[%s5 + $0x690] sm:$0xff]
  %v1687 = vld [vmem:[%s5 + $0x698] sm:$0xff]
  %v1688 = vld [vmem:[%s5 + $0x6a0] sm:$0xff]
  %v1689 = vld [vmem:[%s5 + $0x6a8] sm:$0xff]
  %v1690 = vld [vmem:[%s5 + $0x6b0] sm:$0xff]
  %v1691 = vld [vmem:[%s5 + $0x6b8] sm:$0xff]
  %v1692 = vld [vmem:[%s5 + $0x6c0] sm:$0xff]
  %v1693 = vld [vmem:[%s5 + $0x6c8] sm:$0xff]
  %v1694 = vld [vmem:[%s5 + $0x6d0] sm:$0xff]
  %v1695 = vld [vmem:[%s5 + $0x6d8] sm:$0xff]
  %v1696 = vld [vmem:[%s5 + $0x6e0] sm:$0xff]
  %v1697 = vld [vmem:[%s5 + $0x6e8] sm:$0xff]
  %v1698 = vld [vmem:[%s5 + $0x6f0] sm:$0xff]
  %v1699 = vld [vmem:[%s5 + $0x6f8] sm:$0xff]
  %v1700 = vld [vmem:[%s5 + $0x700] sm:$0xff]
  %v1701 = vld [vmem:[%s5 + $0x708] sm:$0xff]
  %v1702 = vld [vmem:[%s5 + $0x710] sm:$0xff]
  %v1703 = vld [vmem:[%s5 + $0x718] sm:$0xff]
  %v1704 = vld [vmem:[%s5 + $0x720] sm:$0xff]
  %v1705 = vld [vmem:[%s5 + $0x728] sm:$0xff]
  %v1706 = vld [vmem:[%s5 + $0x730] sm:$0xff]
  %v1707 = vld [vmem:[%s5 + $0x738] sm:$0xff]
  %v1708 = vld [vmem:[%s5 + $0x740] sm:$0xff]
  %v1709 = vld [vmem:[%s5 + $0x748] sm:$0xff]
  %v1710 = vld [vmem:[%s5 + $0x750] sm:$0xff]
  %v1711 = vld [vmem:[%s5 + $0x758] sm:$0xff]
  %v1712 = vld [vmem:[%s5 + $0x760] sm:$0xff]
  %v1713 = vld [vmem:[%s5 + $0x768] sm:$0xff]
  %v1714 = vld [vmem:[%s5 + $0x770] sm:$0xff]
  %v1715 = vld [vmem:[%s5 + $0x778] sm:$0xff]
  %v1716 = vld [vmem:[%s5 + $0x780] sm:$0xff]
  %v1717 = vld [vmem:[%s5 + $0x788] sm:$0xff]
  %v1718 = vld [vmem:[%s5 + $0x790] sm:$0xff]
  %v1719 = vld [vmem:[%s5 + $0x798] sm:$0xff]
  %v1720 = vld [vmem:[%s5 + $0x7a0] sm:$0xff]
  %v1721 = vld [vmem:[%s5 + $0x7a8] sm:$0xff]
  %v1722 = vld [vmem:[%s5 + $0x7b0] sm:$0xff]
  %v1723 = vld [vmem:[%s5 + $0x7b8] sm:$0xff]
  %v1724 = vld [vmem:[%s5 + $0x7c0] sm:$0xff]
  %v1725 = vld [vmem:[%s5 + $0x7c8] sm:$0xff]
  %v1726 = vld [vmem:[%s5 + $0x7d0] sm:$0xff]
  %v1727 = vld [vmem:[%s5 + $0x7d8] sm:$0xff]
  %v1728 = vld [vmem:[%s5 + $0x7e0] sm:$0xff]
  %v1729 = vld [vmem:[%s5 + $0x7e8] sm:$0xff]
  %v1730 = vld [vmem:[%s5 + $0x7f0] sm:$0xff]
  %v1731 = vld [vmem:[%s5 + $0x7f8] sm:$0xff]
  %v1732 = vld [vmem:[%s5 + $0x800] sm:$0xff]
  %v1733 = vld [vmem:[%s5 + $0x808] sm:$0xff]
  %v1734 = vld [vmem:[%s5 + $0x810] sm:$0xff]
  %v1735 = vld [vmem:[%s5 + $0x818] sm:$0xff]
  %v1736 = vld [vmem:[%s5 + $0x820] sm:$0xff]
  %v1737 = vld [vmem:[%s5 + $0x828] sm:$0xff]
  %v1738 = vld [vmem:[%s5 + $0x830] sm:$0xff]
  %v1739 = vld [vmem:[%s5 + $0x838] sm:$0xff]
  %v1740 = vld [vmem:[%s5 + $0x840] sm:$0xff]
  %v1741 = vld [vmem:[%s5 + $0x848] sm:$0xff]
  %v1742 = vld [vmem:[%s5 + $0x850] sm:$0xff]
  %v1743 = vld [vmem:[%s5 + $0x858] sm:$0xff]
  %v1744 = vld [vmem:[%s5 + $0x860] sm:$0xff]
  %v1745 = vld [vmem:[%s5 + $0x868] sm:$0xff]
  %v1746 = vld [vmem:[%s5 + $0x870] sm:$0xff]
  %v1747 = vld [vmem:[%s5 + $0x878] sm:$0xff]
  %v1748 = vld [vmem:[%s5 + $0x880] sm:$0xff]
  %v1749 = vld [vmem:[%s5 + $0x888] sm:$0xff]
  %v1750 = vld [vmem:[%s5 + $0x890] sm:$0xff]
  %v1751 = vld [vmem:[%s5 + $0x898] sm:$0xff]
  %v1752 = vld [vmem:[%s5 + $0x8a0] sm:$0xff]
  %v1753 = vld [vmem:[%s5 + $0x8a8] sm:$0xff]
  %v1754 = vld [vmem:[%s5 + $0x8b0] sm:$0xff]
  %v1755 = vld [vmem:[%s5 + $0x8b8] sm:$0xff]
  %v1756 = vld [vmem:[%s5 + $0x8c0] sm:$0xff]
  %v1757 = vld [vmem:[%s5 + $0x8c8] sm:$0xff]
  %v1758 = vld [vmem:[%s5 + $0x8d0] sm:$0xff]
  %v1759 = vld [vmem:[%s5 + $0x8d8] sm:$0xff]
  %v1760 = vld [vmem:[%s5 + $0x8e0] sm:$0xff]
  %v1761 = vld [vmem:[%s5 + $0x8e8] sm:$0xff]
  %v1762 = vld [vmem:[%s5 + $0x8f0] sm:$0xff]
  %v1763 = vld [vmem:[%s5 + $0x8f8] sm:$0xff]
  %v1764 = vld [vmem:[%s5 + $0x900] sm:$0xff]
  %v1765 = vld [vmem:[%s5 + $0x908] sm:$0xff]
  %v1766 = vld [vmem:[%s5 + $0x910] sm:$0xff]
  %v1767 = vld [vmem:[%s5 + $0x918] sm:$0xff]
  %v1768 = vld [vmem:[%s5 + $0x920] sm:$0xff]
  %v1769 = vld [vmem:[%s5 + $0x928] sm:$0xff]
  %v1770 = vld [vmem:[%s5 + $0x930] sm:$0xff]
  %v1771 = vld [vmem:[%s5 + $0x938] sm:$0xff]
  %v1772 = vld [vmem:[%s5 + $0x940] sm:$0xff]
  %v1773 = vld [vmem:[%s5 + $0x948] sm:$0xff]
  %v1774 = vld [vmem:[%s5 + $0x950] sm:$0xff]
  %v1775 = vld [vmem:[%s5 + $0x958] sm:$0xff]
  %v1776 = vld [vmem:[%s5 + $0x960] sm:$0xff]
  %v1777 = vld [vmem:[%s5 + $0x968] sm:$0xff]
  %v1778 = vld [vmem:[%s5 + $0x970] sm:$0xff]
  %v1779 = vld [vmem:[%s5 + $0x978] sm:$0xff]
  %v1780 = vld [vmem:[%s5 + $0x980] sm:$0xff]
  %v1781 = vld [vmem:[%s5 + $0x988] sm:$0xff]
  %v1782 = vld [vmem:[%s5 + $0x990] sm:$0xff]
  %v1783 = vld [vmem:[%s5 + $0x998] sm:$0xff]
  %v1784 = vld [vmem:[%s5 + $0x9a0] sm:$0xff]
  %v1785 = vld [vmem:[%s5 + $0x9a8] sm:$0xff]
  %v1786 = vld [vmem:[%s5 + $0x9b0] sm:$0xff]
  %v1787 = vld [vmem:[%s5 + $0x9b8] sm:$0xff]
  %v1788 = vld [vmem:[%s5 + $0x9c0] sm:$0xff]
  %v1789 = vld [vmem:[%s5 + $0x9c8] sm:$0xff]
  %v1790 = vld [vmem:[%s5 + $0x9d0] sm:$0xff]
  %v1791 = vld [vmem:[%s5 + $0x9d8] sm:$0xff]
  %v1792 = vld [vmem:[%s5 + $0x9e0] sm:$0xff]
  %v1793 = vld [vmem:[%s5 + $0x9e8] sm:$0xff]
  %v1794 = vld [vmem:[%s5 + $0x9f0] sm:$0xff]
  %v1795 = vld [vmem:[%s5 + $0x9f8] sm:$0xff]
  %v1796 = vld [vmem:[%s5 + $0xa00] sm:$0xff]
  %v1797 = vld [vmem:[%s5 + $0xa08] sm:$0xff]
  %v1798 = vld [vmem:[%s5 + $0xa10] sm:$0xff]
  %v1799 = vld [vmem:[%s5 + $0xa18] sm:$0xff]
  %v1800 = vld [vmem:[%s5 + $0xa20] sm:$0xff]
  %v1801 = vld [vmem:[%s5 + $0xa28] sm:$0xff]
  %v1802 = vld [vmem:[%s5 + $0xa30] sm:$0xff]
  %v1803 = vld [vmem:[%s5 + $0xa38] sm:$0xff]
  %v1804 = vld [vmem:[%s5 + $0xa40] sm:$0xff]
  %v1805 = vld [vmem:[%s5 + $0xa48] sm:$0xff]
  %v1806 = vld [vmem:[%s5 + $0xa50] sm:$0xff]
  %v1807 = vld [vmem:[%s5 + $0xa58] sm:$0xff]
  %v1808 = vld [vmem:[%s5 + $0xa60] sm:$0xff]
  %v1809 = vld [vmem:[%s5 + $0xa68] sm:$0xff]
  %v1810 = vld [vmem:[%s5 + $0xa70] sm:$0xff]
  %v1811 = vld [vmem:[%s5 + $0xa78] sm:$0xff]
  %v1812 = vld [vmem:[%s5 + $0xa80] sm:$0xff]
  %v1813 = vld [vmem:[%s5 + $0xa88] sm:$0xff]
  %v1814 = vld [vmem:[%s5 + $0xa90] sm:$0xff]
  %v1815 = vld [vmem:[%s5 + $0xa98] sm:$0xff]
  %v1816 = vld [vmem:[%s5 + $0xaa0] sm:$0xff]
  %v1817 = vld [vmem:[%s5 + $0xaa8] sm:$0xff]
  %v1818 = vld [vmem:[%s5 + $0xab0] sm:$0xff]
  %v1819 = vld [vmem:[%s5 + $0xab8] sm:$0xff]
  %v1820 = vld [vmem:[%s5 + $0xac0] sm:$0xff]
  %v1821 = vld [vmem:[%s5 + $0xac8] sm:$0xff]
  %v1822 = vld [vmem:[%s5 + $0xad0] sm:$0xff]
  %v1823 = vld [vmem:[%s5 + $0xad8] sm:$0xff]
  %v1824 = vld [vmem:[%s5 + $0xae0] sm:$0xff]
  %v1825 = vld [vmem:[%s5 + $0xae8] sm:$0xff]
  %v1826 = vld [vmem:[%s5 + $0xaf0] sm:$0xff]
  %v1827 = vld [vmem:[%s5 + $0xaf8] sm:$0xff]
  %v1828 = vld [vmem:[%s5 + $0xb00] sm:$0xff]
  %v1829 = vld [vmem:[%s5 + $0xb08] sm:$0xff]
  %v1830 = vld [vmem:[%s5 + $0xb10] sm:$0xff]
  %v1831 = vld [vmem:[%s5 + $0xb18] sm:$0xff]
  %v1832 = vld [vmem:[%s5 + $0xb20] sm:$0xff]
  %v1833 = vld [vmem:[%s5 + $0xb28] sm:$0xff]
  %v1834 = vld [vmem:[%s5 + $0xb30] sm:$0xff]
  %v1835 = vld [vmem:[%s5 + $0xb38] sm:$0xff]
  %v1836 = vld [vmem:[%s5 + $0xb40] sm:$0xff]
  %v1837 = vld [vmem:[%s5 + $0xb48] sm:$0xff]
  %v1838 = vld [vmem:[%s5 + $0xb50] sm:$0xff]
  %v1839 = vld [vmem:[%s5 + $0xb58] sm:$0xff]
  %v1840 = vld [vmem:[%s5 + $0xb60] sm:$0xff]
  %v1841 = vld [vmem:[%s5 + $0xb68] sm:$0xff]
  %v1842 = vld [vmem:[%s5 + $0xb70] sm:$0xff]
  %v1843 = vld [vmem:[%s5 + $0xb78] sm:$0xff]
  %v1844 = vld [vmem:[%s5 + $0xb80] sm:$0xff]
  %v1845 = vld [vmem:[%s5 + $0xb88] sm:$0xff]
  %v1846 = vld [vmem:[%s5 + $0xb90] sm:$0xff]
  %v1847 = vld [vmem:[%s5 + $0xb98] sm:$0xff]
  %v1848 = vld [vmem:[%s5 + $0xba0] sm:$0xff]
  %v1849 = vld [vmem:[%s5 + $0xba8] sm:$0xff]
  %v1850 = vld [vmem:[%s5 + $0xbb0] sm:$0xff]
  %v1851 = vld [vmem:[%s5 + $0xbb8] sm:$0xff]
  %v1852 = vld [vmem:[%s5 + $0xbc0] sm:$0xff]
  %v1853 = vld [vmem:[%s5 + $0xbc8] sm:$0xff]
  %v1854 = vld [vmem:[%s5 + $0xbd0] sm:$0xff]
  %v1855 = vld [vmem:[%s5 + $0xbd8] sm:$0xff]
  %v1856 = vld [vmem:[%s5 + $0xbe0] sm:$0xff]
  %v1857 = vld [vmem:[%s5 + $0xbe8] sm:$0xff]
  %v1858 = vld [vmem:[%s5 + $0xbf0] sm:$0xff]
  %v1859 = vld [vmem:[%s5 + $0xbf8] sm:$0xff]
  %v1860 = vld [vmem:[%s5 + $0xc00] sm:$0xff]
  %v1861 = vld [vmem:[%s5 + $0xc08] sm:$0xff]
  %v1862 = vld [vmem:[%s5 + $0xc10] sm:$0xff]
  %v1863 = vld [vmem:[%s5 + $0xc18] sm:$0xff]
  %v1864 = vld [vmem:[%s5 + $0xc20] sm:$0xff]
  %v1865 = vld [vmem:[%s5 + $0xc28] sm:$0xff]
  %v1866 = vld [vmem:[%s5 + $0xc30] sm:$0xff]
  %v1867 = vld [vmem:[%s5 + $0xc38] sm:$0xff]
  %v1868 = vld [vmem:[%s5 + $0xc40] sm:$0xff]
  %v1869 = vld [vmem:[%s5 + $0xc48] sm:$0xff]
  %v1870 = vld [vmem:[%s5 + $0xc50] sm:$0xff]
  %v1871 = vld [vmem:[%s5 + $0xc58] sm:$0xff]
  %v1872 = vld [vmem:[%s5 + $0xc60] sm:$0xff]
  %v1873 = vld [vmem:[%s5 + $0xc68] sm:$0xff]
  %v1874 = vld [vmem:[%s5 + $0xc70] sm:$0xff]
  %v1875 = vld [vmem:[%s5 + $0xc78] sm:$0xff]
  %v1876 = vld [vmem:[%s5 + $0xc80] sm:$0xff]
  %v1877 = vld [vmem:[%s5 + $0xc88] sm:$0xff]
  %v1878 = vld [vmem:[%s5 + $0xc90] sm:$0xff]
  %v1879 = vld [vmem:[%s5 + $0xc98] sm:$0xff]
  %v1880 = vld [vmem:[%s5 + $0xca0] sm:$0xff]
  %v1881 = vld [vmem:[%s5 + $0xca8] sm:$0xff]
  %v1882 = vld [vmem:[%s5 + $0xcb0] sm:$0xff]
  %v1883 = vld [vmem:[%s5 + $0xcb8] sm:$0xff]
  %v1884 = vld [vmem:[%s5 + $0xcc0] sm:$0xff]
  %v1885 = vld [vmem:[%s5 + $0xcc8] sm:$0xff]
  %v1886 = vld [vmem:[%s5 + $0xcd0] sm:$0xff]
  %v1887 = vld [vmem:[%s5 + $0xcd8] sm:$0xff]
  %v1888 = vld [vmem:[%s5 + $0xce0] sm:$0xff]
  %v1889 = vld [vmem:[%s5 + $0xce8] sm:$0xff]
  %v1890 = vld [vmem:[%s5 + $0xcf0] sm:$0xff]
  %v1891 = vld [vmem:[%s5 + $0xcf8] sm:$0xff]
  %v1892 = vld [vmem:[%s5 + $0xd00] sm:$0xff]
  %v1893 = vld [vmem:[%s5 + $0xd08] sm:$0xff]
  %v1894 = vld [vmem:[%s5 + $0xd10] sm:$0xff]
  %v1895 = vld [vmem:[%s5 + $0xd18] sm:$0xff]
  %v1896 = vld [vmem:[%s5 + $0xd20] sm:$0xff]
  %v1897 = vld [vmem:[%s5 + $0xd28] sm:$0xff]
  %v1898 = vld [vmem:[%s5 + $0xd30] sm:$0xff]
  %v1899 = vld [vmem:[%s5 + $0xd38] sm:$0xff]
  %v1900 = vld [vmem:[%s5 + $0xd40] sm:$0xff]
  %v1901 = vld [vmem:[%s5 + $0xd48] sm:$0xff]
  %v1902 = vld [vmem:[%s5 + $0xd50] sm:$0xff]
  %v1903 = vld [vmem:[%s5 + $0xd58] sm:$0xff]
  %v1904 = vld [vmem:[%s5 + $0xd60] sm:$0xff]
  %v1905 = vld [vmem:[%s5 + $0xd68] sm:$0xff]
  %v1906 = vld [vmem:[%s5 + $0xd70] sm:$0xff]
  %v1907 = vld [vmem:[%s5 + $0xd78] sm:$0xff]
  %v1909 = vperm.slane %v38, 0
  %v1910 = vperm.slane %v38, 1
  %v1911 = vperm.slane %v38, 2
  %v1912 = vperm.slane %v38, 3
  %v1913 = vperm.slane %v38, 4
  %v1914 = vperm.slane %v38, 5
  %v2353 = vunpack.c.l.b16 %v1476
  %v2354 = vunpack.c.h.b16 %v1476
  %v2355 = vunpack.c.l.b16 %v1477
  %v2356 = vunpack.c.h.b16 %v1477
  %v2357 = vunpack.c.l.b16 %v1478
  %v2358 = vunpack.c.h.b16 %v1478
  %v2359 = vunpack.c.l.b16 %v1479
  %v2360 = vunpack.c.h.b16 %v1479
  %v2361 = vunpack.c.l.b16 %v1480
  %v2362 = vunpack.c.h.b16 %v1480
  %v2363 = vunpack.c.l.b16 %v1481
  %v2364 = vunpack.c.h.b16 %v1481
  %v2365 = vunpack.c.l.b16 %v1482
  %v2366 = vunpack.c.h.b16 %v1482
  %v2367 = vunpack.c.l.b16 %v1483
  %v2368 = vunpack.c.h.b16 %v1483
  %v2369 = vunpack.c.l.b16 %v1484
  %v2370 = vunpack.c.h.b16 %v1484
  %v2371 = vunpack.c.l.b16 %v1485
  %v2372 = vunpack.c.h.b16 %v1485
  %v2373 = vunpack.c.l.b16 %v1486
  %v2374 = vunpack.c.h.b16 %v1486
  %v2375 = vunpack.c.l.b16 %v1487
  %v2376 = vunpack.c.h.b16 %v1487
  %v2377 = vunpack.c.l.b16 %v1488
  %v2378 = vunpack.c.h.b16 %v1488
  %v2379 = vunpack.c.l.b16 %v1489
  %v2380 = vunpack.c.h.b16 %v1489
  %v2381 = vunpack.c.l.b16 %v1490
  %v2382 = vunpack.c.h.b16 %v1490
  %v2383 = vunpack.c.l.b16 %v1491
  %v2384 = vunpack.c.h.b16 %v1491
  %v2385 = vunpack.c.l.b16 %v1492
  %v2386 = vunpack.c.h.b16 %v1492
  %v2387 = vunpack.c.l.b16 %v1493
  %v2388 = vunpack.c.h.b16 %v1493
  %v2389 = vunpack.c.l.b16 %v1494
  %v2390 = vunpack.c.h.b16 %v1494
  %v2391 = vunpack.c.l.b16 %v1495
  %v2392 = vunpack.c.h.b16 %v1495
  %v2393 = vunpack.c.l.b16 %v1496
  %v2394 = vunpack.c.h.b16 %v1496
  %v2395 = vunpack.c.l.b16 %v1497
  %v2396 = vunpack.c.h.b16 %v1497
  %v2397 = vunpack.c.l.b16 %v1498
  %v2398 = vunpack.c.h.b16 %v1498
  %v2399 = vunpack.c.l.b16 %v1499
  %v2400 = vunpack.c.h.b16 %v1499
  %v2401 = vunpack.c.l.b16 %v1500
  %v2402 = vunpack.c.h.b16 %v1500
  %v2403 = vunpack.c.l.b16 %v1501
  %v2404 = vunpack.c.h.b16 %v1501
  %v2405 = vunpack.c.l.b16 %v1502
  %v2406 = vunpack.c.h.b16 %v1502
  %v2407 = vunpack.c.l.b16 %v1503
  %v2408 = vunpack.c.h.b16 %v1503
  %v2409 = vunpack.c.l.b16 %v1504
  %v2410 = vunpack.c.h.b16 %v1504
  %v2411 = vunpack.c.l.b16 %v1505
  %v2412 = vunpack.c.h.b16 %v1505
  %v2413 = vunpack.c.l.b16 %v1506
  %v2414 = vunpack.c.h.b16 %v1506
  %v2415 = vunpack.c.l.b16 %v1507
  %v2416 = vunpack.c.h.b16 %v1507
  %v2417 = vunpack.c.l.b16 %v1508
  %v2418 = vunpack.c.h.b16 %v1508
  %v2419 = vunpack.c.l.b16 %v1509
  %v2420 = vunpack.c.h.b16 %v1509
  %v2421 = vunpack.c.l.b16 %v1510
  %v2422 = vunpack.c.h.b16 %v1510
  %v2423 = vunpack.c.l.b16 %v1511
  %v2424 = vunpack.c.h.b16 %v1511
  %v2425 = vunpack.c.l.b16 %v1512
  %v2426 = vunpack.c.h.b16 %v1512
  %v2427 = vunpack.c.l.b16 %v1513
  %v2428 = vunpack.c.h.b16 %v1513
  %v2429 = vunpack.c.l.b16 %v1514
  %v2430 = vunpack.c.h.b16 %v1514
  %v2431 = vunpack.c.l.b16 %v1515
  %v2432 = vunpack.c.h.b16 %v1515
  %v2433 = vunpack.c.l.b16 %v1516
  %v2434 = vunpack.c.h.b16 %v1516
  %v2435 = vunpack.c.l.b16 %v1517
  %v2436 = vunpack.c.h.b16 %v1517
  %v2437 = vunpack.c.l.b16 %v1518
  %v2438 = vunpack.c.h.b16 %v1518
  %v2439 = vunpack.c.l.b16 %v1519
  %v2440 = vunpack.c.h.b16 %v1519
  %v2441 = vunpack.c.l.b16 %v1520
  %v2442 = vunpack.c.h.b16 %v1520
  %v2443 = vunpack.c.l.b16 %v1521
  %v2444 = vunpack.c.h.b16 %v1521
  %v2445 = vunpack.c.l.b16 %v1522
  %v2446 = vunpack.c.h.b16 %v1522
  %v2447 = vunpack.c.l.b16 %v1523
  %v2448 = vunpack.c.h.b16 %v1523
  %v2449 = vunpack.c.l.b16 %v1524
  %v2450 = vunpack.c.h.b16 %v1524
  %v2451 = vunpack.c.l.b16 %v1525
  %v2452 = vunpack.c.h.b16 %v1525
  %v2453 = vunpack.c.l.b16 %v1526
  %v2454 = vunpack.c.h.b16 %v1526
  %v2455 = vunpack.c.l.b16 %v1527
  %v2456 = vunpack.c.h.b16 %v1527
  %v2457 = vunpack.c.l.b16 %v1528
  %v2458 = vunpack.c.h.b16 %v1528
  %v2459 = vunpack.c.l.b16 %v1529
  %v2460 = vunpack.c.h.b16 %v1529
  %v2461 = vunpack.c.l.b16 %v1530
  %v2462 = vunpack.c.h.b16 %v1530
  %v2463 = vunpack.c.l.b16 %v1531
  %v2464 = vunpack.c.h.b16 %v1531
  %v2465 = vunpack.c.l.b16 %v1532
  %v2466 = vunpack.c.h.b16 %v1532
  %v2467 = vunpack.c.l.b16 %v1533
  %v2468 = vunpack.c.h.b16 %v1533
  %v2469 = vunpack.c.l.b16 %v1534
  %v2470 = vunpack.c.h.b16 %v1534
  %v2471 = vunpack.c.l.b16 %v1535
  %v2472 = vunpack.c.h.b16 %v1535
  %v2473 = vunpack.c.l.b16 %v1536
  %v2474 = vunpack.c.h.b16 %v1536
  %v2475 = vunpack.c.l.b16 %v1537
  %v2476 = vunpack.c.h.b16 %v1537
  %v2477 = vunpack.c.l.b16 %v1538
  %v2478 = vunpack.c.h.b16 %v1538
  %v2479 = vunpack.c.l.b16 %v1539
  %v2480 = vunpack.c.h.b16 %v1539
  %v2481 = vunpack.c.l.b16 %v1540
  %v2482 = vunpack.c.h.b16 %v1540
  %v2483 = vunpack.c.l.b16 %v1541
  %v2484 = vunpack.c.h.b16 %v1541
  %v2485 = vunpack.c.l.b16 %v1542
  %v2486 = vunpack.c.h.b16 %v1542
  %v2487 = vunpack.c.l.b16 %v1543
  %v2488 = vunpack.c.h.b16 %v1543
  %v2489 = vunpack.c.l.b16 %v1544
  %v2490 = vunpack.c.h.b16 %v1544
  %v2491 = vunpack.c.l.b16 %v1545
  %v2492 = vunpack.c.h.b16 %v1545
  %v2493 = vunpack.c.l.b16 %v1546
  %v2494 = vunpack.c.h.b16 %v1546
  %v2495 = vunpack.c.l.b16 %v1547
  %v2496 = vunpack.c.h.b16 %v1547
  %v2497 = vunpack.c.l.b16 %v1548
  %v2498 = vunpack.c.h.b16 %v1548
  %v2499 = vunpack.c.l.b16 %v1549
  %v2500 = vunpack.c.h.b16 %v1549
  %v2501 = vunpack.c.l.b16 %v1550
  %v2502 = vunpack.c.h.b16 %v1550
  %v2503 = vunpack.c.l.b16 %v1551
  %v2504 = vunpack.c.h.b16 %v1551
  %v2505 = vunpack.c.l.b16 %v1552
  %v2506 = vunpack.c.h.b16 %v1552
  %v2507 = vunpack.c.l.b16 %v1553
  %v2508 = vunpack.c.h.b16 %v1553
  %v2509 = vunpack.c.l.b16 %v1554
  %v2510 = vunpack.c.h.b16 %v1554
  %v2511 = vunpack.c.l.b16 %v1555
  %v2512 = vunpack.c.h.b16 %v1555
  %v2513 = vunpack.c.l.b16 %v1556
  %v2514 = vunpack.c.h.b16 %v1556
  %v2515 = vunpack.c.l.b16 %v1557
  %v2516 = vunpack.c.h.b16 %v1557
  %v2517 = vunpack.c.l.b16 %v1558
  %v2518 = vunpack.c.h.b16 %v1558
  %v2519 = vunpack.c.l.b16 %v1559
  %v2520 = vunpack.c.h.b16 %v1559
  %v2521 = vunpack.c.l.b16 %v1560
  %v2522 = vunpack.c.h.b16 %v1560
  %v2523 = vunpack.c.l.b16 %v1561
  %v2524 = vunpack.c.h.b16 %v1561
  %v2525 = vunpack.c.l.b16 %v1562
  %v2526 = vunpack.c.h.b16 %v1562
  %v2527 = vunpack.c.l.b16 %v1563
  %v2528 = vunpack.c.h.b16 %v1563
  %v2529 = vunpack.c.l.b16 %v1564
  %v2530 = vunpack.c.h.b16 %v1564
  %v2531 = vunpack.c.l.b16 %v1565
  %v2532 = vunpack.c.h.b16 %v1565
  %v2533 = vunpack.c.l.b16 %v1566
  %v2534 = vunpack.c.h.b16 %v1566
  %v2535 = vunpack.c.l.b16 %v1567
  %v2536 = vunpack.c.h.b16 %v1567
  %v2537 = vunpack.c.l.b16 %v1568
  %v2538 = vunpack.c.h.b16 %v1568
  %v2539 = vunpack.c.l.b16 %v1569
  %v2540 = vunpack.c.h.b16 %v1569
  %v2541 = vunpack.c.l.b16 %v1570
  %v2542 = vunpack.c.h.b16 %v1570
  %v2543 = vunpack.c.l.b16 %v1571
  %v2544 = vunpack.c.h.b16 %v1571
  %v2545 = vunpack.c.l.b16 %v1572
  %v2546 = vunpack.c.h.b16 %v1572
  %v2547 = vunpack.c.l.b16 %v1573
  %v2548 = vunpack.c.h.b16 %v1573
  %v2549 = vunpack.c.l.b16 %v1574
  %v2550 = vunpack.c.h.b16 %v1574
  %v2551 = vunpack.c.l.b16 %v1575
  %v2552 = vunpack.c.h.b16 %v1575
  %v2553 = vunpack.c.l.b16 %v1576
  %v2554 = vunpack.c.h.b16 %v1576
  %v2555 = vunpack.c.l.b16 %v1577
  %v2556 = vunpack.c.h.b16 %v1577
  %v2557 = vunpack.c.l.b16 %v1578
  %v2558 = vunpack.c.h.b16 %v1578
  %v2559 = vunpack.c.l.b16 %v1579
  %v2560 = vunpack.c.h.b16 %v1579
  %v2561 = vunpack.c.l.b16 %v1580
  %v2562 = vunpack.c.h.b16 %v1580
  %v2563 = vunpack.c.l.b16 %v1581
  %v2564 = vunpack.c.h.b16 %v1581
  %v2565 = vunpack.c.l.b16 %v1582
  %v2566 = vunpack.c.h.b16 %v1582
  %v2567 = vunpack.c.l.b16 %v1583
  %v2568 = vunpack.c.h.b16 %v1583
  %v2569 = vunpack.c.l.b16 %v1584
  %v2570 = vunpack.c.h.b16 %v1584
  %v2571 = vunpack.c.l.b16 %v1585
  %v2572 = vunpack.c.h.b16 %v1585
  %v2573 = vunpack.c.l.b16 %v1586
  %v2574 = vunpack.c.h.b16 %v1586
  %v2575 = vunpack.c.l.b16 %v1587
  %v2576 = vunpack.c.h.b16 %v1587
  %v2577 = vunpack.c.l.b16 %v1588
  %v2578 = vunpack.c.h.b16 %v1588
  %v2579 = vunpack.c.l.b16 %v1589
  %v2580 = vunpack.c.h.b16 %v1589
  %v2581 = vunpack.c.l.b16 %v1590
  %v2582 = vunpack.c.h.b16 %v1590
  %v2583 = vunpack.c.l.b16 %v1591
  %v2584 = vunpack.c.h.b16 %v1591
  %v2585 = vunpack.c.l.b16 %v1592
  %v2586 = vunpack.c.h.b16 %v1592
  %v2587 = vunpack.c.l.b16 %v1593
  %v2588 = vunpack.c.h.b16 %v1593
  %v2589 = vunpack.c.l.b16 %v1594
  %v2590 = vunpack.c.h.b16 %v1594
  %v2591 = vunpack.c.l.b16 %v1595
  %v2592 = vunpack.c.h.b16 %v1595
  %v2593 = vunpack.c.l.b16 %v1596
  %v2594 = vunpack.c.h.b16 %v1596
  %v2595 = vunpack.c.l.b16 %v1597
  %v2596 = vunpack.c.h.b16 %v1597
  %v2597 = vunpack.c.l.b16 %v1598
  %v2598 = vunpack.c.h.b16 %v1598
  %v2599 = vunpack.c.l.b16 %v1599
  %v2600 = vunpack.c.h.b16 %v1599
  %v2601 = vunpack.c.l.b16 %v1600
  %v2602 = vunpack.c.h.b16 %v1600
  %v2603 = vunpack.c.l.b16 %v1601
  %v2604 = vunpack.c.h.b16 %v1601
  %v2605 = vunpack.c.l.b16 %v1602
  %v2606 = vunpack.c.h.b16 %v1602
  %v2607 = vunpack.c.l.b16 %v1603
  %v2608 = vunpack.c.h.b16 %v1603
  %v2609 = vunpack.c.l.b16 %v1604
  %v2610 = vunpack.c.h.b16 %v1604
  %v2611 = vunpack.c.l.b16 %v1605
  %v2612 = vunpack.c.h.b16 %v1605
  %v2613 = vunpack.c.l.b16 %v1606
  %v2614 = vunpack.c.h.b16 %v1606
  %v2615 = vunpack.c.l.b16 %v1607
  %v2616 = vunpack.c.h.b16 %v1607
  %v2617 = vunpack.c.l.b16 %v1608
  %v2618 = vunpack.c.h.b16 %v1608
  %v2619 = vunpack.c.l.b16 %v1609
  %v2620 = vunpack.c.h.b16 %v1609
  %v2621 = vunpack.c.l.b16 %v1610
  %v2622 = vunpack.c.h.b16 %v1610
  %v2623 = vunpack.c.l.b16 %v1611
  %v2624 = vunpack.c.h.b16 %v1611
  %v2625 = vunpack.c.l.b16 %v1612
  %v2626 = vunpack.c.h.b16 %v1612
  %v2627 = vunpack.c.l.b16 %v1613
  %v2628 = vunpack.c.h.b16 %v1613
  %v2629 = vunpack.c.l.b16 %v1614
  %v2630 = vunpack.c.h.b16 %v1614
  %v2631 = vunpack.c.l.b16 %v1615
  %v2632 = vunpack.c.h.b16 %v1615
  %v2633 = vunpack.c.l.b16 %v1616
  %v2634 = vunpack.c.h.b16 %v1616
  %v2635 = vunpack.c.l.b16 %v1617
  %v2636 = vunpack.c.h.b16 %v1617
  %v2637 = vunpack.c.l.b16 %v1618
  %v2638 = vunpack.c.h.b16 %v1618
  %v2639 = vunpack.c.l.b16 %v1619
  %v2640 = vunpack.c.h.b16 %v1619
  %v2641 = vunpack.c.l.b16 %v1620
  %v2642 = vunpack.c.h.b16 %v1620
  %v2643 = vunpack.c.l.b16 %v1621
  %v2644 = vunpack.c.h.b16 %v1621
  %v2645 = vunpack.c.l.b16 %v1622
  %v2646 = vunpack.c.h.b16 %v1622
  %v2647 = vunpack.c.l.b16 %v1623
  %v2648 = vunpack.c.h.b16 %v1623
  %v2649 = vunpack.c.l.b16 %v1624
  %v2650 = vunpack.c.h.b16 %v1624
  %v2651 = vunpack.c.l.b16 %v1625
  %v2652 = vunpack.c.h.b16 %v1625
  %v2653 = vunpack.c.l.b16 %v1626
  %v2654 = vunpack.c.h.b16 %v1626
  %v2655 = vunpack.c.l.b16 %v1627
  %v2656 = vunpack.c.h.b16 %v1627
  %v2657 = vunpack.c.l.b16 %v1628
  %v2658 = vunpack.c.h.b16 %v1628
  %v2659 = vunpack.c.l.b16 %v1629
  %v2660 = vunpack.c.h.b16 %v1629
  %v2661 = vunpack.c.l.b16 %v1630
  %v2662 = vunpack.c.h.b16 %v1630
  %v2663 = vunpack.c.l.b16 %v1631
  %v2664 = vunpack.c.h.b16 %v1631
  %v2665 = vunpack.c.l.b16 %v1632
  %v2666 = vunpack.c.h.b16 %v1632
  %v2667 = vunpack.c.l.b16 %v1633
  %v2668 = vunpack.c.h.b16 %v1633
  %v2669 = vunpack.c.l.b16 %v1634
  %v2670 = vunpack.c.h.b16 %v1634
  %v2671 = vunpack.c.l.b16 %v1635
  %v2672 = vunpack.c.h.b16 %v1635
  %v2673 = vunpack.c.l.b16 %v1636
  %v2674 = vunpack.c.h.b16 %v1636
  %v2675 = vunpack.c.l.b16 %v1637
  %v2676 = vunpack.c.h.b16 %v1637
  %v2677 = vunpack.c.l.b16 %v1638
  %v2678 = vunpack.c.h.b16 %v1638
  %v2679 = vunpack.c.l.b16 %v1639
  %v2680 = vunpack.c.h.b16 %v1639
  %v2681 = vunpack.c.l.b16 %v1640
  %v2682 = vunpack.c.h.b16 %v1640
  %v2683 = vunpack.c.l.b16 %v1641
  %v2684 = vunpack.c.h.b16 %v1641
  %v2685 = vunpack.c.l.b16 %v1642
  %v2686 = vunpack.c.h.b16 %v1642
  %v2687 = vunpack.c.l.b16 %v1643
  %v2688 = vunpack.c.h.b16 %v1643
  %v2689 = vunpack.c.l.b16 %v1644
  %v2690 = vunpack.c.h.b16 %v1644
  %v2691 = vunpack.c.l.b16 %v1645
  %v2692 = vunpack.c.h.b16 %v1645
  %v2693 = vunpack.c.l.b16 %v1646
  %v2694 = vunpack.c.h.b16 %v1646
  %v2695 = vunpack.c.l.b16 %v1647
  %v2696 = vunpack.c.h.b16 %v1647
  %v2697 = vunpack.c.l.b16 %v1648
  %v2698 = vunpack.c.h.b16 %v1648
  %v2699 = vunpack.c.l.b16 %v1649
  %v2700 = vunpack.c.h.b16 %v1649
  %v2701 = vunpack.c.l.b16 %v1650
  %v2702 = vunpack.c.h.b16 %v1650
  %v2703 = vunpack.c.l.b16 %v1651
  %v2704 = vunpack.c.h.b16 %v1651
  %v2705 = vunpack.c.l.b16 %v1652
  %v2706 = vunpack.c.h.b16 %v1652
  %v2707 = vunpack.c.l.b16 %v1653
  %v2708 = vunpack.c.h.b16 %v1653
  %v2709 = vunpack.c.l.b16 %v1654
  %v2710 = vunpack.c.h.b16 %v1654
  %v2711 = vunpack.c.l.b16 %v1655
  %v2712 = vunpack.c.h.b16 %v1655
  %v2713 = vunpack.c.l.b16 %v1656
  %v2714 = vunpack.c.h.b16 %v1656
  %v2715 = vunpack.c.l.b16 %v1657
  %v2716 = vunpack.c.h.b16 %v1657
  %v2717 = vunpack.c.l.b16 %v1658
  %v2718 = vunpack.c.h.b16 %v1658
  %v2719 = vunpack.c.l.b16 %v1659
  %v2720 = vunpack.c.h.b16 %v1659
  %v2721 = vunpack.c.l.b16 %v1660
  %v2722 = vunpack.c.h.b16 %v1660
  %v2723 = vunpack.c.l.b16 %v1661
  %v2724 = vunpack.c.h.b16 %v1661
  %v2725 = vunpack.c.l.b16 %v1662
  %v2726 = vunpack.c.h.b16 %v1662
  %v2727 = vunpack.c.l.b16 %v1663
  %v2728 = vunpack.c.h.b16 %v1663
  %v2729 = vunpack.c.l.b16 %v1664
  %v2730 = vunpack.c.h.b16 %v1664
  %v2731 = vunpack.c.l.b16 %v1665
  %v2732 = vunpack.c.h.b16 %v1665
  %v2733 = vunpack.c.l.b16 %v1666
  %v2734 = vunpack.c.h.b16 %v1666
  %v2735 = vunpack.c.l.b16 %v1667
  %v2736 = vunpack.c.h.b16 %v1667
  %v2737 = vunpack.c.l.b16 %v1668
  %v2738 = vunpack.c.h.b16 %v1668
  %v2739 = vunpack.c.l.b16 %v1669
  %v2740 = vunpack.c.h.b16 %v1669
  %v2741 = vunpack.c.l.b16 %v1670
  %v2742 = vunpack.c.h.b16 %v1670
  %v2743 = vunpack.c.l.b16 %v1671
  %v2744 = vunpack.c.h.b16 %v1671
  %v2745 = vunpack.c.l.b16 %v1672
  %v2746 = vunpack.c.h.b16 %v1672
  %v2747 = vunpack.c.l.b16 %v1673
  %v2748 = vunpack.c.h.b16 %v1673
  %v2749 = vunpack.c.l.b16 %v1674
  %v2750 = vunpack.c.h.b16 %v1674
  %v2751 = vunpack.c.l.b16 %v1675
  %v2752 = vunpack.c.h.b16 %v1675
  %v2753 = vunpack.c.l.b16 %v1676
  %v2754 = vunpack.c.h.b16 %v1676
  %v2755 = vunpack.c.l.b16 %v1677
  %v2756 = vunpack.c.h.b16 %v1677
  %v2757 = vunpack.c.l.b16 %v1678
  %v2758 = vunpack.c.h.b16 %v1678
  %v2759 = vunpack.c.l.b16 %v1679
  %v2760 = vunpack.c.h.b16 %v1679
  %v2761 = vunpack.c.l.b16 %v1680
  %v2762 = vunpack.c.h.b16 %v1680
  %v2763 = vunpack.c.l.b16 %v1681
  %v2764 = vunpack.c.h.b16 %v1681
  %v2765 = vunpack.c.l.b16 %v1682
  %v2766 = vunpack.c.h.b16 %v1682
  %v2767 = vunpack.c.l.b16 %v1683
  %v2768 = vunpack.c.h.b16 %v1683
  %v2769 = vunpack.c.l.b16 %v1684
  %v2770 = vunpack.c.h.b16 %v1684
  %v2771 = vunpack.c.l.b16 %v1685
  %v2772 = vunpack.c.h.b16 %v1685
  %v2773 = vunpack.c.l.b16 %v1686
  %v2774 = vunpack.c.h.b16 %v1686
  %v2775 = vunpack.c.l.b16 %v1687
  %v2776 = vunpack.c.h.b16 %v1687
  %v2777 = vunpack.c.l.b16 %v1688
  %v2778 = vunpack.c.h.b16 %v1688
  %v2779 = vunpack.c.l.b16 %v1689
  %v2780 = vunpack.c.h.b16 %v1689
  %v2781 = vunpack.c.l.b16 %v1690
  %v2782 = vunpack.c.h.b16 %v1690
  %v2783 = vunpack.c.l.b16 %v1691
  %v2784 = vunpack.c.h.b16 %v1691
  %v2785 = vunpack.c.l.b16 %v1692
  %v2786 = vunpack.c.h.b16 %v1692
  %v2787 = vunpack.c.l.b16 %v1693
  %v2788 = vunpack.c.h.b16 %v1693
  %v2789 = vunpack.c.l.b16 %v1694
  %v2790 = vunpack.c.h.b16 %v1694
  %v2791 = vunpack.c.l.b16 %v1695
  %v2792 = vunpack.c.h.b16 %v1695
  %v2793 = vunpack.c.l.b16 %v1696
  %v2794 = vunpack.c.h.b16 %v1696
  %v2795 = vunpack.c.l.b16 %v1697
  %v2796 = vunpack.c.h.b16 %v1697
  %v2797 = vunpack.c.l.b16 %v1698
  %v2798 = vunpack.c.h.b16 %v1698
  %v2799 = vunpack.c.l.b16 %v1699
  %v2800 = vunpack.c.h.b16 %v1699
  %v2801 = vunpack.c.l.b16 %v1700
  %v2802 = vunpack.c.h.b16 %v1700
  %v2803 = vunpack.c.l.b16 %v1701
  %v2804 = vunpack.c.h.b16 %v1701
  %v2805 = vunpack.c.l.b16 %v1702
  %v2806 = vunpack.c.h.b16 %v1702
  %v2807 = vunpack.c.l.b16 %v1703
  %v2808 = vunpack.c.h.b16 %v1703
  %v2809 = vunpack.c.l.b16 %v1704
  %v2810 = vunpack.c.h.b16 %v1704
  %v2811 = vunpack.c.l.b16 %v1705
  %v2812 = vunpack.c.h.b16 %v1705
  %v2813 = vunpack.c.l.b16 %v1706
  %v2814 = vunpack.c.h.b16 %v1706
  %v2815 = vunpack.c.l.b16 %v1707
  %v2816 = vunpack.c.h.b16 %v1707
  %v2817 = vunpack.c.l.b16 %v1708
  %v2818 = vunpack.c.h.b16 %v1708
  %v2819 = vunpack.c.l.b16 %v1709
  %v2820 = vunpack.c.h.b16 %v1709
  %v2821 = vunpack.c.l.b16 %v1710
  %v2822 = vunpack.c.h.b16 %v1710
  %v2823 = vunpack.c.l.b16 %v1711
  %v2824 = vunpack.c.h.b16 %v1711
  %v2825 = vunpack.c.l.b16 %v1712
  %v2826 = vunpack.c.h.b16 %v1712
  %v2827 = vunpack.c.l.b16 %v1713
  %v2828 = vunpack.c.h.b16 %v1713
  %v2829 = vunpack.c.l.b16 %v1714
  %v2830 = vunpack.c.h.b16 %v1714
  %v2831 = vunpack.c.l.b16 %v1715
  %v2832 = vunpack.c.h.b16 %v1715
  %v2833 = vunpack.c.l.b16 %v1716
  %v2834 = vunpack.c.h.b16 %v1716
  %v2835 = vunpack.c.l.b16 %v1717
  %v2836 = vunpack.c.h.b16 %v1717
  %v2837 = vunpack.c.l.b16 %v1718
  %v2838 = vunpack.c.h.b16 %v1718
  %v2839 = vunpack.c.l.b16 %v1719
  %v2840 = vunpack.c.h.b16 %v1719
  %v2841 = vunpack.c.l.b16 %v1720
  %v2842 = vunpack.c.h.b16 %v1720
  %v2843 = vunpack.c.l.b16 %v1721
  %v2844 = vunpack.c.h.b16 %v1721
  %v2845 = vunpack.c.l.b16 %v1722
  %v2846 = vunpack.c.h.b16 %v1722
  %v2847 = vunpack.c.l.b16 %v1723
  %v2848 = vunpack.c.h.b16 %v1723
  %v2849 = vunpack.c.l.b16 %v1724
  %v2850 = vunpack.c.h.b16 %v1724
  %v2851 = vunpack.c.l.b16 %v1725
  %v2852 = vunpack.c.h.b16 %v1725
  %v2853 = vunpack.c.l.b16 %v1726
  %v2854 = vunpack.c.h.b16 %v1726
  %v2855 = vunpack.c.l.b16 %v1727
  %v2856 = vunpack.c.h.b16 %v1727
  %v2857 = vunpack.c.l.b16 %v1728
  %v2858 = vunpack.c.h.b16 %v1728
  %v2859 = vunpack.c.l.b16 %v1729
  %v2860 = vunpack.c.h.b16 %v1729
  %v2861 = vunpack.c.l.b16 %v1730
  %v2862 = vunpack.c.h.b16 %v1730
  %v2863 = vunpack.c.l.b16 %v1731
  %v2864 = vunpack.c.h.b16 %v1731
  %v2865 = vunpack.c.l.b16 %v1732
  %v2866 = vunpack.c.h.b16 %v1732
  %v2867 = vunpack.c.l.b16 %v1733
  %v2868 = vunpack.c.h.b16 %v1733
  %v2869 = vunpack.c.l.b16 %v1734
  %v2870 = vunpack.c.h.b16 %v1734
  %v2871 = vunpack.c.l.b16 %v1735
  %v2872 = vunpack.c.h.b16 %v1735
  %v2873 = vunpack.c.l.b16 %v1736
  %v2874 = vunpack.c.h.b16 %v1736
  %v2875 = vunpack.c.l.b16 %v1737
  %v2876 = vunpack.c.h.b16 %v1737
  %v2877 = vunpack.c.l.b16 %v1738
  %v2878 = vunpack.c.h.b16 %v1738
  %v2879 = vunpack.c.l.b16 %v1739
  %v2880 = vunpack.c.h.b16 %v1739
  %v2881 = vunpack.c.l.b16 %v1740
  %v2882 = vunpack.c.h.b16 %v1740
  %v2883 = vunpack.c.l.b16 %v1741
  %v2884 = vunpack.c.h.b16 %v1741
  %v2885 = vunpack.c.l.b16 %v1742
  %v2886 = vunpack.c.h.b16 %v1742
  %v2887 = vunpack.c.l.b16 %v1743
  %v2888 = vunpack.c.h.b16 %v1743
  %v2889 = vunpack.c.l.b16 %v1744
  %v2890 = vunpack.c.h.b16 %v1744
  %v2891 = vunpack.c.l.b16 %v1745
  %v2892 = vunpack.c.h.b16 %v1745
  %v2893 = vunpack.c.l.b16 %v1746
  %v2894 = vunpack.c.h.b16 %v1746
  %v2895 = vunpack.c.l.b16 %v1747
  %v2896 = vunpack.c.h.b16 %v1747
  %v2897 = vunpack.c.l.b16 %v1748
  %v2898 = vunpack.c.h.b16 %v1748
  %v2899 = vunpack.c.l.b16 %v1749
  %v2900 = vunpack.c.h.b16 %v1749
  %v2901 = vunpack.c.l.b16 %v1750
  %v2902 = vunpack.c.h.b16 %v1750
  %v2903 = vunpack.c.l.b16 %v1751
  %v2904 = vunpack.c.h.b16 %v1751
  %v2905 = vunpack.c.l.b16 %v1752
  %v2906 = vunpack.c.h.b16 %v1752
  %v2907 = vunpack.c.l.b16 %v1753
  %v2908 = vunpack.c.h.b16 %v1753
  %v2909 = vunpack.c.l.b16 %v1754
  %v2910 = vunpack.c.h.b16 %v1754
  %v2911 = vunpack.c.l.b16 %v1755
  %v2912 = vunpack.c.h.b16 %v1755
  %v2913 = vunpack.c.l.b16 %v1756
  %v2914 = vunpack.c.h.b16 %v1756
  %v2915 = vunpack.c.l.b16 %v1757
  %v2916 = vunpack.c.h.b16 %v1757
  %v2917 = vunpack.c.l.b16 %v1758
  %v2918 = vunpack.c.h.b16 %v1758
  %v2919 = vunpack.c.l.b16 %v1759
  %v2920 = vunpack.c.h.b16 %v1759
  %v2921 = vunpack.c.l.b16 %v1760
  %v2922 = vunpack.c.h.b16 %v1760
  %v2923 = vunpack.c.l.b16 %v1761
  %v2924 = vunpack.c.h.b16 %v1761
  %v2925 = vunpack.c.l.b16 %v1762
  %v2926 = vunpack.c.h.b16 %v1762
  %v2927 = vunpack.c.l.b16 %v1763
  %v2928 = vunpack.c.h.b16 %v1763
  %v2929 = vunpack.c.l.b16 %v1764
  %v2930 = vunpack.c.h.b16 %v1764
  %v2931 = vunpack.c.l.b16 %v1765
  %v2932 = vunpack.c.h.b16 %v1765
  %v2933 = vunpack.c.l.b16 %v1766
  %v2934 = vunpack.c.h.b16 %v1766
  %v2935 = vunpack.c.l.b16 %v1767
  %v2936 = vunpack.c.h.b16 %v1767
  %v2937 = vunpack.c.l.b16 %v1768
  %v2938 = vunpack.c.h.b16 %v1768
  %v2939 = vunpack.c.l.b16 %v1769
  %v2940 = vunpack.c.h.b16 %v1769
  %v2941 = vunpack.c.l.b16 %v1770
  %v2942 = vunpack.c.h.b16 %v1770
  %v2943 = vunpack.c.l.b16 %v1771
  %v2944 = vunpack.c.h.b16 %v1771
  %v2945 = vunpack.c.l.b16 %v1772
  %v2946 = vunpack.c.h.b16 %v1772
  %v2947 = vunpack.c.l.b16 %v1773
  %v2948 = vunpack.c.h.b16 %v1773
  %v2949 = vunpack.c.l.b16 %v1774
  %v2950 = vunpack.c.h.b16 %v1774
  %v2951 = vunpack.c.l.b16 %v1775
  %v2952 = vunpack.c.h.b16 %v1775
  %v2953 = vunpack.c.l.b16 %v1776
  %v2954 = vunpack.c.h.b16 %v1776
  %v2955 = vunpack.c.l.b16 %v1777
  %v2956 = vunpack.c.h.b16 %v1777
  %v2957 = vunpack.c.l.b16 %v1778
  %v2958 = vunpack.c.h.b16 %v1778
  %v2959 = vunpack.c.l.b16 %v1779
  %v2960 = vunpack.c.h.b16 %v1779
  %v2961 = vunpack.c.l.b16 %v1780
  %v2962 = vunpack.c.h.b16 %v1780
  %v2963 = vunpack.c.l.b16 %v1781
  %v2964 = vunpack.c.h.b16 %v1781
  %v2965 = vunpack.c.l.b16 %v1782
  %v2966 = vunpack.c.h.b16 %v1782
  %v2967 = vunpack.c.l.b16 %v1783
  %v2968 = vunpack.c.h.b16 %v1783
  %v2969 = vunpack.c.l.b16 %v1784
  %v2970 = vunpack.c.h.b16 %v1784
  %v2971 = vunpack.c.l.b16 %v1785
  %v2972 = vunpack.c.h.b16 %v1785
  %v2973 = vunpack.c.l.b16 %v1786
  %v2974 = vunpack.c.h.b16 %v1786
  %v2975 = vunpack.c.l.b16 %v1787
  %v2976 = vunpack.c.h.b16 %v1787
  %v2977 = vunpack.c.l.b16 %v1788
  %v2978 = vunpack.c.h.b16 %v1788
  %v2979 = vunpack.c.l.b16 %v1789
  %v2980 = vunpack.c.h.b16 %v1789
  %v2981 = vunpack.c.l.b16 %v1790
  %v2982 = vunpack.c.h.b16 %v1790
  %v2983 = vunpack.c.l.b16 %v1791
  %v2984 = vunpack.c.h.b16 %v1791
  %v2985 = vunpack.c.l.b16 %v1792
  %v2986 = vunpack.c.h.b16 %v1792
  %v2987 = vunpack.c.l.b16 %v1793
  %v2988 = vunpack.c.h.b16 %v1793
  %v2989 = vunpack.c.l.b16 %v1794
  %v2990 = vunpack.c.h.b16 %v1794
  %v2991 = vunpack.c.l.b16 %v1795
  %v2992 = vunpack.c.h.b16 %v1795
  %v2993 = vunpack.c.l.b16 %v1796
  %v2994 = vunpack.c.h.b16 %v1796
  %v2995 = vunpack.c.l.b16 %v1797
  %v2996 = vunpack.c.h.b16 %v1797
  %v2997 = vunpack.c.l.b16 %v1798
  %v2998 = vunpack.c.h.b16 %v1798
  %v2999 = vunpack.c.l.b16 %v1799
  %v3000 = vunpack.c.h.b16 %v1799
  %v3001 = vunpack.c.l.b16 %v1800
  %v3002 = vunpack.c.h.b16 %v1800
  %v3003 = vunpack.c.l.b16 %v1801
  %v3004 = vunpack.c.h.b16 %v1801
  %v3005 = vunpack.c.l.b16 %v1802
  %v3006 = vunpack.c.h.b16 %v1802
  %v3007 = vunpack.c.l.b16 %v1803
  %v3008 = vunpack.c.h.b16 %v1803
  %v3009 = vunpack.c.l.b16 %v1804
  %v3010 = vunpack.c.h.b16 %v1804
  %v3011 = vunpack.c.l.b16 %v1805
  %v3012 = vunpack.c.h.b16 %v1805
  %v3013 = vunpack.c.l.b16 %v1806
  %v3014 = vunpack.c.h.b16 %v1806
  %v3015 = vunpack.c.l.b16 %v1807
  %v3016 = vunpack.c.h.b16 %v1807
  %v3017 = vunpack.c.l.b16 %v1808
  %v3018 = vunpack.c.h.b16 %v1808
  %v3019 = vunpack.c.l.b16 %v1809
  %v3020 = vunpack.c.h.b16 %v1809
  %v3021 = vunpack.c.l.b16 %v1810
  %v3022 = vunpack.c.h.b16 %v1810
  %v3023 = vunpack.c.l.b16 %v1811
  %v3024 = vunpack.c.h.b16 %v1811
  %v3025 = vunpack.c.l.b16 %v1812
  %v3026 = vunpack.c.h.b16 %v1812
  %v3027 = vunpack.c.l.b16 %v1813
  %v3028 = vunpack.c.h.b16 %v1813
  %v3029 = vunpack.c.l.b16 %v1814
  %v3030 = vunpack.c.h.b16 %v1814
  %v3031 = vunpack.c.l.b16 %v1815
  %v3032 = vunpack.c.h.b16 %v1815
  %v3033 = vunpack.c.l.b16 %v1816
  %v3034 = vunpack.c.h.b16 %v1816
  %v3035 = vunpack.c.l.b16 %v1817
  %v3036 = vunpack.c.h.b16 %v1817
  %v3037 = vunpack.c.l.b16 %v1818
  %v3038 = vunpack.c.h.b16 %v1818
  %v3039 = vunpack.c.l.b16 %v1819
  %v3040 = vunpack.c.h.b16 %v1819
  %v3041 = vunpack.c.l.b16 %v1820
  %v3042 = vunpack.c.h.b16 %v1820
  %v3043 = vunpack.c.l.b16 %v1821
  %v3044 = vunpack.c.h.b16 %v1821
  %v3045 = vunpack.c.l.b16 %v1822
  %v3046 = vunpack.c.h.b16 %v1822
  %v3047 = vunpack.c.l.b16 %v1823
  %v3048 = vunpack.c.h.b16 %v1823
  %v3049 = vunpack.c.l.b16 %v1824
  %v3050 = vunpack.c.h.b16 %v1824
  %v3051 = vunpack.c.l.b16 %v1825
  %v3052 = vunpack.c.h.b16 %v1825
  %v3053 = vunpack.c.l.b16 %v1826
  %v3054 = vunpack.c.h.b16 %v1826
  %v3055 = vunpack.c.l.b16 %v1827
  %v3056 = vunpack.c.h.b16 %v1827
  %v3057 = vunpack.c.l.b16 %v1828
  %v3058 = vunpack.c.h.b16 %v1828
  %v3059 = vunpack.c.l.b16 %v1829
  %v3060 = vunpack.c.h.b16 %v1829
  %v3061 = vunpack.c.l.b16 %v1830
  %v3062 = vunpack.c.h.b16 %v1830
  %v3063 = vunpack.c.l.b16 %v1831
  %v3064 = vunpack.c.h.b16 %v1831
  %v3065 = vunpack.c.l.b16 %v1832
  %v3066 = vunpack.c.h.b16 %v1832
  %v3067 = vunpack.c.l.b16 %v1833
  %v3068 = vunpack.c.h.b16 %v1833
  %v3069 = vunpack.c.l.b16 %v1834
  %v3070 = vunpack.c.h.b16 %v1834
  %v3071 = vunpack.c.l.b16 %v1835
  %v3072 = vunpack.c.h.b16 %v1835
  %v3073 = vunpack.c.l.b16 %v1836
  %v3074 = vunpack.c.h.b16 %v1836
  %v3075 = vunpack.c.l.b16 %v1837
  %v3076 = vunpack.c.h.b16 %v1837
  %v3077 = vunpack.c.l.b16 %v1838
  %v3078 = vunpack.c.h.b16 %v1838
  %v3079 = vunpack.c.l.b16 %v1839
  %v3080 = vunpack.c.h.b16 %v1839
  %v3081 = vunpack.c.l.b16 %v1840
  %v3082 = vunpack.c.h.b16 %v1840
  %v3083 = vunpack.c.l.b16 %v1841
  %v3084 = vunpack.c.h.b16 %v1841
  %v3085 = vunpack.c.l.b16 %v1842
  %v3086 = vunpack.c.h.b16 %v1842
  %v3087 = vunpack.c.l.b16 %v1843
  %v3088 = vunpack.c.h.b16 %v1843
  %v3089 = vunpack.c.l.b16 %v1844
  %v3090 = vunpack.c.h.b16 %v1844
  %v3091 = vunpack.c.l.b16 %v1845
  %v3092 = vunpack.c.h.b16 %v1845
  %v3093 = vunpack.c.l.b16 %v1846
  %v3094 = vunpack.c.h.b16 %v1846
  %v3095 = vunpack.c.l.b16 %v1847
  %v3096 = vunpack.c.h.b16 %v1847
  %v3097 = vunpack.c.l.b16 %v1848
  %v3098 = vunpack.c.h.b16 %v1848
  %v3099 = vunpack.c.l.b16 %v1849
  %v3100 = vunpack.c.h.b16 %v1849
  %v3101 = vunpack.c.l.b16 %v1850
  %v3102 = vunpack.c.h.b16 %v1850
  %v3103 = vunpack.c.l.b16 %v1851
  %v3104 = vunpack.c.h.b16 %v1851
  %v3105 = vunpack.c.l.b16 %v1852
  %v3106 = vunpack.c.h.b16 %v1852
  %v3107 = vunpack.c.l.b16 %v1853
  %v3108 = vunpack.c.h.b16 %v1853
  %v3109 = vunpack.c.l.b16 %v1854
  %v3110 = vunpack.c.h.b16 %v1854
  %v3111 = vunpack.c.l.b16 %v1855
  %v3112 = vunpack.c.h.b16 %v1855
  %v3113 = vunpack.c.l.b16 %v1856
  %v3114 = vunpack.c.h.b16 %v1856
  %v3115 = vunpack.c.l.b16 %v1857
  %v3116 = vunpack.c.h.b16 %v1857
  %v3117 = vunpack.c.l.b16 %v1858
  %v3118 = vunpack.c.h.b16 %v1858
  %v3119 = vunpack.c.l.b16 %v1859
  %v3120 = vunpack.c.h.b16 %v1859
  %v3121 = vunpack.c.l.b16 %v1860
  %v3122 = vunpack.c.h.b16 %v1860
  %v3123 = vunpack.c.l.b16 %v1861
  %v3124 = vunpack.c.h.b16 %v1861
  %v3125 = vunpack.c.l.b16 %v1862
  %v3126 = vunpack.c.h.b16 %v1862
  %v3127 = vunpack.c.l.b16 %v1863
  %v3128 = vunpack.c.h.b16 %v1863
  %v3129 = vunpack.c.l.b16 %v1864
  %v3130 = vunpack.c.h.b16 %v1864
  %v3131 = vunpack.c.l.b16 %v1865
  %v3132 = vunpack.c.h.b16 %v1865
  %v3133 = vunpack.c.l.b16 %v1866
  %v3134 = vunpack.c.h.b16 %v1866
  %v3135 = vunpack.c.l.b16 %v1867
  %v3136 = vunpack.c.h.b16 %v1867
  %v3137 = vunpack.c.l.b16 %v1868
  %v3138 = vunpack.c.h.b16 %v1868
  %v3139 = vunpack.c.l.b16 %v1869
  %v3140 = vunpack.c.h.b16 %v1869
  %v3141 = vunpack.c.l.b16 %v1870
  %v3142 = vunpack.c.h.b16 %v1870
  %v3143 = vunpack.c.l.b16 %v1871
  %v3144 = vunpack.c.h.b16 %v1871
  %v3145 = vunpack.c.l.b16 %v1872
  %v3146 = vunpack.c.h.b16 %v1872
  %v3147 = vunpack.c.l.b16 %v1873
  %v3148 = vunpack.c.h.b16 %v1873
  %v3149 = vunpack.c.l.b16 %v1874
  %v3150 = vunpack.c.h.b16 %v1874
  %v3151 = vunpack.c.l.b16 %v1875
  %v3152 = vunpack.c.h.b16 %v1875
  %v3153 = vunpack.c.l.b16 %v1876
  %v3154 = vunpack.c.h.b16 %v1876
  %v3155 = vunpack.c.l.b16 %v1877
  %v3156 = vunpack.c.h.b16 %v1877
  %v3157 = vunpack.c.l.b16 %v1878
  %v3158 = vunpack.c.h.b16 %v1878
  %v3159 = vunpack.c.l.b16 %v1879
  %v3160 = vunpack.c.h.b16 %v1879
  %v3161 = vunpack.c.l.b16 %v1880
  %v3162 = vunpack.c.h.b16 %v1880
  %v3163 = vunpack.c.l.b16 %v1881
  %v3164 = vunpack.c.h.b16 %v1881
  %v3165 = vunpack.c.l.b16 %v1882
  %v3166 = vunpack.c.h.b16 %v1882
  %v3167 = vunpack.c.l.b16 %v1883
  %v3168 = vunpack.c.h.b16 %v1883
  %v3169 = vunpack.c.l.b16 %v1884
  %v3170 = vunpack.c.h.b16 %v1884
  %v3171 = vunpack.c.l.b16 %v1885
  %v3172 = vunpack.c.h.b16 %v1885
  %v3173 = vunpack.c.l.b16 %v1886
  %v3174 = vunpack.c.h.b16 %v1886
  %v3175 = vunpack.c.l.b16 %v1887
  %v3176 = vunpack.c.h.b16 %v1887
  %v3177 = vunpack.c.l.b16 %v1888
  %v3178 = vunpack.c.h.b16 %v1888
  %v3179 = vunpack.c.l.b16 %v1889
  %v3180 = vunpack.c.h.b16 %v1889
  %v3181 = vunpack.c.l.b16 %v1890
  %v3182 = vunpack.c.h.b16 %v1890
  %v3183 = vunpack.c.l.b16 %v1891
  %v3184 = vunpack.c.h.b16 %v1891
  %v3185 = vunpack.c.l.b16 %v1892
  %v3186 = vunpack.c.h.b16 %v1892
  %v3187 = vunpack.c.l.b16 %v1893
  %v3188 = vunpack.c.h.b16 %v1893
  %v3189 = vunpack.c.l.b16 %v1894
  %v3190 = vunpack.c.h.b16 %v1894
  %v3191 = vunpack.c.l.b16 %v1895
  %v3192 = vunpack.c.h.b16 %v1895
  %v3193 = vunpack.c.l.b16 %v1896
  %v3194 = vunpack.c.h.b16 %v1896
  %v3195 = vunpack.c.l.b16 %v1897
  %v3196 = vunpack.c.h.b16 %v1897
  %v3197 = vunpack.c.l.b16 %v1898
  %v3198 = vunpack.c.h.b16 %v1898
  %v3199 = vunpack.c.l.b16 %v1899
  %v3200 = vunpack.c.h.b16 %v1899
  %v3201 = vunpack.c.l.b16 %v1900
  %v3202 = vunpack.c.h.b16 %v1900
  %v3203 = vunpack.c.l.b16 %v1901
  %v3204 = vunpack.c.h.b16 %v1901
  %v3205 = vunpack.c.l.b16 %v1902
  %v3206 = vunpack.c.h.b16 %v1902
  %v3207 = vunpack.c.l.b16 %v1903
  %v3208 = vunpack.c.h.b16 %v1903
  %v3209 = vunpack.c.l.b16 %v1904
  %v3210 = vunpack.c.h.b16 %v1904
  %v3211 = vunpack.c.l.b16 %v1905
  %v3212 = vunpack.c.h.b16 %v1905
  %v3213 = vunpack.c.l.b16 %v1906
  %v3214 = vunpack.c.h.b16 %v1906
  %v3215 = vunpack.c.l.b16 %v1907
  %v3216 = vunpack.c.h.b16 %v1907
  %v3217 = vpack.c.b16 %v2359, %v2353
  %v3218 = vpack.c.b16 %v2360, %v2354
  %v3219 = vpack.c.b16 %v2361, %v2355
  %v3220 = vpack.c.b16 %v2362, %v2356
  %v3221 = vpack.c.b16 %v2363, %v2357
  %v3222 = vpack.c.b16 %v2364, %v2358
  %v3223 = vpack.c.b16 %v2371, %v2365
  %v3224 = vpack.c.b16 %v2372, %v2366
  %v3225 = vpack.c.b16 %v2373, %v2367
  %v3226 = vpack.c.b16 %v2374, %v2368
  %v3227 = vpack.c.b16 %v2375, %v2369
  %v3228 = vpack.c.b16 %v2376, %v2370
  %v3229 = vpack.c.b16 %v2383, %v2377
  %v3230 = vpack.c.b16 %v2384, %v2378
  %v3231 = vpack.c.b16 %v2385, %v2379
  %v3232 = vpack.c.b16 %v2386, %v2380
  %v3233 = vpack.c.b16 %v2387, %v2381
  %v3234 = vpack.c.b16 %v2388, %v2382
  %v3235 = vpack.c.b16 %v2395, %v2389
  %v3236 = vpack.c.b16 %v2396, %v2390
  %v3237 = vpack.c.b16 %v2397, %v2391
  %v3238 = vpack.c.b16 %v2398, %v2392
  %v3239 = vpack.c.b16 %v2399, %v2393
  %v3240 = vpack.c.b16 %v2400, %v2394
  %v3241 = vpack.c.b16 %v2407, %v2401
  %v3242 = vpack.c.b16 %v2408, %v2402
  %v3243 = vpack.c.b16 %v2409, %v2403
  %v3244 = vpack.c.b16 %v2410, %v2404
  %v3245 = vpack.c.b16 %v2411, %v2405
  %v3246 = vpack.c.b16 %v2412, %v2406
  %v3247 = vpack.c.b16 %v2419, %v2413
  %v3248 = vpack.c.b16 %v2420, %v2414
  %v3249 = vpack.c.b16 %v2421, %v2415
  %v3250 = vpack.c.b16 %v2422, %v2416
  %v3251 = vpack.c.b16 %v2423, %v2417
  %v3252 = vpack.c.b16 %v2424, %v2418
  %v3253 = vpack.c.b16 %v2431, %v2425
  %v3254 = vpack.c.b16 %v2432, %v2426
  %v3255 = vpack.c.b16 %v2433, %v2427
  %v3256 = vpack.c.b16 %v2434, %v2428
  %v3257 = vpack.c.b16 %v2435, %v2429
  %v3258 = vpack.c.b16 %v2436, %v2430
  %v3259 = vpack.c.b16 %v2443, %v2437
  %v3260 = vpack.c.b16 %v2444, %v2438
  %v3261 = vpack.c.b16 %v2445, %v2439
  %v3262 = vpack.c.b16 %v2446, %v2440
  %v3263 = vpack.c.b16 %v2447, %v2441
  %v3264 = vpack.c.b16 %v2448, %v2442
  %v3265 = vpack.c.b16 %v2455, %v2449
  %v3266 = vpack.c.b16 %v2456, %v2450
  %v3267 = vpack.c.b16 %v2457, %v2451
  %v3268 = vpack.c.b16 %v2458, %v2452
  %v3269 = vpack.c.b16 %v2459, %v2453
  %v3270 = vpack.c.b16 %v2460, %v2454
  %v3271 = vpack.c.b16 %v2467, %v2461
  %v3272 = vpack.c.b16 %v2468, %v2462
  %v3273 = vpack.c.b16 %v2469, %v2463
  %v3274 = vpack.c.b16 %v2470, %v2464
  %v3275 = vpack.c.b16 %v2471, %v2465
  %v3276 = vpack.c.b16 %v2472, %v2466
  %v3277 = vpack.c.b16 %v2479, %v2473
  %v3278 = vpack.c.b16 %v2480, %v2474
  %v3279 = vpack.c.b16 %v2481, %v2475
  %v3280 = vpack.c.b16 %v2482, %v2476
  %v3281 = vpack.c.b16 %v2483, %v2477
  %v3282 = vpack.c.b16 %v2484, %v2478
  %v3283 = vpack.c.b16 %v2491, %v2485
  %v3284 = vpack.c.b16 %v2492, %v2486
  %v3285 = vpack.c.b16 %v2493, %v2487
  %v3286 = vpack.c.b16 %v2494, %v2488
  %v3287 = vpack.c.b16 %v2495, %v2489
  %v3288 = vpack.c.b16 %v2496, %v2490
  %v3289 = vpack.c.b16 %v2503, %v2497
  %v3290 = vpack.c.b16 %v2504, %v2498
  %v3291 = vpack.c.b16 %v2505, %v2499
  %v3292 = vpack.c.b16 %v2506, %v2500
  %v3293 = vpack.c.b16 %v2507, %v2501
  %v3294 = vpack.c.b16 %v2508, %v2502
  %v3295 = vpack.c.b16 %v2515, %v2509
  %v3296 = vpack.c.b16 %v2516, %v2510
  %v3297 = vpack.c.b16 %v2517, %v2511
  %v3298 = vpack.c.b16 %v2518, %v2512
  %v3299 = vpack.c.b16 %v2519, %v2513
  %v3300 = vpack.c.b16 %v2520, %v2514
  %v3301 = vpack.c.b16 %v2527, %v2521
  %v3302 = vpack.c.b16 %v2528, %v2522
  %v3303 = vpack.c.b16 %v2529, %v2523
  %v3304 = vpack.c.b16 %v2530, %v2524
  %v3305 = vpack.c.b16 %v2531, %v2525
  %v3306 = vpack.c.b16 %v2532, %v2526
  %v3307 = vpack.c.b16 %v2539, %v2533
  %v3308 = vpack.c.b16 %v2540, %v2534
  %v3309 = vpack.c.b16 %v2541, %v2535
  %v3310 = vpack.c.b16 %v2542, %v2536
  %v3311 = vpack.c.b16 %v2543, %v2537
  %v3312 = vpack.c.b16 %v2544, %v2538
  %v3313 = vpack.c.b16 %v2551, %v2545
  %v3314 = vpack.c.b16 %v2552, %v2546
  %v3315 = vpack.c.b16 %v2553, %v2547
  %v3316 = vpack.c.b16 %v2554, %v2548
  %v3317 = vpack.c.b16 %v2555, %v2549
  %v3318 = vpack.c.b16 %v2556, %v2550
  %v3319 = vpack.c.b16 %v2563, %v2557
  %v3320 = vpack.c.b16 %v2564, %v2558
  %v3321 = vpack.c.b16 %v2565, %v2559
  %v3322 = vpack.c.b16 %v2566, %v2560
  %v3323 = vpack.c.b16 %v2567, %v2561
  %v3324 = vpack.c.b16 %v2568, %v2562
  %v3325 = vpack.c.b16 %v2575, %v2569
  %v3326 = vpack.c.b16 %v2576, %v2570
  %v3327 = vpack.c.b16 %v2577, %v2571
  %v3328 = vpack.c.b16 %v2578, %v2572
  %v3329 = vpack.c.b16 %v2579, %v2573
  %v3330 = vpack.c.b16 %v2580, %v2574
  %v3331 = vpack.c.b16 %v2587, %v2581
  %v3332 = vpack.c.b16 %v2588, %v2582
  %v3333 = vpack.c.b16 %v2589, %v2583
  %v3334 = vpack.c.b16 %v2590, %v2584
  %v3335 = vpack.c.b16 %v2591, %v2585
  %v3336 = vpack.c.b16 %v2592, %v2586
  %v3337 = vpack.c.b16 %v2599, %v2593
  %v3338 = vpack.c.b16 %v2600, %v2594
  %v3339 = vpack.c.b16 %v2601, %v2595
  %v3340 = vpack.c.b16 %v2602, %v2596
  %v3341 = vpack.c.b16 %v2603, %v2597
  %v3342 = vpack.c.b16 %v2604, %v2598
  %v3343 = vpack.c.b16 %v2611, %v2605
  %v3344 = vpack.c.b16 %v2612, %v2606
  %v3345 = vpack.c.b16 %v2613, %v2607
  %v3346 = vpack.c.b16 %v2614, %v2608
  %v3347 = vpack.c.b16 %v2615, %v2609
  %v3348 = vpack.c.b16 %v2616, %v2610
  %v3349 = vpack.c.b16 %v2623, %v2617
  %v3350 = vpack.c.b16 %v2624, %v2618
  %v3351 = vpack.c.b16 %v2625, %v2619
  %v3352 = vpack.c.b16 %v2626, %v2620
  %v3353 = vpack.c.b16 %v2627, %v2621
  %v3354 = vpack.c.b16 %v2628, %v2622
  %v3355 = vpack.c.b16 %v2635, %v2629
  %v3356 = vpack.c.b16 %v2636, %v2630
  %v3357 = vpack.c.b16 %v2637, %v2631
  %v3358 = vpack.c.b16 %v2638, %v2632
  %v3359 = vpack.c.b16 %v2639, %v2633
  %v3360 = vpack.c.b16 %v2640, %v2634
  %v3361 = vpack.c.b16 %v2647, %v2641
  %v3362 = vpack.c.b16 %v2648, %v2642
  %v3363 = vpack.c.b16 %v2649, %v2643
  %v3364 = vpack.c.b16 %v2650, %v2644
  %v3365 = vpack.c.b16 %v2651, %v2645
  %v3366 = vpack.c.b16 %v2652, %v2646
  %v3367 = vpack.c.b16 %v2659, %v2653
  %v3368 = vpack.c.b16 %v2660, %v2654
  %v3369 = vpack.c.b16 %v2661, %v2655
  %v3370 = vpack.c.b16 %v2662, %v2656
  %v3371 = vpack.c.b16 %v2663, %v2657
  %v3372 = vpack.c.b16 %v2664, %v2658
  %v3373 = vpack.c.b16 %v2671, %v2665
  %v3374 = vpack.c.b16 %v2672, %v2666
  %v3375 = vpack.c.b16 %v2673, %v2667
  %v3376 = vpack.c.b16 %v2674, %v2668
  %v3377 = vpack.c.b16 %v2675, %v2669
  %v3378 = vpack.c.b16 %v2676, %v2670
  %v3379 = vpack.c.b16 %v2683, %v2677
  %v3380 = vpack.c.b16 %v2684, %v2678
  %v3381 = vpack.c.b16 %v2685, %v2679
  %v3382 = vpack.c.b16 %v2686, %v2680
  %v3383 = vpack.c.b16 %v2687, %v2681
  %v3384 = vpack.c.b16 %v2688, %v2682
  %v3385 = vpack.c.b16 %v2695, %v2689
  %v3386 = vpack.c.b16 %v2696, %v2690
  %v3387 = vpack.c.b16 %v2697, %v2691
  %v3388 = vpack.c.b16 %v2698, %v2692
  %v3389 = vpack.c.b16 %v2699, %v2693
  %v3390 = vpack.c.b16 %v2700, %v2694
  %v3391 = vpack.c.b16 %v2707, %v2701
  %v3392 = vpack.c.b16 %v2708, %v2702
  %v3393 = vpack.c.b16 %v2709, %v2703
  %v3394 = vpack.c.b16 %v2710, %v2704
  %v3395 = vpack.c.b16 %v2711, %v2705
  %v3396 = vpack.c.b16 %v2712, %v2706
  %v3397 = vpack.c.b16 %v2719, %v2713
  %v3398 = vpack.c.b16 %v2720, %v2714
  %v3399 = vpack.c.b16 %v2721, %v2715
  %v3400 = vpack.c.b16 %v2722, %v2716
  %v3401 = vpack.c.b16 %v2723, %v2717
  %v3402 = vpack.c.b16 %v2724, %v2718
  %v3403 = vpack.c.b16 %v2731, %v2725
  %v3404 = vpack.c.b16 %v2732, %v2726
  %v3405 = vpack.c.b16 %v2733, %v2727
  %v3406 = vpack.c.b16 %v2734, %v2728
  %v3407 = vpack.c.b16 %v2735, %v2729
  %v3408 = vpack.c.b16 %v2736, %v2730
  %v3409 = vpack.c.b16 %v2743, %v2737
  %v3410 = vpack.c.b16 %v2744, %v2738
  %v3411 = vpack.c.b16 %v2745, %v2739
  %v3412 = vpack.c.b16 %v2746, %v2740
  %v3413 = vpack.c.b16 %v2747, %v2741
  %v3414 = vpack.c.b16 %v2748, %v2742
  %v3415 = vpack.c.b16 %v2755, %v2749
  %v3416 = vpack.c.b16 %v2756, %v2750
  %v3417 = vpack.c.b16 %v2757, %v2751
  %v3418 = vpack.c.b16 %v2758, %v2752
  %v3419 = vpack.c.b16 %v2759, %v2753
  %v3420 = vpack.c.b16 %v2760, %v2754
  %v3421 = vpack.c.b16 %v2767, %v2761
  %v3422 = vpack.c.b16 %v2768, %v2762
  %v3423 = vpack.c.b16 %v2769, %v2763
  %v3424 = vpack.c.b16 %v2770, %v2764
  %v3425 = vpack.c.b16 %v2771, %v2765
  %v3426 = vpack.c.b16 %v2772, %v2766
  %v3427 = vpack.c.b16 %v2779, %v2773
  %v3428 = vpack.c.b16 %v2780, %v2774
  %v3429 = vpack.c.b16 %v2781, %v2775
  %v3430 = vpack.c.b16 %v2782, %v2776
  %v3431 = vpack.c.b16 %v2783, %v2777
  %v3432 = vpack.c.b16 %v2784, %v2778
  %v3433 = vpack.c.b16 %v2791, %v2785
  %v3434 = vpack.c.b16 %v2792, %v2786
  %v3435 = vpack.c.b16 %v2793, %v2787
  %v3436 = vpack.c.b16 %v2794, %v2788
  %v3437 = vpack.c.b16 %v2795, %v2789
  %v3438 = vpack.c.b16 %v2796, %v2790
  %v3439 = vpack.c.b16 %v2803, %v2797
  %v3440 = vpack.c.b16 %v2804, %v2798
  %v3441 = vpack.c.b16 %v2805, %v2799
  %v3442 = vpack.c.b16 %v2806, %v2800
  %v3443 = vpack.c.b16 %v2807, %v2801
  %v3444 = vpack.c.b16 %v2808, %v2802
  %v3445 = vpack.c.b16 %v2815, %v2809
  %v3446 = vpack.c.b16 %v2816, %v2810
  %v3447 = vpack.c.b16 %v2817, %v2811
  %v3448 = vpack.c.b16 %v2818, %v2812
  %v3449 = vpack.c.b16 %v2819, %v2813
  %v3450 = vpack.c.b16 %v2820, %v2814
  %v3451 = vpack.c.b16 %v2827, %v2821
  %v3452 = vpack.c.b16 %v2828, %v2822
  %v3453 = vpack.c.b16 %v2829, %v2823
  %v3454 = vpack.c.b16 %v2830, %v2824
  %v3455 = vpack.c.b16 %v2831, %v2825
  %v3456 = vpack.c.b16 %v2832, %v2826
  %v3457 = vpack.c.b16 %v2839, %v2833
  %v3458 = vpack.c.b16 %v2840, %v2834
  %v3459 = vpack.c.b16 %v2841, %v2835
  %v3460 = vpack.c.b16 %v2842, %v2836
  %v3461 = vpack.c.b16 %v2843, %v2837
  %v3462 = vpack.c.b16 %v2844, %v2838
  %v3463 = vpack.c.b16 %v2851, %v2845
  %v3464 = vpack.c.b16 %v2852, %v2846
  %v3465 = vpack.c.b16 %v2853, %v2847
  %v3466 = vpack.c.b16 %v2854, %v2848
  %v3467 = vpack.c.b16 %v2855, %v2849
  %v3468 = vpack.c.b16 %v2856, %v2850
  %v3469 = vpack.c.b16 %v2863, %v2857
  %v3470 = vpack.c.b16 %v2864, %v2858
  %v3471 = vpack.c.b16 %v2865, %v2859
  %v3472 = vpack.c.b16 %v2866, %v2860
  %v3473 = vpack.c.b16 %v2867, %v2861
  %v3474 = vpack.c.b16 %v2868, %v2862
  %v3475 = vpack.c.b16 %v2875, %v2869
  %v3476 = vpack.c.b16 %v2876, %v2870
  %v3477 = vpack.c.b16 %v2877, %v2871
  %v3478 = vpack.c.b16 %v2878, %v2872
  %v3479 = vpack.c.b16 %v2879, %v2873
  %v3480 = vpack.c.b16 %v2880, %v2874
  %v3481 = vpack.c.b16 %v2887, %v2881
  %v3482 = vpack.c.b16 %v2888, %v2882
  %v3483 = vpack.c.b16 %v2889, %v2883
  %v3484 = vpack.c.b16 %v2890, %v2884
  %v3485 = vpack.c.b16 %v2891, %v2885
  %v3486 = vpack.c.b16 %v2892, %v2886
  %v3487 = vpack.c.b16 %v2899, %v2893
  %v3488 = vpack.c.b16 %v2900, %v2894
  %v3489 = vpack.c.b16 %v2901, %v2895
  %v3490 = vpack.c.b16 %v2902, %v2896
  %v3491 = vpack.c.b16 %v2903, %v2897
  %v3492 = vpack.c.b16 %v2904, %v2898
  %v3493 = vpack.c.b16 %v2911, %v2905
  %v3494 = vpack.c.b16 %v2912, %v2906
  %v3495 = vpack.c.b16 %v2913, %v2907
  %v3496 = vpack.c.b16 %v2914, %v2908
  %v3497 = vpack.c.b16 %v2915, %v2909
  %v3498 = vpack.c.b16 %v2916, %v2910
  %v3499 = vpack.c.b16 %v2923, %v2917
  %v3500 = vpack.c.b16 %v2924, %v2918
  %v3501 = vpack.c.b16 %v2925, %v2919
  %v3502 = vpack.c.b16 %v2926, %v2920
  %v3503 = vpack.c.b16 %v2927, %v2921
  %v3504 = vpack.c.b16 %v2928, %v2922
  %v3505 = vpack.c.b16 %v2935, %v2929
  %v3506 = vpack.c.b16 %v2936, %v2930
  %v3507 = vpack.c.b16 %v2937, %v2931
  %v3508 = vpack.c.b16 %v2938, %v2932
  %v3509 = vpack.c.b16 %v2939, %v2933
  %v3510 = vpack.c.b16 %v2940, %v2934
  %v3511 = vpack.c.b16 %v2947, %v2941
  %v3512 = vpack.c.b16 %v2948, %v2942
  %v3513 = vpack.c.b16 %v2949, %v2943
  %v3514 = vpack.c.b16 %v2950, %v2944
  %v3515 = vpack.c.b16 %v2951, %v2945
  %v3516 = vpack.c.b16 %v2952, %v2946
  %v3517 = vpack.c.b16 %v2959, %v2953
  %v3518 = vpack.c.b16 %v2960, %v2954
  %v3519 = vpack.c.b16 %v2961, %v2955
  %v3520 = vpack.c.b16 %v2962, %v2956
  %v3521 = vpack.c.b16 %v2963, %v2957
  %v3522 = vpack.c.b16 %v2964, %v2958
  %v3523 = vpack.c.b16 %v2971, %v2965
  %v3524 = vpack.c.b16 %v2972, %v2966
  %v3525 = vpack.c.b16 %v2973, %v2967
  %v3526 = vpack.c.b16 %v2974, %v2968
  %v3527 = vpack.c.b16 %v2975, %v2969
  %v3528 = vpack.c.b16 %v2976, %v2970
  %v3529 = vpack.c.b16 %v2983, %v2977
  %v3530 = vpack.c.b16 %v2984, %v2978
  %v3531 = vpack.c.b16 %v2985, %v2979
  %v3532 = vpack.c.b16 %v2986, %v2980
  %v3533 = vpack.c.b16 %v2987, %v2981
  %v3534 = vpack.c.b16 %v2988, %v2982
  %v3535 = vpack.c.b16 %v2995, %v2989
  %v3536 = vpack.c.b16 %v2996, %v2990
  %v3537 = vpack.c.b16 %v2997, %v2991
  %v3538 = vpack.c.b16 %v2998, %v2992
  %v3539 = vpack.c.b16 %v2999, %v2993
  %v3540 = vpack.c.b16 %v3000, %v2994
  %v3541 = vpack.c.b16 %v3007, %v3001
  %v3542 = vpack.c.b16 %v3008, %v3002
  %v3543 = vpack.c.b16 %v3009, %v3003
  %v3544 = vpack.c.b16 %v3010, %v3004
  %v3545 = vpack.c.b16 %v3011, %v3005
  %v3546 = vpack.c.b16 %v3012, %v3006
  %v3547 = vpack.c.b16 %v3019, %v3013
  %v3548 = vpack.c.b16 %v3020, %v3014
  %v3549 = vpack.c.b16 %v3021, %v3015
  %v3550 = vpack.c.b16 %v3022, %v3016
  %v3551 = vpack.c.b16 %v3023, %v3017
  %v3552 = vpack.c.b16 %v3024, %v3018
  %v3553 = vpack.c.b16 %v3031, %v3025
  %v3554 = vpack.c.b16 %v3032, %v3026
  %v3555 = vpack.c.b16 %v3033, %v3027
  %v3556 = vpack.c.b16 %v3034, %v3028
  %v3557 = vpack.c.b16 %v3035, %v3029
  %v3558 = vpack.c.b16 %v3036, %v3030
  %v3559 = vpack.c.b16 %v3043, %v3037
  %v3560 = vpack.c.b16 %v3044, %v3038
  %v3561 = vpack.c.b16 %v3045, %v3039
  %v3562 = vpack.c.b16 %v3046, %v3040
  %v3563 = vpack.c.b16 %v3047, %v3041
  %v3564 = vpack.c.b16 %v3048, %v3042
  %v3565 = vpack.c.b16 %v3055, %v3049
  %v3566 = vpack.c.b16 %v3056, %v3050
  %v3567 = vpack.c.b16 %v3057, %v3051
  %v3568 = vpack.c.b16 %v3058, %v3052
  %v3569 = vpack.c.b16 %v3059, %v3053
  %v3570 = vpack.c.b16 %v3060, %v3054
  %v3571 = vpack.c.b16 %v3067, %v3061
  %v3572 = vpack.c.b16 %v3068, %v3062
  %v3573 = vpack.c.b16 %v3069, %v3063
  %v3574 = vpack.c.b16 %v3070, %v3064
  %v3575 = vpack.c.b16 %v3071, %v3065
  %v3576 = vpack.c.b16 %v3072, %v3066
  %v3577 = vpack.c.b16 %v3079, %v3073
  %v3578 = vpack.c.b16 %v3080, %v3074
  %v3579 = vpack.c.b16 %v3081, %v3075
  %v3580 = vpack.c.b16 %v3082, %v3076
  %v3581 = vpack.c.b16 %v3083, %v3077
  %v3582 = vpack.c.b16 %v3084, %v3078
  %v3583 = vpack.c.b16 %v3091, %v3085
  %v3584 = vpack.c.b16 %v3092, %v3086
  %v3585 = vpack.c.b16 %v3093, %v3087
  %v3586 = vpack.c.b16 %v3094, %v3088
  %v3587 = vpack.c.b16 %v3095, %v3089
  %v3588 = vpack.c.b16 %v3096, %v3090
  %v3589 = vpack.c.b16 %v3103, %v3097
  %v3590 = vpack.c.b16 %v3104, %v3098
  %v3591 = vpack.c.b16 %v3105, %v3099
  %v3592 = vpack.c.b16 %v3106, %v3100
  %v3593 = vpack.c.b16 %v3107, %v3101
  %v3594 = vpack.c.b16 %v3108, %v3102
  %v3595 = vpack.c.b16 %v3115, %v3109
  %v3596 = vpack.c.b16 %v3116, %v3110
  %v3597 = vpack.c.b16 %v3117, %v3111
  %v3598 = vpack.c.b16 %v3118, %v3112
  %v3599 = vpack.c.b16 %v3119, %v3113
  %v3600 = vpack.c.b16 %v3120, %v3114
  %v3601 = vpack.c.b16 %v3127, %v3121
  %v3602 = vpack.c.b16 %v3128, %v3122
  %v3603 = vpack.c.b16 %v3129, %v3123
  %v3604 = vpack.c.b16 %v3130, %v3124
  %v3605 = vpack.c.b16 %v3131, %v3125
  %v3606 = vpack.c.b16 %v3132, %v3126
  %v3607 = vpack.c.b16 %v3139, %v3133
  %v3608 = vpack.c.b16 %v3140, %v3134
  %v3609 = vpack.c.b16 %v3141, %v3135
  %v3610 = vpack.c.b16 %v3142, %v3136
  %v3611 = vpack.c.b16 %v3143, %v3137
  %v3612 = vpack.c.b16 %v3144, %v3138
  %v3613 = vpack.c.b16 %v3151, %v3145
  %v3614 = vpack.c.b16 %v3152, %v3146
  %v3615 = vpack.c.b16 %v3153, %v3147
  %v3616 = vpack.c.b16 %v3154, %v3148
  %v3617 = vpack.c.b16 %v3155, %v3149
  %v3618 = vpack.c.b16 %v3156, %v3150
  %v3619 = vpack.c.b16 %v3163, %v3157
  %v3620 = vpack.c.b16 %v3164, %v3158
  %v3621 = vpack.c.b16 %v3165, %v3159
  %v3622 = vpack.c.b16 %v3166, %v3160
  %v3623 = vpack.c.b16 %v3167, %v3161
  %v3624 = vpack.c.b16 %v3168, %v3162
  %v3625 = vpack.c.b16 %v3175, %v3169
  %v3626 = vpack.c.b16 %v3176, %v3170
  %v3627 = vpack.c.b16 %v3177, %v3171
  %v3628 = vpack.c.b16 %v3178, %v3172
  %v3629 = vpack.c.b16 %v3179, %v3173
  %v3630 = vpack.c.b16 %v3180, %v3174
  %v3631 = vpack.c.b16 %v3187, %v3181
  %v3632 = vpack.c.b16 %v3188, %v3182
  %v3633 = vpack.c.b16 %v3189, %v3183
  %v3634 = vpack.c.b16 %v3190, %v3184
  %v3635 = vpack.c.b16 %v3191, %v3185
  %v3636 = vpack.c.b16 %v3192, %v3186
  %v3637 = vpack.c.b16 %v3199, %v3193
  %v3638 = vpack.c.b16 %v3200, %v3194
  %v3639 = vpack.c.b16 %v3201, %v3195
  %v3640 = vpack.c.b16 %v3202, %v3196
  %v3641 = vpack.c.b16 %v3203, %v3197
  %v3642 = vpack.c.b16 %v3204, %v3198
  %v3643 = vpack.c.b16 %v3211, %v3205
  %v3644 = vpack.c.b16 %v3212, %v3206
  %v3645 = vpack.c.b16 %v3213, %v3207
  %v3646 = vpack.c.b16 %v3214, %v3208
  %v3647 = vpack.c.b16 %v3215, %v3209
  %v3648 = vpack.c.b16 %v3216, %v3210
  %4081 = vmatpush.bf16.msra.mxu0 %v3259
  %4082 = vmatpush.bf16.msra.mxu0 %v3253
  %4083 = vmatpush.bf16.msra.mxu0 %v3247
  %4084 = vmatpush.bf16.msra.mxu0 %v3241
  %4085 = vmatpush.bf16.msra.mxu0 %v3235
  %4086 = vmatpush.bf16.msra.mxu0 %v3229
  %4087 = vmatpush.bf16.msra.mxu0 %v3223
  %4088 = vmatpush.bf16.msra.mxu0 %v3217
  %4089 = vmatmul.bf16.gmra.mxu0 %v1467
  %v4090 = vpop.f32.mrf.mxu0
  %v4091 = vadd.f32 %v1909, %v4090
  %v4092 = vpop.f32.mrf.mxu0
  %4093 = vdwg.mxu0
  %4094 = vmatpush.bf16.msra.mxu0 %v3307
  %4095 = vmatpush.bf16.msra.mxu0 %v3301
  %4096 = vmatpush.bf16.msra.mxu0 %v3295
  %4097 = vmatpush.bf16.msra.mxu0 %v3289
  %4098 = vmatpush.bf16.msra.mxu0 %v3283
  %4099 = vmatpush.bf16.msra.mxu0 %v3277
  %4100 = vmatpush.bf16.msra.mxu0 %v3271
  %4101 = vmatpush.bf16.msra.mxu0 %v3265
  %4102 = vmatmul.bf16.gmra.mxu0 %v1468
  %v4103 = vpop.f32.mrf.mxu0
  %v4104 = vadd.f32 %v4091, %v4103
  %v4105 = vpop.f32.mrf.mxu0
  %4106 = vdwg.mxu0
  %4107 = vmatpush.bf16.msra.mxu0 %v3355
  %4108 = vmatpush.bf16.msra.mxu0 %v3349
  %4109 = vmatpush.bf16.msra.mxu0 %v3343
  %4110 = vmatpush.bf16.msra.mxu0 %v3337
  %4111 = vmatpush.bf16.msra.mxu0 %v3331
  %4112 = vmatpush.bf16.msra.mxu0 %v3325
  %4113 = vmatpush.bf16.msra.mxu0 %v3319
  %4114 = vmatpush.bf16.msra.mxu0 %v3313
  %4115 = vmatmul.bf16.gmra.mxu0 %v1469
  %v4116 = vpop.f32.mrf.mxu0
  %v4117 = vadd.f32 %v4104, %v4116
  %v4118 = vpop.f32.mrf.mxu0
  %4119 = vdwg.mxu0
  %4120 = vmatpush.bf16.msra.mxu0 %v3403
  %4121 = vmatpush.bf16.msra.mxu0 %v3397
  %4122 = vmatpush.bf16.msra.mxu0 %v3391
  %4123 = vmatpush.bf16.msra.mxu0 %v3385
  %4124 = vmatpush.bf16.msra.mxu0 %v3379
  %4125 = vmatpush.bf16.msra.mxu0 %v3373
  %4126 = vmatpush.bf16.msra.mxu0 %v3367
  %4127 = vmatpush.bf16.msra.mxu0 %v3361
  %4128 = vmatmul.bf16.gmra.mxu0 %v1470
  %v4129 = vpop.f32.mrf.mxu0
  %v4130 = vadd.f32 %v4117, %v4129
  %v4131 = vpop.f32.mrf.mxu0
  %4132 = vdwg.mxu0
  %4133 = vmatpush.bf16.msra.mxu0 %v3451
  %4134 = vmatpush.bf16.msra.mxu0 %v3445
  %4135 = vmatpush.bf16.msra.mxu0 %v3439
  %4136 = vmatpush.bf16.msra.mxu0 %v3433
  %4137 = vmatpush.bf16.msra.mxu0 %v3427
  %4138 = vmatpush.bf16.msra.mxu0 %v3421
  %4139 = vmatpush.bf16.msra.mxu0 %v3415
  %4140 = vmatpush.bf16.msra.mxu0 %v3409
  %4141 = vmatmul.bf16.gmra.mxu0 %v1471
  %v4142 = vpop.f32.mrf.mxu0
  %v4143 = vadd.f32 %v4130, %v4142
  %v4144 = vpop.f32.mrf.mxu0
  %4145 = vdwg.mxu0
  %4146 = vmatpush.bf16.msra.mxu0 %v3499
  %4147 = vmatpush.bf16.msra.mxu0 %v3493
  %4148 = vmatpush.bf16.msra.mxu0 %v3487
  %4149 = vmatpush.bf16.msra.mxu0 %v3481
  %4150 = vmatpush.bf16.msra.mxu0 %v3475
  %4151 = vmatpush.bf16.msra.mxu0 %v3469
  %4152 = vmatpush.bf16.msra.mxu0 %v3463
  %4153 = vmatpush.bf16.msra.mxu0 %v3457
  %4154 = vmatmul.bf16.gmra.mxu0 %v1472
  %v4155 = vpop.f32.mrf.mxu0
  %v4156 = vadd.f32 %v4143, %v4155
  %v4157 = vpop.f32.mrf.mxu0
  %4158 = vdwg.mxu0
  %4159 = vmatpush.bf16.msra.mxu0 %v3547
  %4160 = vmatpush.bf16.msra.mxu0 %v3541
  %4161 = vmatpush.bf16.msra.mxu0 %v3535
  %4162 = vmatpush.bf16.msra.mxu0 %v3529
  %4163 = vmatpush.bf16.msra.mxu0 %v3523
  %4164 = vmatpush.bf16.msra.mxu0 %v3517
  %4165 = vmatpush.bf16.msra.mxu0 %v3511
  %4166 = vmatpush.bf16.msra.mxu0 %v3505
  %4167 = vmatmul.bf16.gmra.mxu0 %v1473
  %v4168 = vpop.f32.mrf.mxu0
  %v4169 = vadd.f32 %v4156, %v4168
  %v4170 = vpop.f32.mrf.mxu0
  %4171 = vdwg.mxu0
  %4172 = vmatpush.bf16.msra.mxu0 %v3595
  %4173 = vmatpush.bf16.msra.mxu0 %v3589
  %4174 = vmatpush.bf16.msra.mxu0 %v3583
  %4175 = vmatpush.bf16.msra.mxu0 %v3577
  %4176 = vmatpush.bf16.msra.mxu0 %v3571
  %4177 = vmatpush.bf16.msra.mxu0 %v3565
  %4178 = vmatpush.bf16.msra.mxu0 %v3559
  %4179 = vmatpush.bf16.msra.mxu0 %v3553
  %4180 = vmatmul.bf16.gmra.mxu0 %v1474
  %v4181 = vpop.f32.mrf.mxu0
  %v4182 = vadd.f32 %v4169, %v4181
  %v4183 = vpop.f32.mrf.mxu0
  %4184 = vdwg.mxu0
  %4185 = vmatpush.bf16.msra.mxu0 %v3643
  %4186 = vmatpush.bf16.msra.mxu0 %v3637
  %4187 = vmatpush.bf16.msra.mxu0 %v3631
  %4188 = vmatpush.bf16.msra.mxu0 %v3625
  %4189 = vmatpush.bf16.msra.mxu0 %v3619
  %4190 = vmatpush.bf16.msra.mxu0 %v3613
  %4191 = vmatpush.bf16.msra.mxu0 %v3607
  %4192 = vmatpush.bf16.msra.mxu0 %v3601
  %4193 = vmatmul.bf16.gmra.mxu0 %v1475
  %v4194 = vpop.f32.mrf.mxu0
  %v4195 = vadd.f32 %v4182, %v4194
  %v4196 = vpop.f32.mrf.mxu0
  %4197 = vdwg.mxu0
  %4198 = vmatpush.bf16.msra.mxu0 %v3260
  %4199 = vmatpush.bf16.msra.mxu0 %v3254
  %4200 = vmatpush.bf16.msra.mxu0 %v3248
  %4201 = vmatpush.bf16.msra.mxu0 %v3242
  %4202 = vmatpush.bf16.msra.mxu0 %v3236
  %4203 = vmatpush.bf16.msra.mxu0 %v3230
  %4204 = vmatpush.bf16.msra.mxu0 %v3224
  %4205 = vmatpush.bf16.msra.mxu0 %v3218
  %4206 = vmatmul.bf16.gmra.mxu0 %v1467
  %v4207 = vpop.f32.mrf.mxu0
  %v4208 = vadd.f32 %v1910, %v4207
  %v4209 = vpop.f32.mrf.mxu0
  %4210 = vdwg.mxu0
  %4211 = vmatpush.bf16.msra.mxu0 %v3308
  %4212 = vmatpush.bf16.msra.mxu0 %v3302
  %4213 = vmatpush.bf16.msra.mxu0 %v3296
  %4214 = vmatpush.bf16.msra.mxu0 %v3290
  %4215 = vmatpush.bf16.msra.mxu0 %v3284
  %4216 = vmatpush.bf16.msra.mxu0 %v3278
  %4217 = vmatpush.bf16.msra.mxu0 %v3272
  %4218 = vmatpush.bf16.msra.mxu0 %v3266
  %4219 = vmatmul.bf16.gmra.mxu0 %v1468
  %v4220 = vpop.f32.mrf.mxu0
  %v4221 = vadd.f32 %v4208, %v4220
  %v4222 = vpop.f32.mrf.mxu0
  %4223 = vdwg.mxu0
  %4224 = vmatpush.bf16.msra.mxu0 %v3356
  %4225 = vmatpush.bf16.msra.mxu0 %v3350
  %4226 = vmatpush.bf16.msra.mxu0 %v3344
  %4227 = vmatpush.bf16.msra.mxu0 %v3338
  %4228 = vmatpush.bf16.msra.mxu0 %v3332
  %4229 = vmatpush.bf16.msra.mxu0 %v3326
  %4230 = vmatpush.bf16.msra.mxu0 %v3320
  %4231 = vmatpush.bf16.msra.mxu0 %v3314
  %4232 = vmatmul.bf16.gmra.mxu0 %v1469
  %v4233 = vpop.f32.mrf.mxu0
  %v4234 = vadd.f32 %v4221, %v4233
  %v4235 = vpop.f32.mrf.mxu0
  %4236 = vdwg.mxu0
  %4237 = vmatpush.bf16.msra.mxu0 %v3404
  %4238 = vmatpush.bf16.msra.mxu0 %v3398
  %4239 = vmatpush.bf16.msra.mxu0 %v3392
  %4240 = vmatpush.bf16.msra.mxu0 %v3386
  %4241 = vmatpush.bf16.msra.mxu0 %v3380
  %4242 = vmatpush.bf16.msra.mxu0 %v3374
  %4243 = vmatpush.bf16.msra.mxu0 %v3368
  %4244 = vmatpush.bf16.msra.mxu0 %v3362
  %4245 = vmatmul.bf16.gmra.mxu0 %v1470
  %v4246 = vpop.f32.mrf.mxu0
  %v4247 = vadd.f32 %v4234, %v4246
  %v4248 = vpop.f32.mrf.mxu0
  %4249 = vdwg.mxu0
  %4250 = vmatpush.bf16.msra.mxu0 %v3452
  %4251 = vmatpush.bf16.msra.mxu0 %v3446
  %4252 = vmatpush.bf16.msra.mxu0 %v3440
  %4253 = vmatpush.bf16.msra.mxu0 %v3434
  %4254 = vmatpush.bf16.msra.mxu0 %v3428
  %4255 = vmatpush.bf16.msra.mxu0 %v3422
  %4256 = vmatpush.bf16.msra.mxu0 %v3416
  %4257 = vmatpush.bf16.msra.mxu0 %v3410
  %4258 = vmatmul.bf16.gmra.mxu0 %v1471
  %v4259 = vpop.f32.mrf.mxu0
  %v4260 = vadd.f32 %v4247, %v4259
  %v4261 = vpop.f32.mrf.mxu0
  %4262 = vdwg.mxu0
  %4263 = vmatpush.bf16.msra.mxu0 %v3500
  %4264 = vmatpush.bf16.msra.mxu0 %v3494
  %4265 = vmatpush.bf16.msra.mxu0 %v3488
  %4266 = vmatpush.bf16.msra.mxu0 %v3482
  %4267 = vmatpush.bf16.msra.mxu0 %v3476
  %4268 = vmatpush.bf16.msra.mxu0 %v3470
  %4269 = vmatpush.bf16.msra.mxu0 %v3464
  %4270 = vmatpush.bf16.msra.mxu0 %v3458
  %4271 = vmatmul.bf16.gmra.mxu0 %v1472
  %v4272 = vpop.f32.mrf.mxu0
  %v4273 = vadd.f32 %v4260, %v4272
  %v4274 = vpop.f32.mrf.mxu0
  %4275 = vdwg.mxu0
  %4276 = vmatpush.bf16.msra.mxu0 %v3548
  %4277 = vmatpush.bf16.msra.mxu0 %v3542
  %4278 = vmatpush.bf16.msra.mxu0 %v3536
  %4279 = vmatpush.bf16.msra.mxu0 %v3530
  %4280 = vmatpush.bf16.msra.mxu0 %v3524
  %4281 = vmatpush.bf16.msra.mxu0 %v3518
  %4282 = vmatpush.bf16.msra.mxu0 %v3512
  %4283 = vmatpush.bf16.msra.mxu0 %v3506
  %4284 = vmatmul.bf16.gmra.mxu0 %v1473
  %v4285 = vpop.f32.mrf.mxu0
  %v4286 = vadd.f32 %v4273, %v4285
  %v4287 = vpop.f32.mrf.mxu0
  %4288 = vdwg.mxu0
  %4289 = vmatpush.bf16.msra.mxu0 %v3596
  %4290 = vmatpush.bf16.msra.mxu0 %v3590
  %4291 = vmatpush.bf16.msra.mxu0 %v3584
  %4292 = vmatpush.bf16.msra.mxu0 %v3578
  %4293 = vmatpush.bf16.msra.mxu0 %v3572
  %4294 = vmatpush.bf16.msra.mxu0 %v3566
  %4295 = vmatpush.bf16.msra.mxu0 %v3560
  %4296 = vmatpush.bf16.msra.mxu0 %v3554
  %4297 = vmatmul.bf16.gmra.mxu0 %v1474
  %v4298 = vpop.f32.mrf.mxu0
  %v4299 = vadd.f32 %v4286, %v4298
  %v4300 = vpop.f32.mrf.mxu0
  %4301 = vdwg.mxu0
  %4302 = vmatpush.bf16.msra.mxu0 %v3644
  %4303 = vmatpush.bf16.msra.mxu0 %v3638
  %4304 = vmatpush.bf16.msra.mxu0 %v3632
  %4305 = vmatpush.bf16.msra.mxu0 %v3626
  %4306 = vmatpush.bf16.msra.mxu0 %v3620
  %4307 = vmatpush.bf16.msra.mxu0 %v3614
  %4308 = vmatpush.bf16.msra.mxu0 %v3608
  %4309 = vmatpush.bf16.msra.mxu0 %v3602
  %4310 = vmatmul.bf16.gmra.mxu0 %v1475
  %v4311 = vpop.f32.mrf.mxu0
  %v4312 = vadd.f32 %v4299, %v4311
  %v4313 = vpop.f32.mrf.mxu0
  %4314 = vdwg.mxu0
  %4315 = vmatpush.bf16.msra.mxu0 %v3261
  %4316 = vmatpush.bf16.msra.mxu0 %v3255
  %4317 = vmatpush.bf16.msra.mxu0 %v3249
  %4318 = vmatpush.bf16.msra.mxu0 %v3243
  %4319 = vmatpush.bf16.msra.mxu0 %v3237
  %4320 = vmatpush.bf16.msra.mxu0 %v3231
  %4321 = vmatpush.bf16.msra.mxu0 %v3225
  %4322 = vmatpush.bf16.msra.mxu0 %v3219
  %4323 = vmatmul.bf16.gmra.mxu0 %v1467
  %v4324 = vpop.f32.mrf.mxu0
  %v4325 = vadd.f32 %v1911, %v4324
  %v4326 = vpop.f32.mrf.mxu0
  %4327 = vdwg.mxu0
  %4328 = vmatpush.bf16.msra.mxu0 %v3309
  %4329 = vmatpush.bf16.msra.mxu0 %v3303
  %4330 = vmatpush.bf16.msra.mxu0 %v3297
  %4331 = vmatpush.bf16.msra.mxu0 %v3291
  %4332 = vmatpush.bf16.msra.mxu0 %v3285
  %4333 = vmatpush.bf16.msra.mxu0 %v3279
  %4334 = vmatpush.bf16.msra.mxu0 %v3273
  %4335 = vmatpush.bf16.msra.mxu0 %v3267
  %4336 = vmatmul.bf16.gmra.mxu0 %v1468
  %v4337 = vpop.f32.mrf.mxu0
  %v4338 = vadd.f32 %v4325, %v4337
  %v4339 = vpop.f32.mrf.mxu0
  %4340 = vdwg.mxu0
  %4341 = vmatpush.bf16.msra.mxu0 %v3357
  %4342 = vmatpush.bf16.msra.mxu0 %v3351
  %4343 = vmatpush.bf16.msra.mxu0 %v3345
  %4344 = vmatpush.bf16.msra.mxu0 %v3339
  %4345 = vmatpush.bf16.msra.mxu0 %v3333
  %4346 = vmatpush.bf16.msra.mxu0 %v3327
  %4347 = vmatpush.bf16.msra.mxu0 %v3321
  %4348 = vmatpush.bf16.msra.mxu0 %v3315
  %4349 = vmatmul.bf16.gmra.mxu0 %v1469
  %v4350 = vpop.f32.mrf.mxu0
  %v4351 = vadd.f32 %v4338, %v4350
  %v4352 = vpop.f32.mrf.mxu0
  %4353 = vdwg.mxu0
  %4354 = vmatpush.bf16.msra.mxu0 %v3405
  %4355 = vmatpush.bf16.msra.mxu0 %v3399
  %4356 = vmatpush.bf16.msra.mxu0 %v3393
  %4357 = vmatpush.bf16.msra.mxu0 %v3387
  %4358 = vmatpush.bf16.msra.mxu0 %v3381
  %4359 = vmatpush.bf16.msra.mxu0 %v3375
  %4360 = vmatpush.bf16.msra.mxu0 %v3369
  %4361 = vmatpush.bf16.msra.mxu0 %v3363
  %4362 = vmatmul.bf16.gmra.mxu0 %v1470
  %v4363 = vpop.f32.mrf.mxu0
  %v4364 = vadd.f32 %v4351, %v4363
  %v4365 = vpop.f32.mrf.mxu0
  %4366 = vdwg.mxu0
  %4367 = vmatpush.bf16.msra.mxu0 %v3453
  %4368 = vmatpush.bf16.msra.mxu0 %v3447
  %4369 = vmatpush.bf16.msra.mxu0 %v3441
  %4370 = vmatpush.bf16.msra.mxu0 %v3435
  %4371 = vmatpush.bf16.msra.mxu0 %v3429
  %4372 = vmatpush.bf16.msra.mxu0 %v3423
  %4373 = vmatpush.bf16.msra.mxu0 %v3417
  %4374 = vmatpush.bf16.msra.mxu0 %v3411
  %4375 = vmatmul.bf16.gmra.mxu0 %v1471
  %v4376 = vpop.f32.mrf.mxu0
  %v4377 = vadd.f32 %v4364, %v4376
  %v4378 = vpop.f32.mrf.mxu0
  %4379 = vdwg.mxu0
  %4380 = vmatpush.bf16.msra.mxu0 %v3501
  %4381 = vmatpush.bf16.msra.mxu0 %v3495
  %4382 = vmatpush.bf16.msra.mxu0 %v3489
  %4383 = vmatpush.bf16.msra.mxu0 %v3483
  %4384 = vmatpush.bf16.msra.mxu0 %v3477
  %4385 = vmatpush.bf16.msra.mxu0 %v3471
  %4386 = vmatpush.bf16.msra.mxu0 %v3465
  %4387 = vmatpush.bf16.msra.mxu0 %v3459
  %4388 = vmatmul.bf16.gmra.mxu0 %v1472
  %v4389 = vpop.f32.mrf.mxu0
  %v4390 = vadd.f32 %v4377, %v4389
  %v4391 = vpop.f32.mrf.mxu0
  %4392 = vdwg.mxu0
  %4393 = vmatpush.bf16.msra.mxu0 %v3549
  %4394 = vmatpush.bf16.msra.mxu0 %v3543
  %4395 = vmatpush.bf16.msra.mxu0 %v3537
  %4396 = vmatpush.bf16.msra.mxu0 %v3531
  %4397 = vmatpush.bf16.msra.mxu0 %v3525
  %4398 = vmatpush.bf16.msra.mxu0 %v3519
  %4399 = vmatpush.bf16.msra.mxu0 %v3513
  %4400 = vmatpush.bf16.msra.mxu0 %v3507
  %4401 = vmatmul.bf16.gmra.mxu0 %v1473
  %v4402 = vpop.f32.mrf.mxu0
  %v4403 = vadd.f32 %v4390, %v4402
  %v4404 = vpop.f32.mrf.mxu0
  %4405 = vdwg.mxu0
  %4406 = vmatpush.bf16.msra.mxu0 %v3597
  %4407 = vmatpush.bf16.msra.mxu0 %v3591
  %4408 = vmatpush.bf16.msra.mxu0 %v3585
  %4409 = vmatpush.bf16.msra.mxu0 %v3579
  %4410 = vmatpush.bf16.msra.mxu0 %v3573
  %4411 = vmatpush.bf16.msra.mxu0 %v3567
  %4412 = vmatpush.bf16.msra.mxu0 %v3561
  %4413 = vmatpush.bf16.msra.mxu0 %v3555
  %4414 = vmatmul.bf16.gmra.mxu0 %v1474
  %v4415 = vpop.f32.mrf.mxu0
  %v4416 = vadd.f32 %v4403, %v4415
  %v4417 = vpop.f32.mrf.mxu0
  %4418 = vdwg.mxu0
  %4419 = vmatpush.bf16.msra.mxu0 %v3645
  %4420 = vmatpush.bf16.msra.mxu0 %v3639
  %4421 = vmatpush.bf16.msra.mxu0 %v3633
  %4422 = vmatpush.bf16.msra.mxu0 %v3627
  %4423 = vmatpush.bf16.msra.mxu0 %v3621
  %4424 = vmatpush.bf16.msra.mxu0 %v3615
  %4425 = vmatpush.bf16.msra.mxu0 %v3609
  %4426 = vmatpush.bf16.msra.mxu0 %v3603
  %4427 = vmatmul.bf16.gmra.mxu0 %v1475
  %v4428 = vpop.f32.mrf.mxu0
  %v4429 = vadd.f32 %v4416, %v4428
  %v4430 = vpop.f32.mrf.mxu0
  %4431 = vdwg.mxu0
  %4432 = vmatpush.bf16.msra.mxu0 %v3262
  %4433 = vmatpush.bf16.msra.mxu0 %v3256
  %4434 = vmatpush.bf16.msra.mxu0 %v3250
  %4435 = vmatpush.bf16.msra.mxu0 %v3244
  %4436 = vmatpush.bf16.msra.mxu0 %v3238
  %4437 = vmatpush.bf16.msra.mxu0 %v3232
  %4438 = vmatpush.bf16.msra.mxu0 %v3226
  %4439 = vmatpush.bf16.msra.mxu0 %v3220
  %4440 = vmatmul.bf16.gmra.mxu0 %v1467
  %v4441 = vpop.f32.mrf.mxu0
  %v4442 = vadd.f32 %v1912, %v4441
  %v4443 = vpop.f32.mrf.mxu0
  %4444 = vdwg.mxu0
  %4445 = vmatpush.bf16.msra.mxu0 %v3310
  %4446 = vmatpush.bf16.msra.mxu0 %v3304
  %4447 = vmatpush.bf16.msra.mxu0 %v3298
  %4448 = vmatpush.bf16.msra.mxu0 %v3292
  %4449 = vmatpush.bf16.msra.mxu0 %v3286
  %4450 = vmatpush.bf16.msra.mxu0 %v3280
  %4451 = vmatpush.bf16.msra.mxu0 %v3274
  %4452 = vmatpush.bf16.msra.mxu0 %v3268
  %4453 = vmatmul.bf16.gmra.mxu0 %v1468
  %v4454 = vpop.f32.mrf.mxu0
  %v4455 = vadd.f32 %v4442, %v4454
  %v4456 = vpop.f32.mrf.mxu0
  %4457 = vdwg.mxu0
  %4458 = vmatpush.bf16.msra.mxu0 %v3358
  %4459 = vmatpush.bf16.msra.mxu0 %v3352
  %4460 = vmatpush.bf16.msra.mxu0 %v3346
  %4461 = vmatpush.bf16.msra.mxu0 %v3340
  %4462 = vmatpush.bf16.msra.mxu0 %v3334
  %4463 = vmatpush.bf16.msra.mxu0 %v3328
  %4464 = vmatpush.bf16.msra.mxu0 %v3322
  %4465 = vmatpush.bf16.msra.mxu0 %v3316
  %4466 = vmatmul.bf16.gmra.mxu0 %v1469
  %v4467 = vpop.f32.mrf.mxu0
  %v4468 = vadd.f32 %v4455, %v4467
  %v4469 = vpop.f32.mrf.mxu0
  %4470 = vdwg.mxu0
  %4471 = vmatpush.bf16.msra.mxu0 %v3406
  %4472 = vmatpush.bf16.msra.mxu0 %v3400
  %4473 = vmatpush.bf16.msra.mxu0 %v3394
  %4474 = vmatpush.bf16.msra.mxu0 %v3388
  %4475 = vmatpush.bf16.msra.mxu0 %v3382
  %4476 = vmatpush.bf16.msra.mxu0 %v3376
  %4477 = vmatpush.bf16.msra.mxu0 %v3370
  %4478 = vmatpush.bf16.msra.mxu0 %v3364
  %4479 = vmatmul.bf16.gmra.mxu0 %v1470
  %v4480 = vpop.f32.mrf.mxu0
  %v4481 = vadd.f32 %v4468, %v4480
  %v4482 = vpop.f32.mrf.mxu0
  %4483 = vdwg.mxu0
  %4484 = vmatpush.bf16.msra.mxu0 %v3454
  %4485 = vmatpush.bf16.msra.mxu0 %v3448
  %4486 = vmatpush.bf16.msra.mxu0 %v3442
  %4487 = vmatpush.bf16.msra.mxu0 %v3436
  %4488 = vmatpush.bf16.msra.mxu0 %v3430
  %4489 = vmatpush.bf16.msra.mxu0 %v3424
  %4490 = vmatpush.bf16.msra.mxu0 %v3418
  %4491 = vmatpush.bf16.msra.mxu0 %v3412
  %4492 = vmatmul.bf16.gmra.mxu0 %v1471
  %v4493 = vpop.f32.mrf.mxu0
  %v4494 = vadd.f32 %v4481, %v4493
  %v4495 = vpop.f32.mrf.mxu0
  %4496 = vdwg.mxu0
  %4497 = vmatpush.bf16.msra.mxu0 %v3502
  %4498 = vmatpush.bf16.msra.mxu0 %v3496
  %4499 = vmatpush.bf16.msra.mxu0 %v3490
  %4500 = vmatpush.bf16.msra.mxu0 %v3484
  %4501 = vmatpush.bf16.msra.mxu0 %v3478
  %4502 = vmatpush.bf16.msra.mxu0 %v3472
  %4503 = vmatpush.bf16.msra.mxu0 %v3466
  %4504 = vmatpush.bf16.msra.mxu0 %v3460
  %4505 = vmatmul.bf16.gmra.mxu0 %v1472
  %v4506 = vpop.f32.mrf.mxu0
  %v4507 = vadd.f32 %v4494, %v4506
  %v4508 = vpop.f32.mrf.mxu0
  %4509 = vdwg.mxu0
  %4510 = vmatpush.bf16.msra.mxu0 %v3550
  %4511 = vmatpush.bf16.msra.mxu0 %v3544
  %4512 = vmatpush.bf16.msra.mxu0 %v3538
  %4513 = vmatpush.bf16.msra.mxu0 %v3532
  %4514 = vmatpush.bf16.msra.mxu0 %v3526
  %4515 = vmatpush.bf16.msra.mxu0 %v3520
  %4516 = vmatpush.bf16.msra.mxu0 %v3514
  %4517 = vmatpush.bf16.msra.mxu0 %v3508
  %4518 = vmatmul.bf16.gmra.mxu0 %v1473
  %v4519 = vpop.f32.mrf.mxu0
  %v4520 = vadd.f32 %v4507, %v4519
  %v4521 = vpop.f32.mrf.mxu0
  %4522 = vdwg.mxu0
  %4523 = vmatpush.bf16.msra.mxu0 %v3598
  %4524 = vmatpush.bf16.msra.mxu0 %v3592
  %4525 = vmatpush.bf16.msra.mxu0 %v3586
  %4526 = vmatpush.bf16.msra.mxu0 %v3580
  %4527 = vmatpush.bf16.msra.mxu0 %v3574
  %4528 = vmatpush.bf16.msra.mxu0 %v3568
  %4529 = vmatpush.bf16.msra.mxu0 %v3562
  %4530 = vmatpush.bf16.msra.mxu0 %v3556
  %4531 = vmatmul.bf16.gmra.mxu0 %v1474
  %v4532 = vpop.f32.mrf.mxu0
  %v4533 = vadd.f32 %v4520, %v4532
  %v4534 = vpop.f32.mrf.mxu0
  %4535 = vdwg.mxu0
  %4536 = vmatpush.bf16.msra.mxu0 %v3646
  %4537 = vmatpush.bf16.msra.mxu0 %v3640
  %4538 = vmatpush.bf16.msra.mxu0 %v3634
  %4539 = vmatpush.bf16.msra.mxu0 %v3628
  %4540 = vmatpush.bf16.msra.mxu0 %v3622
  %4541 = vmatpush.bf16.msra.mxu0 %v3616
  %4542 = vmatpush.bf16.msra.mxu0 %v3610
  %4543 = vmatpush.bf16.msra.mxu0 %v3604
  %4544 = vmatmul.bf16.gmra.mxu0 %v1475
  %v4545 = vpop.f32.mrf.mxu0
  %v4546 = vadd.f32 %v4533, %v4545
  %v4547 = vpop.f32.mrf.mxu0
  %4548 = vdwg.mxu0
  %4549 = vmatpush.bf16.msra.mxu0 %v3263
  %4550 = vmatpush.bf16.msra.mxu0 %v3257
  %4551 = vmatpush.bf16.msra.mxu0 %v3251
  %4552 = vmatpush.bf16.msra.mxu0 %v3245
  %4553 = vmatpush.bf16.msra.mxu0 %v3239
  %4554 = vmatpush.bf16.msra.mxu0 %v3233
  %4555 = vmatpush.bf16.msra.mxu0 %v3227
  %4556 = vmatpush.bf16.msra.mxu0 %v3221
  %4557 = vmatmul.bf16.gmra.mxu0 %v1467
  %v4558 = vpop.f32.mrf.mxu0
  %v4559 = vadd.f32 %v1913, %v4558
  %v4560 = vpop.f32.mrf.mxu0
  %4561 = vdwg.mxu0
  %4562 = vmatpush.bf16.msra.mxu0 %v3311
  %4563 = vmatpush.bf16.msra.mxu0 %v3305
  %4564 = vmatpush.bf16.msra.mxu0 %v3299
  %4565 = vmatpush.bf16.msra.mxu0 %v3293
  %4566 = vmatpush.bf16.msra.mxu0 %v3287
  %4567 = vmatpush.bf16.msra.mxu0 %v3281
  %4568 = vmatpush.bf16.msra.mxu0 %v3275
  %4569 = vmatpush.bf16.msra.mxu0 %v3269
  %4570 = vmatmul.bf16.gmra.mxu0 %v1468
  %v4571 = vpop.f32.mrf.mxu0
  %v4572 = vadd.f32 %v4559, %v4571
  %v4573 = vpop.f32.mrf.mxu0
  %4574 = vdwg.mxu0
  %4575 = vmatpush.bf16.msra.mxu0 %v3359
  %4576 = vmatpush.bf16.msra.mxu0 %v3353
  %4577 = vmatpush.bf16.msra.mxu0 %v3347
  %4578 = vmatpush.bf16.msra.mxu0 %v3341
  %4579 = vmatpush.bf16.msra.mxu0 %v3335
  %4580 = vmatpush.bf16.msra.mxu0 %v3329
  %4581 = vmatpush.bf16.msra.mxu0 %v3323
  %4582 = vmatpush.bf16.msra.mxu0 %v3317
  %4583 = vmatmul.bf16.gmra.mxu0 %v1469
  %v4584 = vpop.f32.mrf.mxu0
  %v4585 = vadd.f32 %v4572, %v4584
  %v4586 = vpop.f32.mrf.mxu0
  %4587 = vdwg.mxu0
  %4588 = vmatpush.bf16.msra.mxu0 %v3407
  %4589 = vmatpush.bf16.msra.mxu0 %v3401
  %4590 = vmatpush.bf16.msra.mxu0 %v3395
  %4591 = vmatpush.bf16.msra.mxu0 %v3389
  %4592 = vmatpush.bf16.msra.mxu0 %v3383
  %4593 = vmatpush.bf16.msra.mxu0 %v3377
  %4594 = vmatpush.bf16.msra.mxu0 %v3371
  %4595 = vmatpush.bf16.msra.mxu0 %v3365
  %4596 = vmatmul.bf16.gmra.mxu0 %v1470
  %v4597 = vpop.f32.mrf.mxu0
  %v4598 = vadd.f32 %v4585, %v4597
  %v4599 = vpop.f32.mrf.mxu0
  %4600 = vdwg.mxu0
  %4601 = vmatpush.bf16.msra.mxu0 %v3455
  %4602 = vmatpush.bf16.msra.mxu0 %v3449
  %4603 = vmatpush.bf16.msra.mxu0 %v3443
  %4604 = vmatpush.bf16.msra.mxu0 %v3437
  %4605 = vmatpush.bf16.msra.mxu0 %v3431
  %4606 = vmatpush.bf16.msra.mxu0 %v3425
  %4607 = vmatpush.bf16.msra.mxu0 %v3419
  %4608 = vmatpush.bf16.msra.mxu0 %v3413
  %4609 = vmatmul.bf16.gmra.mxu0 %v1471
  %v4610 = vpop.f32.mrf.mxu0
  %v4611 = vadd.f32 %v4598, %v4610
  %v4612 = vpop.f32.mrf.mxu0
  %4613 = vdwg.mxu0
  %4614 = vmatpush.bf16.msra.mxu0 %v3503
  %4615 = vmatpush.bf16.msra.mxu0 %v3497
  %4616 = vmatpush.bf16.msra.mxu0 %v3491
  %4617 = vmatpush.bf16.msra.mxu0 %v3485
  %4618 = vmatpush.bf16.msra.mxu0 %v3479
  %4619 = vmatpush.bf16.msra.mxu0 %v3473
  %4620 = vmatpush.bf16.msra.mxu0 %v3467
  %4621 = vmatpush.bf16.msra.mxu0 %v3461
  %4622 = vmatmul.bf16.gmra.mxu0 %v1472
  %v4623 = vpop.f32.mrf.mxu0
  %v4624 = vadd.f32 %v4611, %v4623
  %v4625 = vpop.f32.mrf.mxu0
  %4626 = vdwg.mxu0
  %4627 = vmatpush.bf16.msra.mxu0 %v3551
  %4628 = vmatpush.bf16.msra.mxu0 %v3545
  %4629 = vmatpush.bf16.msra.mxu0 %v3539
  %4630 = vmatpush.bf16.msra.mxu0 %v3533
  %4631 = vmatpush.bf16.msra.mxu0 %v3527
  %4632 = vmatpush.bf16.msra.mxu0 %v3521
  %4633 = vmatpush.bf16.msra.mxu0 %v3515
  %4634 = vmatpush.bf16.msra.mxu0 %v3509
  %4635 = vmatmul.bf16.gmra.mxu0 %v1473
  %v4636 = vpop.f32.mrf.mxu0
  %v4637 = vadd.f32 %v4624, %v4636
  %v4638 = vpop.f32.mrf.mxu0
  %4639 = vdwg.mxu0
  %4640 = vmatpush.bf16.msra.mxu0 %v3599
  %4641 = vmatpush.bf16.msra.mxu0 %v3593
  %4642 = vmatpush.bf16.msra.mxu0 %v3587
  %4643 = vmatpush.bf16.msra.mxu0 %v3581
  %4644 = vmatpush.bf16.msra.mxu0 %v3575
  %4645 = vmatpush.bf16.msra.mxu0 %v3569
  %4646 = vmatpush.bf16.msra.mxu0 %v3563
  %4647 = vmatpush.bf16.msra.mxu0 %v3557
  %4648 = vmatmul.bf16.gmra.mxu0 %v1474
  %v4649 = vpop.f32.mrf.mxu0
  %v4650 = vadd.f32 %v4637, %v4649
  %v4651 = vpop.f32.mrf.mxu0
  %4652 = vdwg.mxu0
  %4653 = vmatpush.bf16.msra.mxu0 %v3647
  %4654 = vmatpush.bf16.msra.mxu0 %v3641
  %4655 = vmatpush.bf16.msra.mxu0 %v3635
  %4656 = vmatpush.bf16.msra.mxu0 %v3629
  %4657 = vmatpush.bf16.msra.mxu0 %v3623
  %4658 = vmatpush.bf16.msra.mxu0 %v3617
  %4659 = vmatpush.bf16.msra.mxu0 %v3611
  %4660 = vmatpush.bf16.msra.mxu0 %v3605
  %4661 = vmatmul.bf16.gmra.mxu0 %v1475
  %v4662 = vpop.f32.mrf.mxu0
  %v4663 = vadd.f32 %v4650, %v4662
  %v4664 = vpop.f32.mrf.mxu0
  %4665 = vdwg.mxu0
  %4666 = vmatpush.bf16.msra.mxu0 %v3264
  %4667 = vmatpush.bf16.msra.mxu0 %v3258
  %4668 = vmatpush.bf16.msra.mxu0 %v3252
  %4669 = vmatpush.bf16.msra.mxu0 %v3246
  %4670 = vmatpush.bf16.msra.mxu0 %v3240
  %4671 = vmatpush.bf16.msra.mxu0 %v3234
  %4672 = vmatpush.bf16.msra.mxu0 %v3228
  %4673 = vmatpush.bf16.msra.mxu0 %v3222
  %4674 = vmatmul.bf16.gmra.mxu0 %v1467
  %v4675 = vpop.f32.mrf.mxu0
  %v4676 = vadd.f32 %v1914, %v4675
  %v4677 = vpop.f32.mrf.mxu0
  %4678 = vdwg.mxu0
  %4679 = vmatpush.bf16.msra.mxu0 %v3312
  %4680 = vmatpush.bf16.msra.mxu0 %v3306
  %4681 = vmatpush.bf16.msra.mxu0 %v3300
  %4682 = vmatpush.bf16.msra.mxu0 %v3294
  %4683 = vmatpush.bf16.msra.mxu0 %v3288
  %4684 = vmatpush.bf16.msra.mxu0 %v3282
  %4685 = vmatpush.bf16.msra.mxu0 %v3276
  %4686 = vmatpush.bf16.msra.mxu0 %v3270
  %4687 = vmatmul.bf16.gmra.mxu0 %v1468
  %v4688 = vpop.f32.mrf.mxu0
  %v4689 = vadd.f32 %v4676, %v4688
  %v4690 = vpop.f32.mrf.mxu0
  %4691 = vdwg.mxu0
  %4692 = vmatpush.bf16.msra.mxu0 %v3360
  %4693 = vmatpush.bf16.msra.mxu0 %v3354
  %4694 = vmatpush.bf16.msra.mxu0 %v3348
  %4695 = vmatpush.bf16.msra.mxu0 %v3342
  %4696 = vmatpush.bf16.msra.mxu0 %v3336
  %4697 = vmatpush.bf16.msra.mxu0 %v3330
  %4698 = vmatpush.bf16.msra.mxu0 %v3324
  %4699 = vmatpush.bf16.msra.mxu0 %v3318
  %4700 = vmatmul.bf16.gmra.mxu0 %v1469
  %v4701 = vpop.f32.mrf.mxu0
  %v4702 = vadd.f32 %v4689, %v4701
  %v4703 = vpop.f32.mrf.mxu0
  %4704 = vdwg.mxu0
  %4705 = vmatpush.bf16.msra.mxu0 %v3408
  %4706 = vmatpush.bf16.msra.mxu0 %v3402
  %4707 = vmatpush.bf16.msra.mxu0 %v3396
  %4708 = vmatpush.bf16.msra.mxu0 %v3390
  %4709 = vmatpush.bf16.msra.mxu0 %v3384
  %4710 = vmatpush.bf16.msra.mxu0 %v3378
  %4711 = vmatpush.bf16.msra.mxu0 %v3372
  %4712 = vmatpush.bf16.msra.mxu0 %v3366
  %4713 = vmatmul.bf16.gmra.mxu0 %v1470
  %v4714 = vpop.f32.mrf.mxu0
  %v4715 = vadd.f32 %v4702, %v4714
  %v4716 = vpop.f32.mrf.mxu0
  %4717 = vdwg.mxu0
  %4718 = vmatpush.bf16.msra.mxu0 %v3456
  %4719 = vmatpush.bf16.msra.mxu0 %v3450
  %4720 = vmatpush.bf16.msra.mxu0 %v3444
  %4721 = vmatpush.bf16.msra.mxu0 %v3438
  %4722 = vmatpush.bf16.msra.mxu0 %v3432
  %4723 = vmatpush.bf16.msra.mxu0 %v3426
  %4724 = vmatpush.bf16.msra.mxu0 %v3420
  %4725 = vmatpush.bf16.msra.mxu0 %v3414
  %4726 = vmatmul.bf16.gmra.mxu0 %v1471
  %v4727 = vpop.f32.mrf.mxu0
  %v4728 = vadd.f32 %v4715, %v4727
  %v4729 = vpop.f32.mrf.mxu0
  %4730 = vdwg.mxu0
  %4731 = vmatpush.bf16.msra.mxu0 %v3504
  %4732 = vmatpush.bf16.msra.mxu0 %v3498
  %4733 = vmatpush.bf16.msra.mxu0 %v3492
  %4734 = vmatpush.bf16.msra.mxu0 %v3486
  %4735 = vmatpush.bf16.msra.mxu0 %v3480
  %4736 = vmatpush.bf16.msra.mxu0 %v3474
  %4737 = vmatpush.bf16.msra.mxu0 %v3468
  %4738 = vmatpush.bf16.msra.mxu0 %v3462
  %4739 = vmatmul.bf16.gmra.mxu0 %v1472
  %v4740 = vpop.f32.mrf.mxu0
  %v4741 = vadd.f32 %v4728, %v4740
  %v4742 = vpop.f32.mrf.mxu0
  %4743 = vdwg.mxu0
  %4744 = vmatpush.bf16.msra.mxu0 %v3552
  %4745 = vmatpush.bf16.msra.mxu0 %v3546
  %4746 = vmatpush.bf16.msra.mxu0 %v3540
  %4747 = vmatpush.bf16.msra.mxu0 %v3534
  %4748 = vmatpush.bf16.msra.mxu0 %v3528
  %4749 = vmatpush.bf16.msra.mxu0 %v3522
  %4750 = vmatpush.bf16.msra.mxu0 %v3516
  %4751 = vmatpush.bf16.msra.mxu0 %v3510
  %4752 = vmatmul.bf16.gmra.mxu0 %v1473
  %v4753 = vpop.f32.mrf.mxu0
  %v4754 = vadd.f32 %v4741, %v4753
  %v4755 = vpop.f32.mrf.mxu0
  %4756 = vdwg.mxu0
  %4757 = vmatpush.bf16.msra.mxu0 %v3600
  %4758 = vmatpush.bf16.msra.mxu0 %v3594
  %4759 = vmatpush.bf16.msra.mxu0 %v3588
  %4760 = vmatpush.bf16.msra.mxu0 %v3582
  %4761 = vmatpush.bf16.msra.mxu0 %v3576
  %4762 = vmatpush.bf16.msra.mxu0 %v3570
  %4763 = vmatpush.bf16.msra.mxu0 %v3564
  %4764 = vmatpush.bf16.msra.mxu0 %v3558
  %4765 = vmatmul.bf16.gmra.mxu0 %v1474
  %v4766 = vpop.f32.mrf.mxu0
  %v4767 = vadd.f32 %v4754, %v4766
  %v4768 = vpop.f32.mrf.mxu0
  %4769 = vdwg.mxu0
  %4770 = vmatpush.bf16.msra.mxu0 %v3648
  %4771 = vmatpush.bf16.msra.mxu0 %v3642
  %4772 = vmatpush.bf16.msra.mxu0 %v3636
  %4773 = vmatpush.bf16.msra.mxu0 %v3630
  %4774 = vmatpush.bf16.msra.mxu0 %v3624
  %4775 = vmatpush.bf16.msra.mxu0 %v3618
  %4776 = vmatpush.bf16.msra.mxu0 %v3612
  %4777 = vmatpush.bf16.msra.mxu0 %v3606
  %4778 = vmatmul.bf16.gmra.mxu0 %v1475
  %v4779 = vpop.f32.mrf.mxu0
  %v4780 = vadd.f32 %v4767, %v4779
  %v4781 = vpop.f32.mrf.mxu0
  %4782 = vdwg.mxu0
  %v4783 = vmul.f32 %v4195, 0.5
  %v4784 = vmul.f32 %v4312, 0.5
  %v4785 = vtanh.pop %v4783
  %v4786 = vtanh.pop %v4784
  %v4787 = vadd.f32 %v4785, 1.0
  %v4788 = vadd.f32 %v4786, 1.0
  %v4789 = vmul.f32 %v4787, 0.5
  %v4790 = vmul.f32 %v4788, 0.5
  %v4791 = vtanh.pop %v4429
  %v4792 = vtanh.pop %v4546
  %v4793 = vmul.f32 %v4663, 0.5
  %v4794 = vmul.f32 %v4780, 0.5
  %v4795 = vtanh.pop %v4793
  %v4796 = vtanh.pop %v4794
  %v4797 = vadd.f32 %v4795, 1.0
  %v4798 = vadd.f32 %v4796, 1.0
  %v4799 = vmul.f32 %v4797, 0.5
  %v4800 = vmul.f32 %v4798, 0.5
  %v4801 = vmul.f32 %v4789, %v4791
  %v4802 = vmul.f32 %v4790, %v4792
  %v4803 = vtanh.pop %v4801
  %v4804 = vtanh.pop %v4802
  %v4805 = vmul.f32 %v4799, %v4803
  %v4806 = vmul.f32 %v4800, %v4804
  %v4807 = vpack.c.bf16 %v4805, %v4805
  %v4808 = vpack.c.bf16 %v4806, %v4806
  %v4809 = vld [vmem:[%s6] sm:$0xff]
  %v4810 = vld [vmem:[%s6 + $0x8] sm:$0xff]
  %v4811 = vld [vmem:[%s6 + $0x10] sm:$0xff]
  %v4812 = vld [vmem:[%s6 + $0x18] sm:$0xff]
  %v4813 = vld [vmem:[%s6 + $0x20] sm:$0xff]
  %v4814 = vld [vmem:[%s6 + $0x28] sm:$0xff]
  %v4815 = vld [vmem:[%s6 + $0x30] sm:$0xff]
  %v4816 = vld [vmem:[%s6 + $0x38] sm:$0xff]
  %v4817 = vld [vmem:[%s6 + $0x40] sm:$0xff]
  %v4818 = vld [vmem:[%s6 + $0x48] sm:$0xff]
  %v4819 = vld [vmem:[%s6 + $0x50] sm:$0xff]
  %v4820 = vld [vmem:[%s6 + $0x58] sm:$0xff]
  %v4821 = vld [vmem:[%s6 + $0x60] sm:$0xff]
  %v4822 = vld [vmem:[%s6 + $0x68] sm:$0xff]
  %v4823 = vld [vmem:[%s6 + $0x70] sm:$0xff]
  %v4824 = vld [vmem:[%s6 + $0x78] sm:$0xff]
  %v4825 = vld [vmem:[%s6 + $0x80] sm:$0xff]
  %v4826 = vld [vmem:[%s6 + $0x88] sm:$0xff]
  %v4827 = vld [vmem:[%s6 + $0x90] sm:$0xff]
  %v4828 = vld [vmem:[%s6 + $0x98] sm:$0xff]
  %v4829 = vld [vmem:[%s6 + $0xa0] sm:$0xff]
  %v4830 = vld [vmem:[%s6 + $0xa8] sm:$0xff]
  %v4831 = vld [vmem:[%s6 + $0xb0] sm:$0xff]
  %v4832 = vld [vmem:[%s6 + $0xb8] sm:$0xff]
  %v4833 = vld [vmem:[%s6 + $0xc0] sm:$0xff]
  %v4834 = vld [vmem:[%s6 + $0xc8] sm:$0xff]
  %v4835 = vld [vmem:[%s6 + $0xd0] sm:$0xff]
  %v4836 = vld [vmem:[%s6 + $0xd8] sm:$0xff]
  %v4837 = vld [vmem:[%s6 + $0xe0] sm:$0xff]
  %v4838 = vld [vmem:[%s6 + $0xe8] sm:$0xff]
  %v4839 = vld [vmem:[%s6 + $0xf0] sm:$0xff]
  %v4840 = vld [vmem:[%s6 + $0xf8] sm:$0xff]
  %v4842 = vperm.slane %v39, 0
  %v4843 = vperm.slane %v39, 1
  %v4878 = vunpack.c.l.b16 %v4809
  %v4879 = vunpack.c.h.b16 %v4809
  %v4880 = vunpack.c.l.b16 %v4810
  %v4881 = vunpack.c.h.b16 %v4810
  %v4882 = vunpack.c.l.b16 %v4811
  %v4883 = vunpack.c.h.b16 %v4811
  %v4884 = vunpack.c.l.b16 %v4812
  %v4885 = vunpack.c.h.b16 %v4812
  %v4886 = vunpack.c.l.b16 %v4813
  %v4887 = vunpack.c.h.b16 %v4813
  %v4888 = vunpack.c.l.b16 %v4814
  %v4889 = vunpack.c.h.b16 %v4814
  %v4890 = vunpack.c.l.b16 %v4815
  %v4891 = vunpack.c.h.b16 %v4815
  %v4892 = vunpack.c.l.b16 %v4816
  %v4893 = vunpack.c.h.b16 %v4816
  %v4894 = vunpack.c.l.b16 %v4817
  %v4895 = vunpack.c.h.b16 %v4817
  %v4896 = vunpack.c.l.b16 %v4818
  %v4897 = vunpack.c.h.b16 %v4818
  %v4898 = vunpack.c.l.b16 %v4819
  %v4899 = vunpack.c.h.b16 %v4819
  %v4900 = vunpack.c.l.b16 %v4820
  %v4901 = vunpack.c.h.b16 %v4820
  %v4902 = vunpack.c.l.b16 %v4821
  %v4903 = vunpack.c.h.b16 %v4821
  %v4904 = vunpack.c.l.b16 %v4822
  %v4905 = vunpack.c.h.b16 %v4822
  %v4906 = vunpack.c.l.b16 %v4823
  %v4907 = vunpack.c.h.b16 %v4823
  %v4908 = vunpack.c.l.b16 %v4824
  %v4909 = vunpack.c.h.b16 %v4824
  %v4910 = vunpack.c.l.b16 %v4825
  %v4911 = vunpack.c.h.b16 %v4825
  %v4912 = vunpack.c.l.b16 %v4826
  %v4913 = vunpack.c.h.b16 %v4826
  %v4914 = vunpack.c.l.b16 %v4827
  %v4915 = vunpack.c.h.b16 %v4827
  %v4916 = vunpack.c.l.b16 %v4828
  %v4917 = vunpack.c.h.b16 %v4828
  %v4918 = vunpack.c.l.b16 %v4829
  %v4919 = vunpack.c.h.b16 %v4829
  %v4920 = vunpack.c.l.b16 %v4830
  %v4921 = vunpack.c.h.b16 %v4830
  %v4922 = vunpack.c.l.b16 %v4831
  %v4923 = vunpack.c.h.b16 %v4831
  %v4924 = vunpack.c.l.b16 %v4832
  %v4925 = vunpack.c.h.b16 %v4832
  %v4926 = vunpack.c.l.b16 %v4833
  %v4927 = vunpack.c.h.b16 %v4833
  %v4928 = vunpack.c.l.b16 %v4834
  %v4929 = vunpack.c.h.b16 %v4834
  %v4930 = vunpack.c.l.b16 %v4835
  %v4931 = vunpack.c.h.b16 %v4835
  %v4932 = vunpack.c.l.b16 %v4836
  %v4933 = vunpack.c.h.b16 %v4836
  %v4934 = vunpack.c.l.b16 %v4837
  %v4935 = vunpack.c.h.b16 %v4837
  %v4936 = vunpack.c.l.b16 %v4838
  %v4937 = vunpack.c.h.b16 %v4838
  %v4938 = vunpack.c.l.b16 %v4839
  %v4939 = vunpack.c.h.b16 %v4839
  %v4940 = vunpack.c.l.b16 %v4840
  %v4941 = vunpack.c.h.b16 %v4840
  %v4942 = vpack.c.b16 %v4880, %v4878
  %v4943 = vpack.c.b16 %v4881, %v4879
  %v4944 = vpack.c.b16 %v4884, %v4882
  %v4945 = vpack.c.b16 %v4885, %v4883
  %v4946 = vpack.c.b16 %v4888, %v4886
  %v4947 = vpack.c.b16 %v4889, %v4887
  %v4948 = vpack.c.b16 %v4892, %v4890
  %v4949 = vpack.c.b16 %v4893, %v4891
  %v4950 = vpack.c.b16 %v4896, %v4894
  %v4951 = vpack.c.b16 %v4897, %v4895
  %v4952 = vpack.c.b16 %v4900, %v4898
  %v4953 = vpack.c.b16 %v4901, %v4899
  %v4954 = vpack.c.b16 %v4904, %v4902
  %v4955 = vpack.c.b16 %v4905, %v4903
  %v4956 = vpack.c.b16 %v4908, %v4906
  %v4957 = vpack.c.b16 %v4909, %v4907
  %v4958 = vpack.c.b16 %v4912, %v4910
  %v4959 = vpack.c.b16 %v4913, %v4911
  %v4960 = vpack.c.b16 %v4916, %v4914
  %v4961 = vpack.c.b16 %v4917, %v4915
  %v4962 = vpack.c.b16 %v4920, %v4918
  %v4963 = vpack.c.b16 %v4921, %v4919
  %v4964 = vpack.c.b16 %v4924, %v4922
  %v4965 = vpack.c.b16 %v4925, %v4923
  %v4966 = vpack.c.b16 %v4928, %v4926
  %v4967 = vpack.c.b16 %v4929, %v4927
  %v4968 = vpack.c.b16 %v4932, %v4930
  %v4969 = vpack.c.b16 %v4933, %v4931
  %v4970 = vpack.c.b16 %v4936, %v4934
  %v4971 = vpack.c.b16 %v4937, %v4935
  %v4972 = vpack.c.b16 %v4940, %v4938
  %v4973 = vpack.c.b16 %v4941, %v4939
  %5006 = vmatpush.bf16.msra.mxu0 %v4956
  %5007 = vmatpush.bf16.msra.mxu0 %v4954
  %5008 = vmatpush.bf16.msra.mxu0 %v4952
  %5009 = vmatpush.bf16.msra.mxu0 %v4950
  %5010 = vmatpush.bf16.msra.mxu0 %v4948
  %5011 = vmatpush.bf16.msra.mxu0 %v4946
  %5012 = vmatpush.bf16.msra.mxu0 %v4944
  %5013 = vmatpush.bf16.msra.mxu0 %v4942
  %5014 = vmatmul.bf16.gmra.mxu0 %v4807
  %v5015 = vpop.f32.mrf.mxu0
  %v5016 = vadd.f32 %v4842, %v5015
  %v5017 = vpop.f32.mrf.mxu0
  %5018 = vdwg.mxu0
  %5019 = vmatpush.bf16.msra.mxu0 %v4972
  %5020 = vmatpush.bf16.msra.mxu0 %v4970
  %5021 = vmatpush.bf16.msra.mxu0 %v4968
  %5022 = vmatpush.bf16.msra.mxu0 %v4966
  %5023 = vmatpush.bf16.msra.mxu0 %v4964
  %5024 = vmatpush.bf16.msra.mxu0 %v4962
  %5025 = vmatpush.bf16.msra.mxu0 %v4960
  %5026 = vmatpush.bf16.msra.mxu0 %v4958
  %5027 = vmatmul.bf16.gmra.mxu0 %v4808
  %v5028 = vpop.f32.mrf.mxu0
  %v5029 = vadd.f32 %v5016, %v5028
  %v5030 = vpop.f32.mrf.mxu0
  %5031 = vdwg.mxu0
  %5032 = vmatpush.bf16.msra.mxu0 %v4957
  %5033 = vmatpush.bf16.msra.mxu0 %v4955
  %5034 = vmatpush.bf16.msra.mxu0 %v4953
  %5035 = vmatpush.bf16.msra.mxu0 %v4951
  %5036 = vmatpush.bf16.msra.mxu0 %v4949
  %5037 = vmatpush.bf16.msra.mxu0 %v4947
  %5038 = vmatpush.bf16.msra.mxu0 %v4945
  %5039 = vmatpush.bf16.msra.mxu0 %v4943
  %5040 = vmatmul.bf16.gmra.mxu0 %v4807
  %v5041 = vpop.f32.mrf.mxu0
  %v5042 = vadd.f32 %v4843, %v5041
  %v5043 = vpop.f32.mrf.mxu0
  %5044 = vdwg.mxu0
  %5045 = vmatpush.bf16.msra.mxu0 %v4973
  %5046 = vmatpush.bf16.msra.mxu0 %v4971
  %5047 = vmatpush.bf16.msra.mxu0 %v4969
  %5048 = vmatpush.bf16.msra.mxu0 %v4967
  %5049 = vmatpush.bf16.msra.mxu0 %v4965
  %5050 = vmatpush.bf16.msra.mxu0 %v4963
  %5051 = vmatpush.bf16.msra.mxu0 %v4961
  %5052 = vmatpush.bf16.msra.mxu0 %v4959
  %5053 = vmatmul.bf16.gmra.mxu0 %v4808
  %v5054 = vpop.f32.mrf.mxu0
  %v5055 = vadd.f32 %v5042, %v5054
  %v5056 = vpop.f32.mrf.mxu0
  %5057 = vdwg.mxu0
  %v5058 = vmax.f32 %v5029, 0.0
  %v5059 = vmax.f32 %v5055, 0.0
  %v5060 = vpack.c.bf16 %v5058, %v5058
  %v5061 = vpack.c.bf16 %v5059, %v5059
  %v5062 = vld [vmem:[%s7] sm:$0xf]
  %v5063 = vld [vmem:[%s7 + $0x4] sm:$0xf]
  %v5064 = vld [vmem:[%s7 + $0x8] sm:$0xf]
  %v5065 = vld [vmem:[%s7 + $0xc] sm:$0xf]
  %v5066 = vld [vmem:[%s7 + $0x10] sm:$0xf]
  %v5067 = vld [vmem:[%s7 + $0x14] sm:$0xf]
  %v5068 = vld [vmem:[%s7 + $0x18] sm:$0xf]
  %v5069 = vld [vmem:[%s7 + $0x1c] sm:$0xf]
  %v5070 = vld [vmem:[%s7 + $0x20] sm:$0xf]
  %v5071 = vld [vmem:[%s7 + $0x24] sm:$0xf]
  %v5072 = vld [vmem:[%s7 + $0x28] sm:$0xf]
  %v5073 = vld [vmem:[%s7 + $0x2c] sm:$0xf]
  %v5074 = vld [vmem:[%s7 + $0x30] sm:$0xf]
  %v5075 = vld [vmem:[%s7 + $0x34] sm:$0xf]
  %v5076 = vld [vmem:[%s7 + $0x38] sm:$0xf]
  %v5077 = vld [vmem:[%s7 + $0x3c] sm:$0xf]
  %v5078 = vld [vmem:[%s7 + $0x40] sm:$0xf]
  %v5079 = vld [vmem:[%s7 + $0x44] sm:$0xf]
  %v5080 = vld [vmem:[%s7 + $0x48] sm:$0xf]
  %v5081 = vld [vmem:[%s7 + $0x4c] sm:$0xf]
  %v5082 = vld [vmem:[%s7 + $0x50] sm:$0xf]
  %v5083 = vld [vmem:[%s7 + $0x54] sm:$0xf]
  %v5084 = vld [vmem:[%s7 + $0x58] sm:$0xf]
  %v5085 = vld [vmem:[%s7 + $0x5c] sm:$0xf]
  %v5086 = vld [vmem:[%s7 + $0x60] sm:$0xf]
  %v5087 = vld [vmem:[%s7 + $0x64] sm:$0xf]
  %v5088 = vld [vmem:[%s7 + $0x68] sm:$0xf]
  %v5089 = vld [vmem:[%s7 + $0x6c] sm:$0xf]
  %v5090 = vld [vmem:[%s7 + $0x70] sm:$0xf]
  %v5091 = vld [vmem:[%s7 + $0x74] sm:$0xf]
  %v5092 = vld [vmem:[%s7 + $0x78] sm:$0xf]
  %v5093 = vld [vmem:[%s7 + $0x7c] sm:$0xf]
  %v5095 = vperm.slane %v40, 0
  %v5129 = vunpack.c.l.b16 %v5062
  %v5130 = vunpack.c.l.b16 %v5063
  %v5131 = vunpack.c.l.b16 %v5064
  %v5132 = vunpack.c.l.b16 %v5065
  %v5133 = vunpack.c.l.b16 %v5066
  %v5134 = vunpack.c.l.b16 %v5067
  %v5135 = vunpack.c.l.b16 %v5068
  %v5136 = vunpack.c.l.b16 %v5069
  %v5137 = vunpack.c.l.b16 %v5070
  %v5138 = vunpack.c.l.b16 %v5071
  %v5139 = vunpack.c.l.b16 %v5072
  %v5140 = vunpack.c.l.b16 %v5073
  %v5141 = vunpack.c.l.b16 %v5074
  %v5142 = vunpack.c.l.b16 %v5075
  %v5143 = vunpack.c.l.b16 %v5076
  %v5144 = vunpack.c.l.b16 %v5077
  %v5145 = vunpack.c.l.b16 %v5078
  %v5146 = vunpack.c.l.b16 %v5079
  %v5147 = vunpack.c.l.b16 %v5080
  %v5148 = vunpack.c.l.b16 %v5081
  %v5149 = vunpack.c.l.b16 %v5082
  %v5150 = vunpack.c.l.b16 %v5083
  %v5151 = vunpack.c.l.b16 %v5084
  %v5152 = vunpack.c.l.b16 %v5085
  %v5153 = vunpack.c.l.b16 %v5086
  %v5154 = vunpack.c.l.b16 %v5087
  %v5155 = vunpack.c.l.b16 %v5088
  %v5156 = vunpack.c.l.b16 %v5089
  %v5157 = vunpack.c.l.b16 %v5090
  %v5158 = vunpack.c.l.b16 %v5091
  %v5159 = vunpack.c.l.b16 %v5092
  %v5160 = vunpack.c.l.b16 %v5093
  %v5161 = vpack.c.b16 %v5130, %v5129
  %v5162 = vpack.c.b16 %v5132, %v5131
  %v5163 = vpack.c.b16 %v5134, %v5133
  %v5164 = vpack.c.b16 %v5136, %v5135
  %v5165 = vpack.c.b16 %v5138, %v5137
  %v5166 = vpack.c.b16 %v5140, %v5139
  %v5167 = vpack.c.b16 %v5142, %v5141
  %v5168 = vpack.c.b16 %v5144, %v5143
  %v5169 = vpack.c.b16 %v5146, %v5145
  %v5170 = vpack.c.b16 %v5148, %v5147
  %v5171 = vpack.c.b16 %v5150, %v5149
  %v5172 = vpack.c.b16 %v5152, %v5151
  %v5173 = vpack.c.b16 %v5154, %v5153
  %v5174 = vpack.c.b16 %v5156, %v5155
  %v5175 = vpack.c.b16 %v5158, %v5157
  %v5176 = vpack.c.b16 %v5160, %v5159
  %5193 = vmatpush.bf16.msra.mxu0 %v5168
  %5194 = vmatpush.bf16.msra.mxu0 %v5167
  %5195 = vmatpush.bf16.msra.mxu0 %v5166
  %5196 = vmatpush.bf16.msra.mxu0 %v5165
  %5197 = vmatpush.bf16.msra.mxu0 %v5164
  %5198 = vmatpush.bf16.msra.mxu0 %v5163
  %5199 = vmatpush.bf16.msra.mxu0 %v5162
  %5200 = vmatpush.bf16.msra.mxu0 %v5161
  %5201 = vmatmul.bf16.gmra.mxu0 %v5060
  %v5202 = vpop.f32.mrf.mxu0
  %v5203 = vadd.f32 %v5095, %v5202
  %v5204 = vpop.f32.mrf.mxu0
  %5205 = vdwg.mxu0
  %5206 = vmatpush.bf16.msra.mxu0 %v5176
  %5207 = vmatpush.bf16.msra.mxu0 %v5175
  %5208 = vmatpush.bf16.msra.mxu0 %v5174
  %5209 = vmatpush.bf16.msra.mxu0 %v5173
  %5210 = vmatpush.bf16.msra.mxu0 %v5172
  %5211 = vmatpush.bf16.msra.mxu0 %v5171
  %5212 = vmatpush.bf16.msra.mxu0 %v5170
  %5213 = vmatpush.bf16.msra.mxu0 %v5169
  %5214 = vmatmul.bf16.gmra.mxu0 %v5061
  %v5215 = vpop.f32.mrf.mxu0
  %v5216 = vadd.f32 %v5203, %v5215
  %v5217 = vpop.f32.mrf.mxu0
  %5218 = vdwg.mxu0
  %5219 = vst [vmem:[%s9] sm:$0xff] %v5216
  // Predicated region
  $region38: #{actor_critic_forward.1} parent=0 // pred_check
    _
  $region39: #{actor_critic_forward.1} parent=0 // pred_check_branch
    %5221 = sbr.rel (0) target = $region41
  $region40: #{actor_critic_forward.1} parent=0 // pred_region
    _
  $region41: #{actor_critic_forward.1} parent=0 // pred_fallthru
    _
  // Predicated region
  $region42: #{actor_critic_forward.1} parent=0 // pred_check
    _
  $region43: #{actor_critic_forward.1} parent=0 // pred_check_branch
    %5223 = sbr.rel (0) target = $region45
  $region44: #{actor_critic_forward.1} parent=0 // pred_region
    _
  $region45: #{actor_critic_forward.1} parent=0 // pred_fallthru
    _

</llo_original>
